<compile_context>
chip_gen: v5e
topology: v5e:2x2
jax: 0.10.0
libtpu: 0.0.40
codegen_flags: <defaults>
</compile_context>

<pallas_src>
import functools

import jax
import jax.numpy as jnp
import numpy as np
from jax.experimental import pallas as pl
from jax.experimental.pallas import tpu as pltpu

# Stage graph: (source buffer slots, destination slot (None -> kernel output),
# dilation). Slots: 7 = raw input, 0 = conv_in, 1..4 = encoders, 5..6 = decoders.
_STAGES = (
    ((7,), 0, 1),        # conv_in
    ((0,), 1, 1),        # encode 1
    ((1,), 2, 2),        # encode 2 (dilation 2)
    ((2,), 3, 4),        # encode 3 (dilation 4)
    ((3,), 4, 8),        # encode 4 (dilation 8)
    ((4, 3), 5, 4),      # decode 1: cat(enc4, enc3), dilation 4
    ((5, 2), 6, 2),      # decode 2: cat(dec1, enc2), dilation 2
    ((6, 1), None, 1),   # decode 3: cat(dec2, enc1), dilation 1 (+ residual)
)


def _rsu4f_kernel(x_ref, bw_ref, gather_ref, scatter_ref, gam_ref, bet_ref,
                  out_ref, bufs_ref, *, N, H, W, CH, P, eps):
    """Fused RSU4F forward.

    x_ref:       (N, H, W*CH)     channel-padded, lane-packed input (f32)
    bw_ref:      (T*W*CH, W*CH)   stacked band-structured tap matrices (bf16);
                                  kx shift + W zero-padding folded in
    gather_ref:  (W*CH, CH)       lane -> channel selector (BN sums)
    scatter_ref: (CH, W*CH)       channel -> lane selector (BN apply)
    gam_ref:     (8, 1, CH)       per-stage BN gamma
    bet_ref:     (8, 1, CH)       per-stage BN beta
    out_ref:     (N, H, W*CH)     lane-dense output
    bufs_ref:    (8, N, H+2P, W*CH) H-padded activation buffers (VMEM scratch)
    """
    WCH = W * CH
    M = N * H
    count = float(N * H * W)
    n_slots = bufs_ref.shape[0]
    in_slot = _STAGES[0][0][0]     # slot holding the raw (packed) input
    xin_slot = _STAGES[0][1]       # slot holding conv_in output (residual source)

    # Zero only the H-halo rows once (W zero-padding is folded into the band
    # weights, and every interior is fully overwritten before it is read).
    bufs_ref[:, :, 0:P, :] = jnp.zeros((n_slots, N, P, WCH), jnp.float32)
    bufs_ref[:, :, P + H:2 * P + H, :] = jnp.zeros((n_slots, N, P, WCH),
                                                   jnp.float32)

    # Stage the lane-packed input into the interior of its slot.
    bufs_ref[in_slot, :, P:P + H, :] = x_ref[...]

    row = 0  # static running row offset into the stacked tap-weight array
    for s, (srcs, dst, d) in enumerate(_STAGES):
        # ---- 3x3 dilated conv: ONE big-K lane-dense matmul per stage ----
        # (channel concat of the decoder is folded into the weight split, so a
        #  second source just contributes 3 more K-blocks.)
        lhs_parts = []
        for src in srcs:
            for ky in range(3):
                y0 = P + (ky - 1) * d
                lhs_parts.append(
                    bufs_ref[src, :, y0:y0 + H, :]
                    .reshape(M, WCH).astype(jnp.bfloat16))
        K = len(lhs_parts) * WCH
        lhs = jnp.concatenate(lhs_parts, axis=1)                 # (M, 384|768)
        acc = jnp.dot(lhs, bw_ref[row:row + K, :],
                      preferred_element_type=jnp.float32)        # (M, W*CH) f32
        row += K

        # ---- one-pass BatchNorm (batch statistics), all in f32 ----
        colstats = jnp.concatenate(
            [jnp.sum(acc, axis=0, keepdims=True),
             jnp.sum(acc * acc, axis=0, keepdims=True)], axis=0)  # (2, W*CH)
        ch = jnp.dot(colstats, gather_ref[...],
                     preferred_element_type=jnp.float32)          # (2, CH)
        mean = ch[0:1] / count
        var = jnp.maximum(ch[1:2] / count - mean * mean, 0.0)
        scale = gam_ref[s] * jax.lax.rsqrt(var + eps)              # (1, CH)
        shift = bet_ref[s] - mean * scale
        ss = jnp.dot(jnp.concatenate([scale, shift], axis=0), scatter_ref[...],
                     preferred_element_type=jnp.float32)           # (2, W*CH)

        # ---- fused BN-apply + ReLU (single f32 pass, lane-dense) ----
        act = jnp.maximum(acc * ss[0:1] + ss[1:2], 0.0)            # (M, W*CH)

        if dst is not None:
            bufs_ref[dst, :, P:P + H, :] = act.reshape(N, H, WCH)
        else:
            # last decoder stage: residual add with conv_in output
            x_in = bufs_ref[xin_slot, :, P:P + H, :]
            out_ref[...] = act.reshape(N, H, WCH) + x_in

    # trace-time guard: host packing order and kernel stage order must agree
    assert row == bw_ref.shape[0], "tap packing out of sync with stage graph"


def pack_rsu4f_params(params, *, W):
    """One-time host-side (numpy) packing of RSU4F weights.

    Builds, per stage / per source / per ky, a band-structured (W*CH, W*CH)
    matrix that folds the 3 kx taps and the W-direction zero padding into a
    single lane-aligned matmul operand, stacked along the contraction dim.
    """
    CH = int(np.asarray(params["w_in"]).shape[-1])
    WCH = W * CH
    assert WCH % 128 == 0, "lane-dense design needs W*CH to be a multiple of 128"
    all_w = [params["w_in"], *params["w_enc"], *params["w_dec"]]
    assert all(np.asarray(w).shape[-1] == CH for w in all_w), \
        "packed-lane design assumes all stage output widths equal CH"
    assert len(params["gamma"]) == 8 and len(params["beta"]) == 8

    def band_taps(w_hwio, d):
        # (3,3,cin,CH) -> 3 x (W*CH, W*CH), ky-major, kx + W-pad folded.
        w = np.asarray(w_hwio, np.float32)
        cin = w.shape[2]
        assert cin <= CH
        w = np.pad(w, ((0, 0), (0, 0), (0, CH - cin), (0, 0)))
        mats = []
        for ky in range(3):
            b = np.zeros((WCH, WCH), np.float32)
            for kx in range(3):
                shift = np.eye(W, W, k=-(kx - 1) * d, dtype=np.float32)
                b += np.kron(shift, w[ky, kx])
            mats.append(b)
        return mats

    w_enc, w_dec = params["w_enc"], params["w_dec"]
    per_stage = [
        [params["w_in"]],
        [w_enc[0]], [w_enc[1]], [w_enc[2]], [w_enc[3]],
        [np.asarray(w_dec[0])[:, :, :CH, :], np.asarray(w_dec[0])[:, :, CH:, :]],
        [np.asarray(w_dec[1])[:, :, :CH, :], np.asarray(w_dec[1])[:, :, CH:, :]],
        [np.asarray(w_dec[2])[:, :, :CH, :], np.asarray(w_dec[2])[:, :, CH:, :]],
    ]
    rows = []
    for ws, (srcs, _, d) in zip(per_stage, _STAGES):
        assert len(ws) == len(srcs)
        for w in ws:                     # per-source, ky-major (kernel order)
            rows.extend(band_taps(w, d))
    bw = np.concatenate(rows, axis=0)                    # (33*W*CH, W*CH)
    n_taps = sum(3 * len(srcs) for srcs, _, _ in _STAGES)
    assert bw.shape == (n_taps * WCH, WCH)

    lane_ch = np.arange(WCH) % CH
    gather = (lane_ch[:, None] == np.arange(CH)[None, :]).astype(np.float32)

    gam = np.stack([np.asarray(g, np.float32).reshape(1, CH)
                    for g in params["gamma"]])
    bet = np.stack([np.asarray(b, np.float32).reshape(1, CH)
                    for b in params["beta"]])

    return {
        "bw": jnp.asarray(bw, dtype=jnp.bfloat16),  # bf16: halves weight DMA
        "gather": jnp.asarray(gather),              # (W*CH, CH)
        "scatter": jnp.asarray(gather.T),           # (CH, W*CH)
        "gamma": jnp.asarray(gam),                  # (8, 1, CH)
        "beta": jnp.asarray(bet),                   # (8, 1, CH)
        "CH": CH,
        "W": W,
    }


def rsu4f_pallas(x_nchw, packed, *, eps=1e-5):
    """RSU4F forward matching the PyTorch module (training-mode BN stats)."""
    CH, W = packed["CH"], packed["W"]
    N, in_ch, H, Wx = x_nchw.shape
    assert Wx == W and in_ch <= CH
    WCH = W * CH
    P = max(d for _, _, d in _STAGES)
    Hp = H + 2 * P

    # Pack input once: NCHW -> NHWC -> zero-pad channels to CH -> lane-dense
    # (N, H, W*CH) with the last dim a multiple of 128.
    x_nhwc = jnp.transpose(x_nchw, (0, 2, 3, 1)).astype(jnp.float32)
    x_nhwc = jnp.pad(x_nhwc, ((0, 0), (0, 0), (0, 0), (0, CH - in_ch)))
    x_packed = x_nhwc.reshape(N, H, WCH)

    bw = packed["bw"]
    TR = bw.shape[0]
    S = packed["gamma"].shape[0]

    kernel = functools.partial(_rsu4f_kernel, N=N, H=H, W=W, CH=CH, P=P, eps=eps)

    out_packed = pl.pallas_call(
        kernel,
        out_shape=jax.ShapeDtypeStruct((N, H, WCH), jnp.float32),
        grid=(1,),  # whole (small) problem VMEM-resident; BN needs global stats
        in_specs=[
            pl.BlockSpec((N, H, WCH), lambda i: (0, 0, 0)),
            pl.BlockSpec((TR, WCH), lambda i: (0, 0)),
            pl.BlockSpec((WCH, CH), lambda i: (0, 0)),
            pl.BlockSpec((CH, WCH), lambda i: (0, 0)),
            pl.BlockSpec((S, 1, CH), lambda i: (0, 0, 0)),
            pl.BlockSpec((S, 1, CH), lambda i: (0, 0, 0)),
        ],
        out_specs=pl.BlockSpec((N, H, WCH), lambda i: (0, 0, 0)),
        scratch_shapes=[pltpu.VMEM((8, N, Hp, WCH), jnp.float32)],
        compiler_params=pltpu.CompilerParams(
            dimension_semantics=("arbitrary",),
            vmem_limit_bytes=16 * 1024 * 1024),
    )(x_packed, bw, packed["gather"], packed["scatter"],
      packed["gamma"], packed["beta"])

    out_nhwc = out_packed.reshape(N, H, W, CH)
    return jnp.transpose(out_nhwc, (0, 3, 1, 2))


# ------------------------- pure-JAX reference -------------------------
def _conv_bn_relu_ref(x, w_hwio, gamma, beta, dilation, eps=1e-5):
    w_oihw = jnp.transpose(w_hwio, (3, 2, 0, 1))
    y = jax.lax.conv_general_dilated(
        x.astype(jnp.float32), w_oihw, window_strides=(1, 1),
        padding=((dilation, dilation), (dilation, dilation)),
        rhs_dilation=(dilation, dilation),
        dimension_numbers=("NCHW", "OIHW", "NCHW"),
        precision=jax.lax.Precision.HIGHEST)
    mean = jnp.mean(y, axis=(0, 2, 3), keepdims=True)
    var = jnp.mean((y - mean) ** 2, axis=(0, 2, 3), keepdims=True)
    yn = (y - mean) * jax.lax.rsqrt(var + eps)
    yn = yn * gamma.reshape(1, -1, 1, 1) + beta.reshape(1, -1, 1, 1)
    return jnp.maximum(yn, 0.0)


def rsu4f_ref(x, params, eps=1e-5):
    g, b = params["gamma"], params["beta"]
    x_in = _conv_bn_relu_ref(x, params["w_in"], g[0], b[0], 1, eps)
    enc_dil = (1, 2, 4, 8)
    h = x_in
    enc = []
    for i in range(4):
        h = _conv_bn_relu_ref(h, params["w_enc"][i], g[1 + i], b[1 + i],
                              enc_dil[i], eps)
        enc.append(h)
    h = enc.pop()
    dec_dil = (4, 2, 1)
    for i in range(3):
        h2 = enc.pop()
        h = _conv_bn_relu_ref(jnp.concatenate([h, h2], axis=1),
                              params["w_dec"][i], g[5 + i], b[5 + i],
                              dec_dil[i], eps)
    return h + x_in


if __name__ == "__main__":
    # RSU4F(in_ch=4, mid_ch=8, out_ch=8), input (2, 4, 16, 16)
    N, in_ch, mid_ch, out_ch, H, W = 2, 4, 8, 8, 16, 16

    key = jax.random.PRNGKey(0)
    ks = jax.random.split(key, 9)
    x = jax.random.normal(ks[0], (N, in_ch, H, W), dtype=jnp.float32)

    params = {
        # conv weights in HWIO (3, 3, Cin, Cout), bias=False as in the module
        "w_in": 0.1 * jax.random.normal(ks[1], (3, 3, in_ch, out_ch), jnp.float32),
        "w_enc": [0.1 * jax.random.normal(
            ks[2 + i], (3, 3, out_ch if i == 0 else mid_ch, mid_ch), jnp.float32)
            for i in range(4)],
        "w_dec": [0.1 * jax.random.normal(
            ks[6 + i], (3, 3, 2 * mid_ch, mid_ch if i < 2 else out_ch), jnp.float32)
            for i in range(3)],
        # BatchNorm2d default init: weight=1, bias=0 (8 ConvBNReLU stages)
        "gamma": [jnp.ones((out_ch if i in (0, 7) else mid_ch,), jnp.float32)
                  for i in range(8)],
        "beta": [jnp.zeros((out_ch if i in (0, 7) else mid_ch,), jnp.float32)
                 for i in range(8)],
    }

    packed = pack_rsu4f_params(params, W=W)          # one-time host packing
    out = jax.block_until_ready(rsu4f_pallas(x, packed))
    ref = jax.block_until_ready(rsu4f_ref(x, params))
    # tolerance sized for bf16 MXU operands propagated through 8 conv+BN stages
    np.testing.assert_allclose(np.asarray(out), np.asarray(ref),
                               rtol=3e-2, atol=3e-2)
    print("KERNEL_OK")
</pallas_src>

<mosaic_0001>
module attributes {stable_mosaic.version = 11 : i64} {
  func.func @_rsu4f_kernel(%arg0: i32, %arg1: memref<2x16x128xf32, #tpu.memory_space<vmem>>, %arg2: memref<4224x128xbf16, #tpu.memory_space<vmem>>, %arg3: memref<128x8xf32, #tpu.memory_space<vmem>>, %arg4: memref<8x128xf32, #tpu.memory_space<vmem>>, %arg5: memref<8x1x8xf32, #tpu.memory_space<vmem>>, %arg6: memref<8x1x8xf32, #tpu.memory_space<vmem>>, %arg7: memref<2x16x128xf32, #tpu.memory_space<vmem>>, %arg8: memref<8x2x32x128xf32, #tpu.memory_space<vmem>>) attributes {dimension_semantics = [#tpu.dimension_semantics<arbitrary>], iteration_bounds = array<i64: 1>, scalar_prefetch = 0 : i64, scratch_operands = 1 : i64, tpu.core_type = #tpu.core_type<tc>, window_params = [{pipeline_mode = #tpu.pipeline_mode<synchronous>, transform_indices = @transform_0, window_bounds = array<i64: 2, 16, 128>}, {pipeline_mode = #tpu.pipeline_mode<synchronous>, transform_indices = @transform_1, window_bounds = array<i64: 4224, 128>}, {pipeline_mode = #tpu.pipeline_mode<synchronous>, transform_indices = @transform_2, window_bounds = array<i64: 128, 8>}, {pipeline_mode = #tpu.pipeline_mode<synchronous>, transform_indices = @transform_3, window_bounds = array<i64: 8, 128>}, {pipeline_mode = #tpu.pipeline_mode<synchronous>, transform_indices = @transform_4, window_bounds = array<i64: 8, 1, 8>}, {pipeline_mode = #tpu.pipeline_mode<synchronous>, transform_indices = @transform_5, window_bounds = array<i64: 8, 1, 8>}, {pipeline_mode = #tpu.pipeline_mode<synchronous>, transform_indices = @transform_6, window_bounds = array<i64: 2, 16, 128>}]} {
    %cst = arith.constant 0.000000e+00 : f32
    %0 = vector.broadcast %cst : f32 to vector<8x2x8x128xf32>
    %c0 = arith.constant 0 : index
    %c0_0 = arith.constant 0 : index
    %c0_1 = arith.constant 0 : index
    %c0_2 = arith.constant 0 : index
    %1 = vector.load %arg8[%c0, %c0_0, %c0_1, %c0_2] : memref<8x2x32x128xf32, #tpu.memory_space<vmem>>, vector<8x2x8x128xf32>
    tpu.vector_store %arg8[%c0, %c0_0, %c0_1, %c0_2], %0 {strides = array<i32>} : memref<8x2x32x128xf32, #tpu.memory_space<vmem>>, vector<8x2x8x128xf32>,
    %cst_3 = arith.constant 0.000000e+00 : f32
    %2 = vector.broadcast %cst_3 : f32 to vector<8x2x8x128xf32>
    %c0_4 = arith.constant 0 : index
    %c0_5 = arith.constant 0 : index
    %c24 = arith.constant 24 : index
    %c0_6 = arith.constant 0 : index
    %3 = vector.load %arg8[%c0_4, %c0_5, %c24, %c0_6] : memref<8x2x32x128xf32, #tpu.memory_space<vmem>>, vector<8x2x8x128xf32>
    tpu.vector_store %arg8[%c0_4, %c0_5, %c24, %c0_6], %2 {strides = array<i32>} : memref<8x2x32x128xf32, #tpu.memory_space<vmem>>, vector<8x2x8x128xf32>,
    %c0_7 = arith.constant 0 : index
    %c0_8 = arith.constant 0 : index
    %c0_9 = arith.constant 0 : index
    %4 = vector.load %arg1[%c0_7, %c0_8, %c0_9] : memref<2x16x128xf32, #tpu.memory_space<vmem>>, vector<2x16x128xf32>
    %c7 = arith.constant 7 : index
    %c0_10 = arith.constant 0 : index
    %c8 = arith.constant 8 : index
    %c0_11 = arith.constant 0 : index
    %5 = vector.load %arg8[%c7, %c0_10, %c8, %c0_11] : memref<8x2x32x128xf32, #tpu.memory_space<vmem>>, vector<1x2x16x128xf32>
    %6 = vector.shape_cast %5 : vector<1x2x16x128xf32> to vector<2x16x128xf32>
    %7 = vector.shape_cast %4 : vector<2x16x128xf32> to vector<1x2x16x128xf32>
    tpu.vector_store %arg8[%c7, %c0_10, %c8, %c0_11], %7 {strides = array<i32>} : memref<8x2x32x128xf32, #tpu.memory_space<vmem>>, vector<1x2x16x128xf32>,
    %c7_12 = arith.constant 7 : index
    %c0_13 = arith.constant 0 : index
    %c7_14 = arith.constant 7 : index
    %c0_15 = arith.constant 0 : index
    %8 = vector.load %arg8[%c7_12, %c0_13, %c7_14, %c0_15] : memref<8x2x32x128xf32, #tpu.memory_space<vmem>>, vector<1x2x16x128xf32>
    %9 = vector.shape_cast %8 : vector<1x2x16x128xf32> to vector<2x16x128xf32>
    %10 = vector.shape_cast %9 : vector<2x16x128xf32> to vector<32x128xf32>
    %11 = arith.truncf %10 : vector<32x128xf32> to vector<32x128xbf16>
    %c7_16 = arith.constant 7 : index
    %c0_17 = arith.constant 0 : index
    %c8_18 = arith.constant 8 : index
    %c0_19 = arith.constant 0 : index
    %12 = vector.load %arg8[%c7_16, %c0_17, %c8_18, %c0_19] : memref<8x2x32x128xf32, #tpu.memory_space<vmem>>, vector<1x2x16x128xf32>
    %13 = vector.shape_cast %12 : vector<1x2x16x128xf32> to vector<2x16x128xf32>
    %14 = vector.shape_cast %13 : vector<2x16x128xf32> to vector<32x128xf32>
    %15 = arith.truncf %14 : vector<32x128xf32> to vector<32x128xbf16>
    %c7_20 = arith.constant 7 : index
    %c0_21 = arith.constant 0 : index
    %c9 = arith.constant 9 : index
    %c0_22 = arith.constant 0 : index
    %16 = vector.load %arg8[%c7_20, %c0_21, %c9, %c0_22] : memref<8x2x32x128xf32, #tpu.memory_space<vmem>>, vector<1x2x16x128xf32>
    %17 = vector.shape_cast %16 : vector<1x2x16x128xf32> to vector<2x16x128xf32>
    %18 = vector.shape_cast %17 : vector<2x16x128xf32> to vector<32x128xf32>
    %19 = arith.truncf %18 : vector<32x128xf32> to vector<32x128xbf16>
    %20 = tpu.concatenate %11, %15, %19 in 1 : vector<32x128xbf16>, vector<32x128xbf16>, vector<32x128xbf16> -> vector<32x384xbf16>
    %c0_23 = arith.constant 0 : index
    %c0_24 = arith.constant 0 : index
    %21 = vector.load %arg2[%c0_23, %c0_24] : memref<4224x128xbf16, #tpu.memory_space<vmem>>, vector<384x128xbf16>
    %cst_25 = arith.constant dense<0.000000e+00> : vector<32x128xf32>
    %22 = tpu.matmul %20, %21, %cst_25 {dimension_numbers = #tpu.dot_dimension_numbers<[1], [0], [0], [1], [0, 0, 1, 1], [], []>} : vector<32x384xbf16>, vector<384x128xbf16>, vector<32x128xf32> -> vector<32x128xf32>
    %cst_26 = arith.constant dense<0.000000e+00> : vector<128xf32>
    %23 = vector.multi_reduction <add>, %22, %cst_26 [0] : vector<32x128xf32> to vector<128xf32>
    %24 = vector.shape_cast %23 : vector<128xf32> to vector<1x128xf32>
    %25 = arith.mulf %22, %22 : vector<32x128xf32>
    %cst_27 = arith.constant dense<0.000000e+00> : vector<128xf32>
    %26 = vector.multi_reduction <add>, %25, %cst_27 [0] : vector<32x128xf32> to vector<128xf32>
    %27 = vector.shape_cast %26 : vector<128xf32> to vector<1x128xf32>
    %28 = tpu.concatenate %24, %27 in 0 : vector<1x128xf32>, vector<1x128xf32> -> vector<2x128xf32>
    %c0_28 = arith.constant 0 : index
    %c0_29 = arith.constant 0 : index
    %29 = vector.load %arg3[%c0_28, %c0_29] : memref<128x8xf32, #tpu.memory_space<vmem>>, vector<128x8xf32>
    %cst_30 = arith.constant dense<0.000000e+00> : vector<2x8xf32>
    %30 = tpu.matmul %28, %29, %cst_30 {dimension_numbers = #tpu.dot_dimension_numbers<[1], [0], [0], [1], [0, 0, 1, 1], [], []>} : vector<2x128xf32>, vector<128x8xf32>, vector<2x8xf32> -> vector<2x8xf32>
    %31 = vector.extract_strided_slice %30 {offsets = [0, 0], sizes = [1, 8], strides = [1, 1]} : vector<2x8xf32> to vector<1x8xf32>
    %cst_31 = arith.constant 5.120000e+02 : f32
    %32 = vector.broadcast %cst_31 : f32 to vector<1x8xf32>
    %33 = arith.divf %31, %32 : vector<1x8xf32>
    %34 = vector.extract_strided_slice %30 {offsets = [1, 0], sizes = [1, 8], strides = [1, 1]} : vector<2x8xf32> to vector<1x8xf32>
    %cst_32 = arith.constant 5.120000e+02 : f32
    %35 = vector.broadcast %cst_32 : f32 to vector<1x8xf32>
    %36 = arith.divf %34, %35 : vector<1x8xf32>
    %37 = arith.mulf %33, %33 : vector<1x8xf32>
    %38 = arith.subf %36, %37 : vector<1x8xf32>
    %cst_33 = arith.constant 0.000000e+00 : f32
    %39 = vector.broadcast %cst_33 : f32 to vector<1x8xf32>
    %40 = arith.maximumf %38, %39 : vector<1x8xf32>
    %c0_34 = arith.constant 0 : index
    %c0_35 = arith.constant 0 : index
    %c0_36 = arith.constant 0 : index
    %41 = vector.load %arg5[%c0_34, %c0_35, %c0_36] : memref<8x1x8xf32, #tpu.memory_space<vmem>>, vector<1x1x8xf32>
    %42 = vector.shape_cast %41 : vector<1x1x8xf32> to vector<1x8xf32>
    %cst_37 = arith.constant 9.99999974E-6 : f32
    %43 = vector.broadcast %cst_37 : f32 to vector<1x8xf32>
    %44 = arith.addf %40, %43 : vector<1x8xf32>
    %45 = math.rsqrt %44 : vector<1x8xf32>
    %46 = arith.mulf %42, %45 : vector<1x8xf32>
    %c0_38 = arith.constant 0 : index
    %c0_39 = arith.constant 0 : index
    %c0_40 = arith.constant 0 : index
    %47 = vector.load %arg6[%c0_38, %c0_39, %c0_40] : memref<8x1x8xf32, #tpu.memory_space<vmem>>, vector<1x1x8xf32>
    %48 = vector.shape_cast %47 : vector<1x1x8xf32> to vector<1x8xf32>
    %49 = arith.mulf %33, %46 : vector<1x8xf32>
    %50 = arith.subf %48, %49 : vector<1x8xf32>
    %51 = tpu.concatenate %46, %50 in 0 : vector<1x8xf32>, vector<1x8xf32> -> vector<2x8xf32>
    %c0_41 = arith.constant 0 : index
    %c0_42 = arith.constant 0 : index
    %52 = vector.load %arg4[%c0_41, %c0_42] : memref<8x128xf32, #tpu.memory_space<vmem>>, vector<8x128xf32>
    %cst_43 = arith.constant dense<0.000000e+00> : vector<2x128xf32>
    %53 = tpu.matmul %51, %52, %cst_43 {dimension_numbers = #tpu.dot_dimension_numbers<[1], [0], [0], [1], [0, 0, 1, 1], [], []>} : vector<2x8xf32>, vector<8x128xf32>, vector<2x128xf32> -> vector<2x128xf32>
    %54 = vector.extract_strided_slice %53 {offsets = [0, 0], sizes = [1, 128], strides = [1, 1]} : vector<2x128xf32> to vector<1x128xf32>
    %55 = vector.broadcast %54 : vector<1x128xf32> to vector<32x128xf32>
    %56 = arith.mulf %22, %55 : vector<32x128xf32>
    %57 = vector.extract_strided_slice %53 {offsets = [1, 0], sizes = [1, 128], strides = [1, 1]} : vector<2x128xf32> to vector<1x128xf32>
    %58 = vector.broadcast %57 : vector<1x128xf32> to vector<32x128xf32>
    %59 = arith.addf %56, %58 : vector<32x128xf32>
    %cst_44 = arith.constant 0.000000e+00 : f32
    %60 = vector.broadcast %cst_44 : f32 to vector<32x128xf32>
    %61 = arith.maximumf %59, %60 : vector<32x128xf32>
    %62 = vector.shape_cast %61 : vector<32x128xf32> to vector<2x16x128xf32>
    %c0_45 = arith.constant 0 : index
    %c0_46 = arith.constant 0 : index
    %c8_47 = arith.constant 8 : index
    %c0_48 = arith.constant 0 : index
    %63 = vector.load %arg8[%c0_45, %c0_46, %c8_47, %c0_48] : memref<8x2x32x128xf32, #tpu.memory_space<vmem>>, vector<1x2x16x128xf32>
    %64 = vector.shape_cast %63 : vector<1x2x16x128xf32> to vector<2x16x128xf32>
    %65 = vector.shape_cast %62 : vector<2x16x128xf32> to vector<1x2x16x128xf32>
    tpu.vector_store %arg8[%c0_45, %c0_46, %c8_47, %c0_48], %65 {strides = array<i32>} : memref<8x2x32x128xf32, #tpu.memory_space<vmem>>, vector<1x2x16x128xf32>,
    %c0_49 = arith.constant 0 : index
    %c0_50 = arith.constant 0 : index
    %c7_51 = arith.constant 7 : index
    %c0_52 = arith.constant 0 : index
    %66 = vector.load %arg8[%c0_49, %c0_50, %c7_51, %c0_52] : memref<8x2x32x128xf32, #tpu.memory_space<vmem>>, vector<1x2x16x128xf32>
    %67 = vector.shape_cast %66 : vector<1x2x16x128xf32> to vector<2x16x128xf32>
    %68 = vector.shape_cast %67 : vector<2x16x128xf32> to vector<32x128xf32>
    %69 = arith.truncf %68 : vector<32x128xf32> to vector<32x128xbf16>
    %c0_53 = arith.constant 0 : index
    %c0_54 = arith.constant 0 : index
    %c8_55 = arith.constant 8 : index
    %c0_56 = arith.constant 0 : index
    %70 = vector.load %arg8[%c0_53, %c0_54, %c8_55, %c0_56] : memref<8x2x32x128xf32, #tpu.memory_space<vmem>>, vector<1x2x16x128xf32>
    %71 = vector.shape_cast %70 : vector<1x2x16x128xf32> to vector<2x16x128xf32>
    %72 = vector.shape_cast %71 : vector<2x16x128xf32> to vector<32x128xf32>
    %73 = arith.truncf %72 : vector<32x128xf32> to vector<32x128xbf16>
    %c0_57 = arith.constant 0 : index
    %c0_58 = arith.constant 0 : index
    %c9_59 = arith.constant 9 : index
    %c0_60 = arith.constant 0 : index
    %74 = vector.load %arg8[%c0_57, %c0_58, %c9_59, %c0_60] : memref<8x2x32x128xf32, #tpu.memory_space<vmem>>, vector<1x2x16x128xf32>
    %75 = vector.shape_cast %74 : vector<1x2x16x128xf32> to vector<2x16x128xf32>
    %76 = vector.shape_cast %75 : vector<2x16x128xf32> to vector<32x128xf32>
    %77 = arith.truncf %76 : vector<32x128xf32> to vector<32x128xbf16>
    %78 = tpu.concatenate %69, %73, %77 in 1 : vector<32x128xbf16>, vector<32x128xbf16>, vector<32x128xbf16> -> vector<32x384xbf16>
    %c384 = arith.constant 384 : index
    %c0_61 = arith.constant 0 : index
    %79 = vector.load %arg2[%c384, %c0_61] : memref<4224x128xbf16, #tpu.memory_space<vmem>>, vector<384x128xbf16>
    %cst_62 = arith.constant dense<0.000000e+00> : vector<32x128xf32>
    %80 = tpu.matmul %78, %79, %cst_62 {dimension_numbers = #tpu.dot_dimension_numbers<[1], [0], [0], [1], [0, 0, 1, 1], [], []>} : vector<32x384xbf16>, vector<384x128xbf16>, vector<32x128xf32> -> vector<32x128xf32>
    %cst_63 = arith.constant dense<0.000000e+00> : vector<128xf32>
    %81 = vector.multi_reduction <add>, %80, %cst_63 [0] : vector<32x128xf32> to vector<128xf32>
    %82 = vector.shape_cast %81 : vector<128xf32> to vector<1x128xf32>
    %83 = arith.mulf %80, %80 : vector<32x128xf32>
    %cst_64 = arith.constant dense<0.000000e+00> : vector<128xf32>
    %84 = vector.multi_reduction <add>, %83, %cst_64 [0] : vector<32x128xf32> to vector<128xf32>
    %85 = vector.shape_cast %84 : vector<128xf32> to vector<1x128xf32>
    %86 = tpu.concatenate %82, %85 in 0 : vector<1x128xf32>, vector<1x128xf32> -> vector<2x128xf32>
    %c0_65 = arith.constant 0 : index
    %c0_66 = arith.constant 0 : index
    %87 = vector.load %arg3[%c0_65, %c0_66] : memref<128x8xf32, #tpu.memory_space<vmem>>, vector<128x8xf32>
    %cst_67 = arith.constant dense<0.000000e+00> : vector<2x8xf32>
    %88 = tpu.matmul %86, %87, %cst_67 {dimension_numbers = #tpu.dot_dimension_numbers<[1], [0], [0], [1], [0, 0, 1, 1], [], []>} : vector<2x128xf32>, vector<128x8xf32>, vector<2x8xf32> -> vector<2x8xf32>
    %89 = vector.extract_strided_slice %88 {offsets = [0, 0], sizes = [1, 8], strides = [1, 1]} : vector<2x8xf32> to vector<1x8xf32>
    %cst_68 = arith.constant 5.120000e+02 : f32
    %90 = vector.broadcast %cst_68 : f32 to vector<1x8xf32>
    %91 = arith.divf %89, %90 : vector<1x8xf32>
    %92 = vector.extract_strided_slice %88 {offsets = [1, 0], sizes = [1, 8], strides = [1, 1]} : vector<2x8xf32> to vector<1x8xf32>
    %cst_69 = arith.constant 5.120000e+02 : f32
    %93 = vector.broadcast %cst_69 : f32 to vector<1x8xf32>
    %94 = arith.divf %92, %93 : vector<1x8xf32>
    %95 = arith.mulf %91, %91 : vector<1x8xf32>
    %96 = arith.subf %94, %95 : vector<1x8xf32>
    %cst_70 = arith.constant 0.000000e+00 : f32
    %97 = vector.broadcast %cst_70 : f32 to vector<1x8xf32>
    %98 = arith.maximumf %96, %97 : vector<1x8xf32>
    %c1 = arith.constant 1 : index
    %c0_71 = arith.constant 0 : index
    %c0_72 = arith.constant 0 : index
    %99 = vector.load %arg5[%c1, %c0_71, %c0_72] : memref<8x1x8xf32, #tpu.memory_space<vmem>>, vector<1x1x8xf32>
    %100 = vector.shape_cast %99 : vector<1x1x8xf32> to vector<1x8xf32>
    %cst_73 = arith.constant 9.99999974E-6 : f32
    %101 = vector.broadcast %cst_73 : f32 to vector<1x8xf32>
    %102 = arith.addf %98, %101 : vector<1x8xf32>
    %103 = math.rsqrt %102 : vector<1x8xf32>
    %104 = arith.mulf %100, %103 : vector<1x8xf32>
    %c1_74 = arith.constant 1 : index
    %c0_75 = arith.constant 0 : index
    %c0_76 = arith.constant 0 : index
    %105 = vector.load %arg6[%c1_74, %c0_75, %c0_76] : memref<8x1x8xf32, #tpu.memory_space<vmem>>, vector<1x1x8xf32>
    %106 = vector.shape_cast %105 : vector<1x1x8xf32> to vector<1x8xf32>
    %107 = arith.mulf %91, %104 : vector<1x8xf32>
    %108 = arith.subf %106, %107 : vector<1x8xf32>
    %109 = tpu.concatenate %104, %108 in 0 : vector<1x8xf32>, vector<1x8xf32> -> vector<2x8xf32>
    %c0_77 = arith.constant 0 : index
    %c0_78 = arith.constant 0 : index
    %110 = vector.load %arg4[%c0_77, %c0_78] : memref<8x128xf32, #tpu.memory_space<vmem>>, vector<8x128xf32>
    %cst_79 = arith.constant dense<0.000000e+00> : vector<2x128xf32>
    %111 = tpu.matmul %109, %110, %cst_79 {dimension_numbers = #tpu.dot_dimension_numbers<[1], [0], [0], [1], [0, 0, 1, 1], [], []>} : vector<2x8xf32>, vector<8x128xf32>, vector<2x128xf32> -> vector<2x128xf32>
    %112 = vector.extract_strided_slice %111 {offsets = [0, 0], sizes = [1, 128], strides = [1, 1]} : vector<2x128xf32> to vector<1x128xf32>
    %113 = vector.broadcast %112 : vector<1x128xf32> to vector<32x128xf32>
    %114 = arith.mulf %80, %113 : vector<32x128xf32>
    %115 = vector.extract_strided_slice %111 {offsets = [1, 0], sizes = [1, 128], strides = [1, 1]} : vector<2x128xf32> to vector<1x128xf32>
    %116 = vector.broadcast %115 : vector<1x128xf32> to vector<32x128xf32>
    %117 = arith.addf %114, %116 : vector<32x128xf32>
    %cst_80 = arith.constant 0.000000e+00 : f32
    %118 = vector.broadcast %cst_80 : f32 to vector<32x128xf32>
    %119 = arith.maximumf %117, %118 : vector<32x128xf32>
    %120 = vector.shape_cast %119 : vector<32x128xf32> to vector<2x16x128xf32>
    %c1_81 = arith.constant 1 : index
    %c0_82 = arith.constant 0 : index
    %c8_83 = arith.constant 8 : index
    %c0_84 = arith.constant 0 : index
    %121 = vector.load %arg8[%c1_81, %c0_82, %c8_83, %c0_84] : memref<8x2x32x128xf32, #tpu.memory_space<vmem>>, vector<1x2x16x128xf32>
    %122 = vector.shape_cast %121 : vector<1x2x16x128xf32> to vector<2x16x128xf32>
    %123 = vector.shape_cast %120 : vector<2x16x128xf32> to vector<1x2x16x128xf32>
    tpu.vector_store %arg8[%c1_81, %c0_82, %c8_83, %c0_84], %123 {strides = array<i32>} : memref<8x2x32x128xf32, #tpu.memory_space<vmem>>, vector<1x2x16x128xf32>,
    %c1_85 = arith.constant 1 : index
    %c0_86 = arith.constant 0 : index
    %c6 = arith.constant 6 : index
    %c0_87 = arith.constant 0 : index
    %124 = vector.load %arg8[%c1_85, %c0_86, %c6, %c0_87] : memref<8x2x32x128xf32, #tpu.memory_space<vmem>>, vector<1x2x16x128xf32>
    %125 = vector.shape_cast %124 : vector<1x2x16x128xf32> to vector<2x16x128xf32>
    %126 = vector.shape_cast %125 : vector<2x16x128xf32> to vector<32x128xf32>
    %127 = arith.truncf %126 : vector<32x128xf32> to vector<32x128xbf16>
    %c1_88 = arith.constant 1 : index
    %c0_89 = arith.constant 0 : index
    %c8_90 = arith.constant 8 : index
    %c0_91 = arith.constant 0 : index
    %128 = vector.load %arg8[%c1_88, %c0_89, %c8_90, %c0_91] : memref<8x2x32x128xf32, #tpu.memory_space<vmem>>, vector<1x2x16x128xf32>
    %129 = vector.shape_cast %128 : vector<1x2x16x128xf32> to vector<2x16x128xf32>
    %130 = vector.shape_cast %129 : vector<2x16x128xf32> to vector<32x128xf32>
    %131 = arith.truncf %130 : vector<32x128xf32> to vector<32x128xbf16>
    %c1_92 = arith.constant 1 : index
    %c0_93 = arith.constant 0 : index
    %c10 = arith.constant 10 : index
    %c0_94 = arith.constant 0 : index
    %132 = vector.load %arg8[%c1_92, %c0_93, %c10, %c0_94] : memref<8x2x32x128xf32, #tpu.memory_space<vmem>>, vector<1x2x16x128xf32>
    %133 = vector.shape_cast %132 : vector<1x2x16x128xf32> to vector<2x16x128xf32>
    %134 = vector.shape_cast %133 : vector<2x16x128xf32> to vector<32x128xf32>
    %135 = arith.truncf %134 : vector<32x128xf32> to vector<32x128xbf16>
    %136 = tpu.concatenate %127, %131, %135 in 1 : vector<32x128xbf16>, vector<32x128xbf16>, vector<32x128xbf16> -> vector<32x384xbf16>
    %c768 = arith.constant 768 : index
    %c0_95 = arith.constant 0 : index
    %137 = vector.load %arg2[%c768, %c0_95] : memref<4224x128xbf16, #tpu.memory_space<vmem>>, vector<384x128xbf16>
    %cst_96 = arith.constant dense<0.000000e+00> : vector<32x128xf32>
    %138 = tpu.matmul %136, %137, %cst_96 {dimension_numbers = #tpu.dot_dimension_numbers<[1], [0], [0], [1], [0, 0, 1, 1], [], []>} : vector<32x384xbf16>, vector<384x128xbf16>, vector<32x128xf32> -> vector<32x128xf32>
    %cst_97 = arith.constant dense<0.000000e+00> : vector<128xf32>
    %139 = vector.multi_reduction <add>, %138, %cst_97 [0] : vector<32x128xf32> to vector<128xf32>
    %140 = vector.shape_cast %139 : vector<128xf32> to vector<1x128xf32>
    %141 = arith.mulf %138, %138 : vector<32x128xf32>
    %cst_98 = arith.constant dense<0.000000e+00> : vector<128xf32>
    %142 = vector.multi_reduction <add>, %141, %cst_98 [0] : vector<32x128xf32> to vector<128xf32>
    %143 = vector.shape_cast %142 : vector<128xf32> to vector<1x128xf32>
    %144 = tpu.concatenate %140, %143 in 0 : vector<1x128xf32>, vector<1x128xf32> -> vector<2x128xf32>
    %c0_99 = arith.constant 0 : index
    %c0_100 = arith.constant 0 : index
    %145 = vector.load %arg3[%c0_99, %c0_100] : memref<128x8xf32, #tpu.memory_space<vmem>>, vector<128x8xf32>
    %cst_101 = arith.constant dense<0.000000e+00> : vector<2x8xf32>
    %146 = tpu.matmul %144, %145, %cst_101 {dimension_numbers = #tpu.dot_dimension_numbers<[1], [0], [0], [1], [0, 0, 1, 1], [], []>} : vector<2x128xf32>, vector<128x8xf32>, vector<2x8xf32> -> vector<2x8xf32>
    %147 = vector.extract_strided_slice %146 {offsets = [0, 0], sizes = [1, 8], strides = [1, 1]} : vector<2x8xf32> to vector<1x8xf32>
    %cst_102 = arith.constant 5.120000e+02 : f32
    %148 = vector.broadcast %cst_102 : f32 to vector<1x8xf32>
    %149 = arith.divf %147, %148 : vector<1x8xf32>
    %150 = vector.extract_strided_slice %146 {offsets = [1, 0], sizes = [1, 8], strides = [1, 1]} : vector<2x8xf32> to vector<1x8xf32>
    %cst_103 = arith.constant 5.120000e+02 : f32
    %151 = vector.broadcast %cst_103 : f32 to vector<1x8xf32>
    %152 = arith.divf %150, %151 : vector<1x8xf32>
    %153 = arith.mulf %149, %149 : vector<1x8xf32>
    %154 = arith.subf %152, %153 : vector<1x8xf32>
    %cst_104 = arith.constant 0.000000e+00 : f32
    %155 = vector.broadcast %cst_104 : f32 to vector<1x8xf32>
    %156 = arith.maximumf %154, %155 : vector<1x8xf32>
    %c2 = arith.constant 2 : index
    %c0_105 = arith.constant 0 : index
    %c0_106 = arith.constant 0 : index
    %157 = vector.load %arg5[%c2, %c0_105, %c0_106] : memref<8x1x8xf32, #tpu.memory_space<vmem>>, vector<1x1x8xf32>
    %158 = vector.shape_cast %157 : vector<1x1x8xf32> to vector<1x8xf32>
    %cst_107 = arith.constant 9.99999974E-6 : f32
    %159 = vector.broadcast %cst_107 : f32 to vector<1x8xf32>
    %160 = arith.addf %156, %159 : vector<1x8xf32>
    %161 = math.rsqrt %160 : vector<1x8xf32>
    %162 = arith.mulf %158, %161 : vector<1x8xf32>
    %c2_108 = arith.constant 2 : index
    %c0_109 = arith.constant 0 : index
    %c0_110 = arith.constant 0 : index
    %163 = vector.load %arg6[%c2_108, %c0_109, %c0_110] : memref<8x1x8xf32, #tpu.memory_space<vmem>>, vector<1x1x8xf32>
    %164 = vector.shape_cast %163 : vector<1x1x8xf32> to vector<1x8xf32>
    %165 = arith.mulf %149, %162 : vector<1x8xf32>
    %166 = arith.subf %164, %165 : vector<1x8xf32>
    %167 = tpu.concatenate %162, %166 in 0 : vector<1x8xf32>, vector<1x8xf32> -> vector<2x8xf32>
    %c0_111 = arith.constant 0 : index
    %c0_112 = arith.constant 0 : index
    %168 = vector.load %arg4[%c0_111, %c0_112] : memref<8x128xf32, #tpu.memory_space<vmem>>, vector<8x128xf32>
    %cst_113 = arith.constant dense<0.000000e+00> : vector<2x128xf32>
    %169 = tpu.matmul %167, %168, %cst_113 {dimension_numbers = #tpu.dot_dimension_numbers<[1], [0], [0], [1], [0, 0, 1, 1], [], []>} : vector<2x8xf32>, vector<8x128xf32>, vector<2x128xf32> -> vector<2x128xf32>
    %170 = vector.extract_strided_slice %169 {offsets = [0, 0], sizes = [1, 128], strides = [1, 1]} : vector<2x128xf32> to vector<1x128xf32>
    %171 = vector.broadcast %170 : vector<1x128xf32> to vector<32x128xf32>
    %172 = arith.mulf %138, %171 : vector<32x128xf32>
    %173 = vector.extract_strided_slice %169 {offsets = [1, 0], sizes = [1, 128], strides = [1, 1]} : vector<2x128xf32> to vector<1x128xf32>
    %174 = vector.broadcast %173 : vector<1x128xf32> to vector<32x128xf32>
    %175 = arith.addf %172, %174 : vector<32x128xf32>
    %cst_114 = arith.constant 0.000000e+00 : f32
    %176 = vector.broadcast %cst_114 : f32 to vector<32x128xf32>
    %177 = arith.maximumf %175, %176 : vector<32x128xf32>
    %178 = vector.shape_cast %177 : vector<32x128xf32> to vector<2x16x128xf32>
    %c2_115 = arith.constant 2 : index
    %c0_116 = arith.constant 0 : index
    %c8_117 = arith.constant 8 : index
    %c0_118 = arith.constant 0 : index
    %179 = vector.load %arg8[%c2_115, %c0_116, %c8_117, %c0_118] : memref<8x2x32x128xf32, #tpu.memory_space<vmem>>, vector<1x2x16x128xf32>
    %180 = vector.shape_cast %179 : vector<1x2x16x128xf32> to vector<2x16x128xf32>
    %181 = vector.shape_cast %178 : vector<2x16x128xf32> to vector<1x2x16x128xf32>
    tpu.vector_store %arg8[%c2_115, %c0_116, %c8_117, %c0_118], %181 {strides = array<i32>} : memref<8x2x32x128xf32, #tpu.memory_space<vmem>>, vector<1x2x16x128xf32>,
    %c2_119 = arith.constant 2 : index
    %c0_120 = arith.constant 0 : index
    %c4 = arith.constant 4 : index
    %c0_121 = arith.constant 0 : index
    %182 = vector.load %arg8[%c2_119, %c0_120, %c4, %c0_121] : memref<8x2x32x128xf32, #tpu.memory_space<vmem>>, vector<1x2x16x128xf32>
    %183 = vector.shape_cast %182 : vector<1x2x16x128xf32> to vector<2x16x128xf32>
    %184 = vector.shape_cast %183 : vector<2x16x128xf32> to vector<32x128xf32>
    %185 = arith.truncf %184 : vector<32x128xf32> to vector<32x128xbf16>
    %c2_122 = arith.constant 2 : index
    %c0_123 = arith.constant 0 : index
    %c8_124 = arith.constant 8 : index
    %c0_125 = arith.constant 0 : index
    %186 = vector.load %arg8[%c2_122, %c0_123, %c8_124, %c0_125] : memref<8x2x32x128xf32, #tpu.memory_space<vmem>>, vector<1x2x16x128xf32>
    %187 = vector.shape_cast %186 : vector<1x2x16x128xf32> to vector<2x16x128xf32>
    %188 = vector.shape_cast %187 : vector<2x16x128xf32> to vector<32x128xf32>
    %189 = arith.truncf %188 : vector<32x128xf32> to vector<32x128xbf16>
    %c2_126 = arith.constant 2 : index
    %c0_127 = arith.constant 0 : index
    %c12 = arith.constant 12 : index
    %c0_128 = arith.constant 0 : index
    %190 = vector.load %arg8[%c2_126, %c0_127, %c12, %c0_128] : memref<8x2x32x128xf32, #tpu.memory_space<vmem>>, vector<1x2x16x128xf32>
    %191 = vector.shape_cast %190 : vector<1x2x16x128xf32> to vector<2x16x128xf32>
    %192 = vector.shape_cast %191 : vector<2x16x128xf32> to vector<32x128xf32>
    %193 = arith.truncf %192 : vector<32x128xf32> to vector<32x128xbf16>
    %194 = tpu.concatenate %185, %189, %193 in 1 : vector<32x128xbf16>, vector<32x128xbf16>, vector<32x128xbf16> -> vector<32x384xbf16>
    %c1152 = arith.constant 1152 : index
    %c0_129 = arith.constant 0 : index
    %195 = vector.load %arg2[%c1152, %c0_129] : memref<4224x128xbf16, #tpu.memory_space<vmem>>, vector<384x128xbf16>
    %cst_130 = arith.constant dense<0.000000e+00> : vector<32x128xf32>
    %196 = tpu.matmul %194, %195, %cst_130 {dimension_numbers = #tpu.dot_dimension_numbers<[1], [0], [0], [1], [0, 0, 1, 1], [], []>} : vector<32x384xbf16>, vector<384x128xbf16>, vector<32x128xf32> -> vector<32x128xf32>
    %cst_131 = arith.constant dense<0.000000e+00> : vector<128xf32>
    %197 = vector.multi_reduction <add>, %196, %cst_131 [0] : vector<32x128xf32> to vector<128xf32>
    %198 = vector.shape_cast %197 : vector<128xf32> to vector<1x128xf32>
    %199 = arith.mulf %196, %196 : vector<32x128xf32>
    %cst_132 = arith.constant dense<0.000000e+00> : vector<128xf32>
    %200 = vector.multi_reduction <add>, %199, %cst_132 [0] : vector<32x128xf32> to vector<128xf32>
    %201 = vector.shape_cast %200 : vector<128xf32> to vector<1x128xf32>
    %202 = tpu.concatenate %198, %201 in 0 : vector<1x128xf32>, vector<1x128xf32> -> vector<2x128xf32>
    %c0_133 = arith.constant 0 : index
    %c0_134 = arith.constant 0 : index
    %203 = vector.load %arg3[%c0_133, %c0_134] : memref<128x8xf32, #tpu.memory_space<vmem>>, vector<128x8xf32>
    %cst_135 = arith.constant dense<0.000000e+00> : vector<2x8xf32>
    %204 = tpu.matmul %202, %203, %cst_135 {dimension_numbers = #tpu.dot_dimension_numbers<[1], [0], [0], [1], [0, 0, 1, 1], [], []>} : vector<2x128xf32>, vector<128x8xf32>, vector<2x8xf32> -> vector<2x8xf32>
    %205 = vector.extract_strided_slice %204 {offsets = [0, 0], sizes = [1, 8], strides = [1, 1]} : vector<2x8xf32> to vector<1x8xf32>
    %cst_136 = arith.constant 5.120000e+02 : f32
    %206 = vector.broadcast %cst_136 : f32 to vector<1x8xf32>
    %207 = arith.divf %205, %206 : vector<1x8xf32>
    %208 = vector.extract_strided_slice %204 {offsets = [1, 0], sizes = [1, 8], strides = [1, 1]} : vector<2x8xf32> to vector<1x8xf32>
    %cst_137 = arith.constant 5.120000e+02 : f32
    %209 = vector.broadcast %cst_137 : f32 to vector<1x8xf32>
    %210 = arith.divf %208, %209 : vector<1x8xf32>
    %211 = arith.mulf %207, %207 : vector<1x8xf32>
    %212 = arith.subf %210, %211 : vector<1x8xf32>
    %cst_138 = arith.constant 0.000000e+00 : f32
    %213 = vector.broadcast %cst_138 : f32 to vector<1x8xf32>
    %214 = arith.maximumf %212, %213 : vector<1x8xf32>
    %c3 = arith.constant 3 : index
    %c0_139 = arith.constant 0 : index
    %c0_140 = arith.constant 0 : index
    %215 = vector.load %arg5[%c3, %c0_139, %c0_140] : memref<8x1x8xf32, #tpu.memory_space<vmem>>, vector<1x1x8xf32>
    %216 = vector.shape_cast %215 : vector<1x1x8xf32> to vector<1x8xf32>
    %cst_141 = arith.constant 9.99999974E-6 : f32
    %217 = vector.broadcast %cst_141 : f32 to vector<1x8xf32>
    %218 = arith.addf %214, %217 : vector<1x8xf32>
    %219 = math.rsqrt %218 : vector<1x8xf32>
    %220 = arith.mulf %216, %219 : vector<1x8xf32>
    %c3_142 = arith.constant 3 : index
    %c0_143 = arith.constant 0 : index
    %c0_144 = arith.constant 0 : index
    %221 = vector.load %arg6[%c3_142, %c0_143, %c0_144] : memref<8x1x8xf32, #tpu.memory_space<vmem>>, vector<1x1x8xf32>
    %222 = vector.shape_cast %221 : vector<1x1x8xf32> to vector<1x8xf32>
    %223 = arith.mulf %207, %220 : vector<1x8xf32>
    %224 = arith.subf %222, %223 : vector<1x8xf32>
    %225 = tpu.concatenate %220, %224 in 0 : vector<1x8xf32>, vector<1x8xf32> -> vector<2x8xf32>
    %c0_145 = arith.constant 0 : index
    %c0_146 = arith.constant 0 : index
    %226 = vector.load %arg4[%c0_145, %c0_146] : memref<8x128xf32, #tpu.memory_space<vmem>>, vector<8x128xf32>
    %cst_147 = arith.constant dense<0.000000e+00> : vector<2x128xf32>
    %227 = tpu.matmul %225, %226, %cst_147 {dimension_numbers = #tpu.dot_dimension_numbers<[1], [0], [0], [1], [0, 0, 1, 1], [], []>} : vector<2x8xf32>, vector<8x128xf32>, vector<2x128xf32> -> vector<2x128xf32>
    %228 = vector.extract_strided_slice %227 {offsets = [0, 0], sizes = [1, 128], strides = [1, 1]} : vector<2x128xf32> to vector<1x128xf32>
    %229 = vector.broadcast %228 : vector<1x128xf32> to vector<32x128xf32>
    %230 = arith.mulf %196, %229 : vector<32x128xf32>
    %231 = vector.extract_strided_slice %227 {offsets = [1, 0], sizes = [1, 128], strides = [1, 1]} : vector<2x128xf32> to vector<1x128xf32>
    %232 = vector.broadcast %231 : vector<1x128xf32> to vector<32x128xf32>
    %233 = arith.addf %230, %232 : vector<32x128xf32>
    %cst_148 = arith.constant 0.000000e+00 : f32
    %234 = vector.broadcast %cst_148 : f32 to vector<32x128xf32>
    %235 = arith.maximumf %233, %234 : vector<32x128xf32>
    %236 = vector.shape_cast %235 : vector<32x128xf32> to vector<2x16x128xf32>
    %c3_149 = arith.constant 3 : index
    %c0_150 = arith.constant 0 : index
    %c8_151 = arith.constant 8 : index
    %c0_152 = arith.constant 0 : index
    %237 = vector.load %arg8[%c3_149, %c0_150, %c8_151, %c0_152] : memref<8x2x32x128xf32, #tpu.memory_space<vmem>>, vector<1x2x16x128xf32>
    %238 = vector.shape_cast %237 : vector<1x2x16x128xf32> to vector<2x16x128xf32>
    %239 = vector.shape_cast %236 : vector<2x16x128xf32> to vector<1x2x16x128xf32>
    tpu.vector_store %arg8[%c3_149, %c0_150, %c8_151, %c0_152], %239 {strides = array<i32>} : memref<8x2x32x128xf32, #tpu.memory_space<vmem>>, vector<1x2x16x128xf32>,
    %c3_153 = arith.constant 3 : index
    %c0_154 = arith.constant 0 : index
    %c0_155 = arith.constant 0 : index
    %c0_156 = arith.constant 0 : index
    %240 = vector.load %arg8[%c3_153, %c0_154, %c0_155, %c0_156] : memref<8x2x32x128xf32, #tpu.memory_space<vmem>>, vector<1x2x16x128xf32>
    %241 = vector.shape_cast %240 : vector<1x2x16x128xf32> to vector<2x16x128xf32>
    %242 = vector.shape_cast %241 : vector<2x16x128xf32> to vector<32x128xf32>
    %243 = arith.truncf %242 : vector<32x128xf32> to vector<32x128xbf16>
    %c3_157 = arith.constant 3 : index
    %c0_158 = arith.constant 0 : index
    %c8_159 = arith.constant 8 : index
    %c0_160 = arith.constant 0 : index
    %244 = vector.load %arg8[%c3_157, %c0_158, %c8_159, %c0_160] : memref<8x2x32x128xf32, #tpu.memory_space<vmem>>, vector<1x2x16x128xf32>
    %245 = vector.shape_cast %244 : vector<1x2x16x128xf32> to vector<2x16x128xf32>
    %246 = vector.shape_cast %245 : vector<2x16x128xf32> to vector<32x128xf32>
    %247 = arith.truncf %246 : vector<32x128xf32> to vector<32x128xbf16>
    %c3_161 = arith.constant 3 : index
    %c0_162 = arith.constant 0 : index
    %c16 = arith.constant 16 : index
    %c0_163 = arith.constant 0 : index
    %248 = vector.load %arg8[%c3_161, %c0_162, %c16, %c0_163] : memref<8x2x32x128xf32, #tpu.memory_space<vmem>>, vector<1x2x16x128xf32>
    %249 = vector.shape_cast %248 : vector<1x2x16x128xf32> to vector<2x16x128xf32>
    %250 = vector.shape_cast %249 : vector<2x16x128xf32> to vector<32x128xf32>
    %251 = arith.truncf %250 : vector<32x128xf32> to vector<32x128xbf16>
    %252 = tpu.concatenate %243, %247, %251 in 1 : vector<32x128xbf16>, vector<32x128xbf16>, vector<32x128xbf16> -> vector<32x384xbf16>
    %c1536 = arith.constant 1536 : index
    %c0_164 = arith.constant 0 : index
    %253 = vector.load %arg2[%c1536, %c0_164] : memref<4224x128xbf16, #tpu.memory_space<vmem>>, vector<384x128xbf16>
    %cst_165 = arith.constant dense<0.000000e+00> : vector<32x128xf32>
    %254 = tpu.matmul %252, %253, %cst_165 {dimension_numbers = #tpu.dot_dimension_numbers<[1], [0], [0], [1], [0, 0, 1, 1], [], []>} : vector<32x384xbf16>, vector<384x128xbf16>, vector<32x128xf32> -> vector<32x128xf32>
    %cst_166 = arith.constant dense<0.000000e+00> : vector<128xf32>
    %255 = vector.multi_reduction <add>, %254, %cst_166 [0] : vector<32x128xf32> to vector<128xf32>
    %256 = vector.shape_cast %255 : vector<128xf32> to vector<1x128xf32>
    %257 = arith.mulf %254, %254 : vector<32x128xf32>
    %cst_167 = arith.constant dense<0.000000e+00> : vector<128xf32>
    %258 = vector.multi_reduction <add>, %257, %cst_167 [0] : vector<32x128xf32> to vector<128xf32>
    %259 = vector.shape_cast %258 : vector<128xf32> to vector<1x128xf32>
    %260 = tpu.concatenate %256, %259 in 0 : vector<1x128xf32>, vector<1x128xf32> -> vector<2x128xf32>
    %c0_168 = arith.constant 0 : index
    %c0_169 = arith.constant 0 : index
    %261 = vector.load %arg3[%c0_168, %c0_169] : memref<128x8xf32, #tpu.memory_space<vmem>>, vector<128x8xf32>
    %cst_170 = arith.constant dense<0.000000e+00> : vector<2x8xf32>
    %262 = tpu.matmul %260, %261, %cst_170 {dimension_numbers = #tpu.dot_dimension_numbers<[1], [0], [0], [1], [0, 0, 1, 1], [], []>} : vector<2x128xf32>, vector<128x8xf32>, vector<2x8xf32> -> vector<2x8xf32>
    %263 = vector.extract_strided_slice %262 {offsets = [0, 0], sizes = [1, 8], strides = [1, 1]} : vector<2x8xf32> to vector<1x8xf32>
    %cst_171 = arith.constant 5.120000e+02 : f32
    %264 = vector.broadcast %cst_171 : f32 to vector<1x8xf32>
    %265 = arith.divf %263, %264 : vector<1x8xf32>
    %266 = vector.extract_strided_slice %262 {offsets = [1, 0], sizes = [1, 8], strides = [1, 1]} : vector<2x8xf32> to vector<1x8xf32>
    %cst_172 = arith.constant 5.120000e+02 : f32
    %267 = vector.broadcast %cst_172 : f32 to vector<1x8xf32>
    %268 = arith.divf %266, %267 : vector<1x8xf32>
    %269 = arith.mulf %265, %265 : vector<1x8xf32>
    %270 = arith.subf %268, %269 : vector<1x8xf32>
    %cst_173 = arith.constant 0.000000e+00 : f32
    %271 = vector.broadcast %cst_173 : f32 to vector<1x8xf32>
    %272 = arith.maximumf %270, %271 : vector<1x8xf32>
    %c4_174 = arith.constant 4 : index
    %c0_175 = arith.constant 0 : index
    %c0_176 = arith.constant 0 : index
    %273 = vector.load %arg5[%c4_174, %c0_175, %c0_176] : memref<8x1x8xf32, #tpu.memory_space<vmem>>, vector<1x1x8xf32>
    %274 = vector.shape_cast %273 : vector<1x1x8xf32> to vector<1x8xf32>
    %cst_177 = arith.constant 9.99999974E-6 : f32
    %275 = vector.broadcast %cst_177 : f32 to vector<1x8xf32>
    %276 = arith.addf %272, %275 : vector<1x8xf32>
    %277 = math.rsqrt %276 : vector<1x8xf32>
    %278 = arith.mulf %274, %277 : vector<1x8xf32>
    %c4_178 = arith.constant 4 : index
    %c0_179 = arith.constant 0 : index
    %c0_180 = arith.constant 0 : index
    %279 = vector.load %arg6[%c4_178, %c0_179, %c0_180] : memref<8x1x8xf32, #tpu.memory_space<vmem>>, vector<1x1x8xf32>
    %280 = vector.shape_cast %279 : vector<1x1x8xf32> to vector<1x8xf32>
    %281 = arith.mulf %265, %278 : vector<1x8xf32>
    %282 = arith.subf %280, %281 : vector<1x8xf32>
    %283 = tpu.concatenate %278, %282 in 0 : vector<1x8xf32>, vector<1x8xf32> -> vector<2x8xf32>
    %c0_181 = arith.constant 0 : index
    %c0_182 = arith.constant 0 : index
    %284 = vector.load %arg4[%c0_181, %c0_182] : memref<8x128xf32, #tpu.memory_space<vmem>>, vector<8x128xf32>
    %cst_183 = arith.constant dense<0.000000e+00> : vector<2x128xf32>
    %285 = tpu.matmul %283, %284, %cst_183 {dimension_numbers = #tpu.dot_dimension_numbers<[1], [0], [0], [1], [0, 0, 1, 1], [], []>} : vector<2x8xf32>, vector<8x128xf32>, vector<2x128xf32> -> vector<2x128xf32>
    %286 = vector.extract_strided_slice %285 {offsets = [0, 0], sizes = [1, 128], strides = [1, 1]} : vector<2x128xf32> to vector<1x128xf32>
    %287 = vector.broadcast %286 : vector<1x128xf32> to vector<32x128xf32>
    %288 = arith.mulf %254, %287 : vector<32x128xf32>
    %289 = vector.extract_strided_slice %285 {offsets = [1, 0], sizes = [1, 128], strides = [1, 1]} : vector<2x128xf32> to vector<1x128xf32>
    %290 = vector.broadcast %289 : vector<1x128xf32> to vector<32x128xf32>
    %291 = arith.addf %288, %290 : vector<32x128xf32>
    %cst_184 = arith.constant 0.000000e+00 : f32
    %292 = vector.broadcast %cst_184 : f32 to vector<32x128xf32>
    %293 = arith.maximumf %291, %292 : vector<32x128xf32>
    %294 = vector.shape_cast %293 : vector<32x128xf32> to vector<2x16x128xf32>
    %c4_185 = arith.constant 4 : index
    %c0_186 = arith.constant 0 : index
    %c8_187 = arith.constant 8 : index
    %c0_188 = arith.constant 0 : index
    %295 = vector.load %arg8[%c4_185, %c0_186, %c8_187, %c0_188] : memref<8x2x32x128xf32, #tpu.memory_space<vmem>>, vector<1x2x16x128xf32>
    %296 = vector.shape_cast %295 : vector<1x2x16x128xf32> to vector<2x16x128xf32>
    %297 = vector.shape_cast %294 : vector<2x16x128xf32> to vector<1x2x16x128xf32>
    tpu.vector_store %arg8[%c4_185, %c0_186, %c8_187, %c0_188], %297 {strides = array<i32>} : memref<8x2x32x128xf32, #tpu.memory_space<vmem>>, vector<1x2x16x128xf32>,
    %c4_189 = arith.constant 4 : index
    %c0_190 = arith.constant 0 : index
    %c4_191 = arith.constant 4 : index
    %c0_192 = arith.constant 0 : index
    %298 = vector.load %arg8[%c4_189, %c0_190, %c4_191, %c0_192] : memref<8x2x32x128xf32, #tpu.memory_space<vmem>>, vector<1x2x16x128xf32>
    %299 = vector.shape_cast %298 : vector<1x2x16x128xf32> to vector<2x16x128xf32>
    %300 = vector.shape_cast %299 : vector<2x16x128xf32> to vector<32x128xf32>
    %301 = arith.truncf %300 : vector<32x128xf32> to vector<32x128xbf16>
    %c4_193 = arith.constant 4 : index
    %c0_194 = arith.constant 0 : index
    %c8_195 = arith.constant 8 : index
    %c0_196 = arith.constant 0 : index
    %302 = vector.load %arg8[%c4_193, %c0_194, %c8_195, %c0_196] : memref<8x2x32x128xf32, #tpu.memory_space<vmem>>, vector<1x2x16x128xf32>
    %303 = vector.shape_cast %302 : vector<1x2x16x128xf32> to vector<2x16x128xf32>
    %304 = vector.shape_cast %303 : vector<2x16x128xf32> to vector<32x128xf32>
    %305 = arith.truncf %304 : vector<32x128xf32> to vector<32x128xbf16>
    %c4_197 = arith.constant 4 : index
    %c0_198 = arith.constant 0 : index
    %c12_199 = arith.constant 12 : index
    %c0_200 = arith.constant 0 : index
    %306 = vector.load %arg8[%c4_197, %c0_198, %c12_199, %c0_200] : memref<8x2x32x128xf32, #tpu.memory_space<vmem>>, vector<1x2x16x128xf32>
    %307 = vector.shape_cast %306 : vector<1x2x16x128xf32> to vector<2x16x128xf32>
    %308 = vector.shape_cast %307 : vector<2x16x128xf32> to vector<32x128xf32>
    %309 = arith.truncf %308 : vector<32x128xf32> to vector<32x128xbf16>
    %c3_201 = arith.constant 3 : index
    %c0_202 = arith.constant 0 : index
    %c4_203 = arith.constant 4 : index
    %c0_204 = arith.constant 0 : index
    %310 = vector.load %arg8[%c3_201, %c0_202, %c4_203, %c0_204] : memref<8x2x32x128xf32, #tpu.memory_space<vmem>>, vector<1x2x16x128xf32>
    %311 = vector.shape_cast %310 : vector<1x2x16x128xf32> to vector<2x16x128xf32>
    %312 = vector.shape_cast %311 : vector<2x16x128xf32> to vector<32x128xf32>
    %313 = arith.truncf %312 : vector<32x128xf32> to vector<32x128xbf16>
    %c3_205 = arith.constant 3 : index
    %c0_206 = arith.constant 0 : index
    %c8_207 = arith.constant 8 : index
    %c0_208 = arith.constant 0 : index
    %314 = vector.load %arg8[%c3_205, %c0_206, %c8_207, %c0_208] : memref<8x2x32x128xf32, #tpu.memory_space<vmem>>, vector<1x2x16x128xf32>
    %315 = vector.shape_cast %314 : vector<1x2x16x128xf32> to vector<2x16x128xf32>
    %316 = vector.shape_cast %315 : vector<2x16x128xf32> to vector<32x128xf32>
    %317 = arith.truncf %316 : vector<32x128xf32> to vector<32x128xbf16>
    %c3_209 = arith.constant 3 : index
    %c0_210 = arith.constant 0 : index
    %c12_211 = arith.constant 12 : index
    %c0_212 = arith.constant 0 : index
    %318 = vector.load %arg8[%c3_209, %c0_210, %c12_211, %c0_212] : memref<8x2x32x128xf32, #tpu.memory_space<vmem>>, vector<1x2x16x128xf32>
    %319 = vector.shape_cast %318 : vector<1x2x16x128xf32> to vector<2x16x128xf32>
    %320 = vector.shape_cast %319 : vector<2x16x128xf32> to vector<32x128xf32>
    %321 = arith.truncf %320 : vector<32x128xf32> to vector<32x128xbf16>
    %322 = tpu.concatenate %301, %305, %309, %313, %317, %321 in 1 : vector<32x128xbf16>, vector<32x128xbf16>, vector<32x128xbf16>, vector<32x128xbf16>, vector<32x128xbf16>, vector<32x128xbf16> -> vector<32x768xbf16>
    %c1920 = arith.constant 1920 : index
    %c0_213 = arith.constant 0 : index
    %323 = vector.load %arg2[%c1920, %c0_213] : memref<4224x128xbf16, #tpu.memory_space<vmem>>, vector<768x128xbf16>
    %cst_214 = arith.constant dense<0.000000e+00> : vector<32x128xf32>
    %324 = tpu.matmul %322, %323, %cst_214 {dimension_numbers = #tpu.dot_dimension_numbers<[1], [0], [0], [1], [0, 0, 1, 1], [], []>} : vector<32x768xbf16>, vector<768x128xbf16>, vector<32x128xf32> -> vector<32x128xf32>
    %cst_215 = arith.constant dense<0.000000e+00> : vector<128xf32>
    %325 = vector.multi_reduction <add>, %324, %cst_215 [0] : vector<32x128xf32> to vector<128xf32>
    %326 = vector.shape_cast %325 : vector<128xf32> to vector<1x128xf32>
    %327 = arith.mulf %324, %324 : vector<32x128xf32>
    %cst_216 = arith.constant dense<0.000000e+00> : vector<128xf32>
    %328 = vector.multi_reduction <add>, %327, %cst_216 [0] : vector<32x128xf32> to vector<128xf32>
    %329 = vector.shape_cast %328 : vector<128xf32> to vector<1x128xf32>
    %330 = tpu.concatenate %326, %329 in 0 : vector<1x128xf32>, vector<1x128xf32> -> vector<2x128xf32>
    %c0_217 = arith.constant 0 : index
    %c0_218 = arith.constant 0 : index
    %331 = vector.load %arg3[%c0_217, %c0_218] : memref<128x8xf32, #tpu.memory_space<vmem>>, vector<128x8xf32>
    %cst_219 = arith.constant dense<0.000000e+00> : vector<2x8xf32>
    %332 = tpu.matmul %330, %331, %cst_219 {dimension_numbers = #tpu.dot_dimension_numbers<[1], [0], [0], [1], [0, 0, 1, 1], [], []>} : vector<2x128xf32>, vector<128x8xf32>, vector<2x8xf32> -> vector<2x8xf32>
    %333 = vector.extract_strided_slice %332 {offsets = [0, 0], sizes = [1, 8], strides = [1, 1]} : vector<2x8xf32> to vector<1x8xf32>
    %cst_220 = arith.constant 5.120000e+02 : f32
    %334 = vector.broadcast %cst_220 : f32 to vector<1x8xf32>
    %335 = arith.divf %333, %334 : vector<1x8xf32>
    %336 = vector.extract_strided_slice %332 {offsets = [1, 0], sizes = [1, 8], strides = [1, 1]} : vector<2x8xf32> to vector<1x8xf32>
    %cst_221 = arith.constant 5.120000e+02 : f32
    %337 = vector.broadcast %cst_221 : f32 to vector<1x8xf32>
    %338 = arith.divf %336, %337 : vector<1x8xf32>
    %339 = arith.mulf %335, %335 : vector<1x8xf32>
    %340 = arith.subf %338, %339 : vector<1x8xf32>
    %cst_222 = arith.constant 0.000000e+00 : f32
    %341 = vector.broadcast %cst_222 : f32 to vector<1x8xf32>
    %342 = arith.maximumf %340, %341 : vector<1x8xf32>
    %c5 = arith.constant 5 : index
    %c0_223 = arith.constant 0 : index
    %c0_224 = arith.constant 0 : index
    %343 = vector.load %arg5[%c5, %c0_223, %c0_224] : memref<8x1x8xf32, #tpu.memory_space<vmem>>, vector<1x1x8xf32>
    %344 = vector.shape_cast %343 : vector<1x1x8xf32> to vector<1x8xf32>
    %cst_225 = arith.constant 9.99999974E-6 : f32
    %345 = vector.broadcast %cst_225 : f32 to vector<1x8xf32>
    %346 = arith.addf %342, %345 : vector<1x8xf32>
    %347 = math.rsqrt %346 : vector<1x8xf32>
    %348 = arith.mulf %344, %347 : vector<1x8xf32>
    %c5_226 = arith.constant 5 : index
    %c0_227 = arith.constant 0 : index
    %c0_228 = arith.constant 0 : index
    %349 = vector.load %arg6[%c5_226, %c0_227, %c0_228] : memref<8x1x8xf32, #tpu.memory_space<vmem>>, vector<1x1x8xf32>
    %350 = vector.shape_cast %349 : vector<1x1x8xf32> to vector<1x8xf32>
    %351 = arith.mulf %335, %348 : vector<1x8xf32>
    %352 = arith.subf %350, %351 : vector<1x8xf32>
    %353 = tpu.concatenate %348, %352 in 0 : vector<1x8xf32>, vector<1x8xf32> -> vector<2x8xf32>
    %c0_229 = arith.constant 0 : index
    %c0_230 = arith.constant 0 : index
    %354 = vector.load %arg4[%c0_229, %c0_230] : memref<8x128xf32, #tpu.memory_space<vmem>>, vector<8x128xf32>
    %cst_231 = arith.constant dense<0.000000e+00> : vector<2x128xf32>
    %355 = tpu.matmul %353, %354, %cst_231 {dimension_numbers = #tpu.dot_dimension_numbers<[1], [0], [0], [1], [0, 0, 1, 1], [], []>} : vector<2x8xf32>, vector<8x128xf32>, vector<2x128xf32> -> vector<2x128xf32>
    %356 = vector.extract_strided_slice %355 {offsets = [0, 0], sizes = [1, 128], strides = [1, 1]} : vector<2x128xf32> to vector<1x128xf32>
    %357 = vector.broadcast %356 : vector<1x128xf32> to vector<32x128xf32>
    %358 = arith.mulf %324, %357 : vector<32x128xf32>
    %359 = vector.extract_strided_slice %355 {offsets = [1, 0], sizes = [1, 128], strides = [1, 1]} : vector<2x128xf32> to vector<1x128xf32>
    %360 = vector.broadcast %359 : vector<1x128xf32> to vector<32x128xf32>
    %361 = arith.addf %358, %360 : vector<32x128xf32>
    %cst_232 = arith.constant 0.000000e+00 : f32
    %362 = vector.broadcast %cst_232 : f32 to vector<32x128xf32>
    %363 = arith.maximumf %361, %362 : vector<32x128xf32>
    %364 = vector.shape_cast %363 : vector<32x128xf32> to vector<2x16x128xf32>
    %c5_233 = arith.constant 5 : index
    %c0_234 = arith.constant 0 : index
    %c8_235 = arith.constant 8 : index
    %c0_236 = arith.constant 0 : index
    %365 = vector.load %arg8[%c5_233, %c0_234, %c8_235, %c0_236] : memref<8x2x32x128xf32, #tpu.memory_space<vmem>>, vector<1x2x16x128xf32>
    %366 = vector.shape_cast %365 : vector<1x2x16x128xf32> to vector<2x16x128xf32>
    %367 = vector.shape_cast %364 : vector<2x16x128xf32> to vector<1x2x16x128xf32>
    tpu.vector_store %arg8[%c5_233, %c0_234, %c8_235, %c0_236], %367 {strides = array<i32>} : memref<8x2x32x128xf32, #tpu.memory_space<vmem>>, vector<1x2x16x128xf32>,
    %c5_237 = arith.constant 5 : index
    %c0_238 = arith.constant 0 : index
    %c6_239 = arith.constant 6 : index
    %c0_240 = arith.constant 0 : index
    %368 = vector.load %arg8[%c5_237, %c0_238, %c6_239, %c0_240] : memref<8x2x32x128xf32, #tpu.memory_space<vmem>>, vector<1x2x16x128xf32>
    %369 = vector.shape_cast %368 : vector<1x2x16x128xf32> to vector<2x16x128xf32>
    %370 = vector.shape_cast %369 : vector<2x16x128xf32> to vector<32x128xf32>
    %371 = arith.truncf %370 : vector<32x128xf32> to vector<32x128xbf16>
    %c5_241 = arith.constant 5 : index
    %c0_242 = arith.constant 0 : index
    %c8_243 = arith.constant 8 : index
    %c0_244 = arith.constant 0 : index
    %372 = vector.load %arg8[%c5_241, %c0_242, %c8_243, %c0_244] : memref<8x2x32x128xf32, #tpu.memory_space<vmem>>, vector<1x2x16x128xf32>
    %373 = vector.shape_cast %372 : vector<1x2x16x128xf32> to vector<2x16x128xf32>
    %374 = vector.shape_cast %373 : vector<2x16x128xf32> to vector<32x128xf32>
    %375 = arith.truncf %374 : vector<32x128xf32> to vector<32x128xbf16>
    %c5_245 = arith.constant 5 : index
    %c0_246 = arith.constant 0 : index
    %c10_247 = arith.constant 10 : index
    %c0_248 = arith.constant 0 : index
    %376 = vector.load %arg8[%c5_245, %c0_246, %c10_247, %c0_248] : memref<8x2x32x128xf32, #tpu.memory_space<vmem>>, vector<1x2x16x128xf32>
    %377 = vector.shape_cast %376 : vector<1x2x16x128xf32> to vector<2x16x128xf32>
    %378 = vector.shape_cast %377 : vector<2x16x128xf32> to vector<32x128xf32>
    %379 = arith.truncf %378 : vector<32x128xf32> to vector<32x128xbf16>
    %c2_249 = arith.constant 2 : index
    %c0_250 = arith.constant 0 : index
    %c6_251 = arith.constant 6 : index
    %c0_252 = arith.constant 0 : index
    %380 = vector.load %arg8[%c2_249, %c0_250, %c6_251, %c0_252] : memref<8x2x32x128xf32, #tpu.memory_space<vmem>>, vector<1x2x16x128xf32>
    %381 = vector.shape_cast %380 : vector<1x2x16x128xf32> to vector<2x16x128xf32>
    %382 = vector.shape_cast %381 : vector<2x16x128xf32> to vector<32x128xf32>
    %383 = arith.truncf %382 : vector<32x128xf32> to vector<32x128xbf16>
    %c2_253 = arith.constant 2 : index
    %c0_254 = arith.constant 0 : index
    %c8_255 = arith.constant 8 : index
    %c0_256 = arith.constant 0 : index
    %384 = vector.load %arg8[%c2_253, %c0_254, %c8_255, %c0_256] : memref<8x2x32x128xf32, #tpu.memory_space<vmem>>, vector<1x2x16x128xf32>
    %385 = vector.shape_cast %384 : vector<1x2x16x128xf32> to vector<2x16x128xf32>
    %386 = vector.shape_cast %385 : vector<2x16x128xf32> to vector<32x128xf32>
    %387 = arith.truncf %386 : vector<32x128xf32> to vector<32x128xbf16>
    %c2_257 = arith.constant 2 : index
    %c0_258 = arith.constant 0 : index
    %c10_259 = arith.constant 10 : index
    %c0_260 = arith.constant 0 : index
    %388 = vector.load %arg8[%c2_257, %c0_258, %c10_259, %c0_260] : memref<8x2x32x128xf32, #tpu.memory_space<vmem>>, vector<1x2x16x128xf32>
    %389 = vector.shape_cast %388 : vector<1x2x16x128xf32> to vector<2x16x128xf32>
    %390 = vector.shape_cast %389 : vector<2x16x128xf32> to vector<32x128xf32>
    %391 = arith.truncf %390 : vector<32x128xf32> to vector<32x128xbf16>
    %392 = tpu.concatenate %371, %375, %379, %383, %387, %391 in 1 : vector<32x128xbf16>, vector<32x128xbf16>, vector<32x128xbf16>, vector<32x128xbf16>, vector<32x128xbf16>, vector<32x128xbf16> -> vector<32x768xbf16>
    %c2688 = arith.constant 2688 : index
    %c0_261 = arith.constant 0 : index
    %393 = vector.load %arg2[%c2688, %c0_261] : memref<4224x128xbf16, #tpu.memory_space<vmem>>, vector<768x128xbf16>
    %cst_262 = arith.constant dense<0.000000e+00> : vector<32x128xf32>
    %394 = tpu.matmul %392, %393, %cst_262 {dimension_numbers = #tpu.dot_dimension_numbers<[1], [0], [0], [1], [0, 0, 1, 1], [], []>} : vector<32x768xbf16>, vector<768x128xbf16>, vector<32x128xf32> -> vector<32x128xf32>
    %cst_263 = arith.constant dense<0.000000e+00> : vector<128xf32>
    %395 = vector.multi_reduction <add>, %394, %cst_263 [0] : vector<32x128xf32> to vector<128xf32>
    %396 = vector.shape_cast %395 : vector<128xf32> to vector<1x128xf32>
    %397 = arith.mulf %394, %394 : vector<32x128xf32>
    %cst_264 = arith.constant dense<0.000000e+00> : vector<128xf32>
    %398 = vector.multi_reduction <add>, %397, %cst_264 [0] : vector<32x128xf32> to vector<128xf32>
    %399 = vector.shape_cast %398 : vector<128xf32> to vector<1x128xf32>
    %400 = tpu.concatenate %396, %399 in 0 : vector<1x128xf32>, vector<1x128xf32> -> vector<2x128xf32>
    %c0_265 = arith.constant 0 : index
    %c0_266 = arith.constant 0 : index
    %401 = vector.load %arg3[%c0_265, %c0_266] : memref<128x8xf32, #tpu.memory_space<vmem>>, vector<128x8xf32>
    %cst_267 = arith.constant dense<0.000000e+00> : vector<2x8xf32>
    %402 = tpu.matmul %400, %401, %cst_267 {dimension_numbers = #tpu.dot_dimension_numbers<[1], [0], [0], [1], [0, 0, 1, 1], [], []>} : vector<2x128xf32>, vector<128x8xf32>, vector<2x8xf32> -> vector<2x8xf32>
    %403 = vector.extract_strided_slice %402 {offsets = [0, 0], sizes = [1, 8], strides = [1, 1]} : vector<2x8xf32> to vector<1x8xf32>
    %cst_268 = arith.constant 5.120000e+02 : f32
    %404 = vector.broadcast %cst_268 : f32 to vector<1x8xf32>
    %405 = arith.divf %403, %404 : vector<1x8xf32>
    %406 = vector.extract_strided_slice %402 {offsets = [1, 0], sizes = [1, 8], strides = [1, 1]} : vector<2x8xf32> to vector<1x8xf32>
    %cst_269 = arith.constant 5.120000e+02 : f32
    %407 = vector.broadcast %cst_269 : f32 to vector<1x8xf32>
    %408 = arith.divf %406, %407 : vector<1x8xf32>
    %409 = arith.mulf %405, %405 : vector<1x8xf32>
    %410 = arith.subf %408, %409 : vector<1x8xf32>
    %cst_270 = arith.constant 0.000000e+00 : f32
    %411 = vector.broadcast %cst_270 : f32 to vector<1x8xf32>
    %412 = arith.maximumf %410, %411 : vector<1x8xf32>
    %c6_271 = arith.constant 6 : index
    %c0_272 = arith.constant 0 : index
    %c0_273 = arith.constant 0 : index
    %413 = vector.load %arg5[%c6_271, %c0_272, %c0_273] : memref<8x1x8xf32, #tpu.memory_space<vmem>>, vector<1x1x8xf32>
    %414 = vector.shape_cast %413 : vector<1x1x8xf32> to vector<1x8xf32>
    %cst_274 = arith.constant 9.99999974E-6 : f32
    %415 = vector.broadcast %cst_274 : f32 to vector<1x8xf32>
    %416 = arith.addf %412, %415 : vector<1x8xf32>
    %417 = math.rsqrt %416 : vector<1x8xf32>
    %418 = arith.mulf %414, %417 : vector<1x8xf32>
    %c6_275 = arith.constant 6 : index
    %c0_276 = arith.constant 0 : index
    %c0_277 = arith.constant 0 : index
    %419 = vector.load %arg6[%c6_275, %c0_276, %c0_277] : memref<8x1x8xf32, #tpu.memory_space<vmem>>, vector<1x1x8xf32>
    %420 = vector.shape_cast %419 : vector<1x1x8xf32> to vector<1x8xf32>
    %421 = arith.mulf %405, %418 : vector<1x8xf32>
    %422 = arith.subf %420, %421 : vector<1x8xf32>
    %423 = tpu.concatenate %418, %422 in 0 : vector<1x8xf32>, vector<1x8xf32> -> vector<2x8xf32>
    %c0_278 = arith.constant 0 : index
    %c0_279 = arith.constant 0 : index
    %424 = vector.load %arg4[%c0_278, %c0_279] : memref<8x128xf32, #tpu.memory_space<vmem>>, vector<8x128xf32>
    %cst_280 = arith.constant dense<0.000000e+00> : vector<2x128xf32>
    %425 = tpu.matmul %423, %424, %cst_280 {dimension_numbers = #tpu.dot_dimension_numbers<[1], [0], [0], [1], [0, 0, 1, 1], [], []>} : vector<2x8xf32>, vector<8x128xf32>, vector<2x128xf32> -> vector<2x128xf32>
    %426 = vector.extract_strided_slice %425 {offsets = [0, 0], sizes = [1, 128], strides = [1, 1]} : vector<2x128xf32> to vector<1x128xf32>
    %427 = vector.broadcast %426 : vector<1x128xf32> to vector<32x128xf32>
    %428 = arith.mulf %394, %427 : vector<32x128xf32>
    %429 = vector.extract_strided_slice %425 {offsets = [1, 0], sizes = [1, 128], strides = [1, 1]} : vector<2x128xf32> to vector<1x128xf32>
    %430 = vector.broadcast %429 : vector<1x128xf32> to vector<32x128xf32>
    %431 = arith.addf %428, %430 : vector<32x128xf32>
    %cst_281 = arith.constant 0.000000e+00 : f32
    %432 = vector.broadcast %cst_281 : f32 to vector<32x128xf32>
    %433 = arith.maximumf %431, %432 : vector<32x128xf32>
    %434 = vector.shape_cast %433 : vector<32x128xf32> to vector<2x16x128xf32>
    %c6_282 = arith.constant 6 : index
    %c0_283 = arith.constant 0 : index
    %c8_284 = arith.constant 8 : index
    %c0_285 = arith.constant 0 : index
    %435 = vector.load %arg8[%c6_282, %c0_283, %c8_284, %c0_285] : memref<8x2x32x128xf32, #tpu.memory_space<vmem>>, vector<1x2x16x128xf32>
    %436 = vector.shape_cast %435 : vector<1x2x16x128xf32> to vector<2x16x128xf32>
    %437 = vector.shape_cast %434 : vector<2x16x128xf32> to vector<1x2x16x128xf32>
    tpu.vector_store %arg8[%c6_282, %c0_283, %c8_284, %c0_285], %437 {strides = array<i32>} : memref<8x2x32x128xf32, #tpu.memory_space<vmem>>, vector<1x2x16x128xf32>,
    %c6_286 = arith.constant 6 : index
    %c0_287 = arith.constant 0 : index
    %c7_288 = arith.constant 7 : index
    %c0_289 = arith.constant 0 : index
    %438 = vector.load %arg8[%c6_286, %c0_287, %c7_288, %c0_289] : memref<8x2x32x128xf32, #tpu.memory_space<vmem>>, vector<1x2x16x128xf32>
    %439 = vector.shape_cast %438 : vector<1x2x16x128xf32> to vector<2x16x128xf32>
    %440 = vector.shape_cast %439 : vector<2x16x128xf32> to vector<32x128xf32>
    %441 = arith.truncf %440 : vector<32x128xf32> to vector<32x128xbf16>
    %c6_290 = arith.constant 6 : index
    %c0_291 = arith.constant 0 : index
    %c8_292 = arith.constant 8 : index
    %c0_293 = arith.constant 0 : index
    %442 = vector.load %arg8[%c6_290, %c0_291, %c8_292, %c0_293] : memref<8x2x32x128xf32, #tpu.memory_space<vmem>>, vector<1x2x16x128xf32>
    %443 = vector.shape_cast %442 : vector<1x2x16x128xf32> to vector<2x16x128xf32>
    %444 = vector.shape_cast %443 : vector<2x16x128xf32> to vector<32x128xf32>
    %445 = arith.truncf %444 : vector<32x128xf32> to vector<32x128xbf16>
    %c6_294 = arith.constant 6 : index
    %c0_295 = arith.constant 0 : index
    %c9_296 = arith.constant 9 : index
    %c0_297 = arith.constant 0 : index
    %446 = vector.load %arg8[%c6_294, %c0_295, %c9_296, %c0_297] : memref<8x2x32x128xf32, #tpu.memory_space<vmem>>, vector<1x2x16x128xf32>
    %447 = vector.shape_cast %446 : vector<1x2x16x128xf32> to vector<2x16x128xf32>
    %448 = vector.shape_cast %447 : vector<2x16x128xf32> to vector<32x128xf32>
    %449 = arith.truncf %448 : vector<32x128xf32> to vector<32x128xbf16>
    %c1_298 = arith.constant 1 : index
    %c0_299 = arith.constant 0 : index
    %c7_300 = arith.constant 7 : index
    %c0_301 = arith.constant 0 : index
    %450 = vector.load %arg8[%c1_298, %c0_299, %c7_300, %c0_301] : memref<8x2x32x128xf32, #tpu.memory_space<vmem>>, vector<1x2x16x128xf32>
    %451 = vector.shape_cast %450 : vector<1x2x16x128xf32> to vector<2x16x128xf32>
    %452 = vector.shape_cast %451 : vector<2x16x128xf32> to vector<32x128xf32>
    %453 = arith.truncf %452 : vector<32x128xf32> to vector<32x128xbf16>
    %c1_302 = arith.constant 1 : index
    %c0_303 = arith.constant 0 : index
    %c8_304 = arith.constant 8 : index
    %c0_305 = arith.constant 0 : index
    %454 = vector.load %arg8[%c1_302, %c0_303, %c8_304, %c0_305] : memref<8x2x32x128xf32, #tpu.memory_space<vmem>>, vector<1x2x16x128xf32>
    %455 = vector.shape_cast %454 : vector<1x2x16x128xf32> to vector<2x16x128xf32>
    %456 = vector.shape_cast %455 : vector<2x16x128xf32> to vector<32x128xf32>
    %457 = arith.truncf %456 : vector<32x128xf32> to vector<32x128xbf16>
    %c1_306 = arith.constant 1 : index
    %c0_307 = arith.constant 0 : index
    %c9_308 = arith.constant 9 : index
    %c0_309 = arith.constant 0 : index
    %458 = vector.load %arg8[%c1_306, %c0_307, %c9_308, %c0_309] : memref<8x2x32x128xf32, #tpu.memory_space<vmem>>, vector<1x2x16x128xf32>
    %459 = vector.shape_cast %458 : vector<1x2x16x128xf32> to vector<2x16x128xf32>
    %460 = vector.shape_cast %459 : vector<2x16x128xf32> to vector<32x128xf32>
    %461 = arith.truncf %460 : vector<32x128xf32> to vector<32x128xbf16>
    %462 = tpu.concatenate %441, %445, %449, %453, %457, %461 in 1 : vector<32x128xbf16>, vector<32x128xbf16>, vector<32x128xbf16>, vector<32x128xbf16>, vector<32x128xbf16>, vector<32x128xbf16> -> vector<32x768xbf16>
    %c3456 = arith.constant 3456 : index
    %c0_310 = arith.constant 0 : index
    %463 = vector.load %arg2[%c3456, %c0_310] : memref<4224x128xbf16, #tpu.memory_space<vmem>>, vector<768x128xbf16>
    %cst_311 = arith.constant dense<0.000000e+00> : vector<32x128xf32>
    %464 = tpu.matmul %462, %463, %cst_311 {dimension_numbers = #tpu.dot_dimension_numbers<[1], [0], [0], [1], [0, 0, 1, 1], [], []>} : vector<32x768xbf16>, vector<768x128xbf16>, vector<32x128xf32> -> vector<32x128xf32>
    %cst_312 = arith.constant dense<0.000000e+00> : vector<128xf32>
    %465 = vector.multi_reduction <add>, %464, %cst_312 [0] : vector<32x128xf32> to vector<128xf32>
    %466 = vector.shape_cast %465 : vector<128xf32> to vector<1x128xf32>
    %467 = arith.mulf %464, %464 : vector<32x128xf32>
    %cst_313 = arith.constant dense<0.000000e+00> : vector<128xf32>
    %468 = vector.multi_reduction <add>, %467, %cst_313 [0] : vector<32x128xf32> to vector<128xf32>
    %469 = vector.shape_cast %468 : vector<128xf32> to vector<1x128xf32>
    %470 = tpu.concatenate %466, %469 in 0 : vector<1x128xf32>, vector<1x128xf32> -> vector<2x128xf32>
    %c0_314 = arith.constant 0 : index
    %c0_315 = arith.constant 0 : index
    %471 = vector.load %arg3[%c0_314, %c0_315] : memref<128x8xf32, #tpu.memory_space<vmem>>, vector<128x8xf32>
    %cst_316 = arith.constant dense<0.000000e+00> : vector<2x8xf32>
    %472 = tpu.matmul %470, %471, %cst_316 {dimension_numbers = #tpu.dot_dimension_numbers<[1], [0], [0], [1], [0, 0, 1, 1], [], []>} : vector<2x128xf32>, vector<128x8xf32>, vector<2x8xf32> -> vector<2x8xf32>
    %473 = vector.extract_strided_slice %472 {offsets = [0, 0], sizes = [1, 8], strides = [1, 1]} : vector<2x8xf32> to vector<1x8xf32>
    %cst_317 = arith.constant 5.120000e+02 : f32
    %474 = vector.broadcast %cst_317 : f32 to vector<1x8xf32>
    %475 = arith.divf %473, %474 : vector<1x8xf32>
    %476 = vector.extract_strided_slice %472 {offsets = [1, 0], sizes = [1, 8], strides = [1, 1]} : vector<2x8xf32> to vector<1x8xf32>
    %cst_318 = arith.constant 5.120000e+02 : f32
    %477 = vector.broadcast %cst_318 : f32 to vector<1x8xf32>
    %478 = arith.divf %476, %477 : vector<1x8xf32>
    %479 = arith.mulf %475, %475 : vector<1x8xf32>
    %480 = arith.subf %478, %479 : vector<1x8xf32>
    %cst_319 = arith.constant 0.000000e+00 : f32
    %481 = vector.broadcast %cst_319 : f32 to vector<1x8xf32>
    %482 = arith.maximumf %480, %481 : vector<1x8xf32>
    %c7_320 = arith.constant 7 : index
    %c0_321 = arith.constant 0 : index
    %c0_322 = arith.constant 0 : index
    %483 = vector.load %arg5[%c7_320, %c0_321, %c0_322] : memref<8x1x8xf32, #tpu.memory_space<vmem>>, vector<1x1x8xf32>
    %484 = vector.shape_cast %483 : vector<1x1x8xf32> to vector<1x8xf32>
    %cst_323 = arith.constant 9.99999974E-6 : f32
    %485 = vector.broadcast %cst_323 : f32 to vector<1x8xf32>
    %486 = arith.addf %482, %485 : vector<1x8xf32>
    %487 = math.rsqrt %486 : vector<1x8xf32>
    %488 = arith.mulf %484, %487 : vector<1x8xf32>
    %c7_324 = arith.constant 7 : index
    %c0_325 = arith.constant 0 : index
    %c0_326 = arith.constant 0 : index
    %489 = vector.load %arg6[%c7_324, %c0_325, %c0_326] : memref<8x1x8xf32, #tpu.memory_space<vmem>>, vector<1x1x8xf32>
    %490 = vector.shape_cast %489 : vector<1x1x8xf32> to vector<1x8xf32>
    %491 = arith.mulf %475, %488 : vector<1x8xf32>
    %492 = arith.subf %490, %491 : vector<1x8xf32>
    %493 = tpu.concatenate %488, %492 in 0 : vector<1x8xf32>, vector<1x8xf32> -> vector<2x8xf32>
    %c0_327 = arith.constant 0 : index
    %c0_328 = arith.constant 0 : index
    %494 = vector.load %arg4[%c0_327, %c0_328] : memref<8x128xf32, #tpu.memory_space<vmem>>, vector<8x128xf32>
    %cst_329 = arith.constant dense<0.000000e+00> : vector<2x128xf32>
    %495 = tpu.matmul %493, %494, %cst_329 {dimension_numbers = #tpu.dot_dimension_numbers<[1], [0], [0], [1], [0, 0, 1, 1], [], []>} : vector<2x8xf32>, vector<8x128xf32>, vector<2x128xf32> -> vector<2x128xf32>
    %496 = vector.extract_strided_slice %495 {offsets = [0, 0], sizes = [1, 128], strides = [1, 1]} : vector<2x128xf32> to vector<1x128xf32>
    %497 = vector.broadcast %496 : vector<1x128xf32> to vector<32x128xf32>
    %498 = arith.mulf %464, %497 : vector<32x128xf32>
    %499 = vector.extract_strided_slice %495 {offsets = [1, 0], sizes = [1, 128], strides = [1, 1]} : vector<2x128xf32> to vector<1x128xf32>
    %500 = vector.broadcast %499 : vector<1x128xf32> to vector<32x128xf32>
    %501 = arith.addf %498, %500 : vector<32x128xf32>
    %cst_330 = arith.constant 0.000000e+00 : f32
    %502 = vector.broadcast %cst_330 : f32 to vector<32x128xf32>
    %503 = arith.maximumf %501, %502 : vector<32x128xf32>
    %c0_331 = arith.constant 0 : index
    %c0_332 = arith.constant 0 : index
    %c8_333 = arith.constant 8 : index
    %c0_334 = arith.constant 0 : index
    %504 = vector.load %arg8[%c0_331, %c0_332, %c8_333, %c0_334] : memref<8x2x32x128xf32, #tpu.memory_space<vmem>>, vector<1x2x16x128xf32>
    %505 = vector.shape_cast %504 : vector<1x2x16x128xf32> to vector<2x16x128xf32>
    %506 = vector.shape_cast %503 : vector<32x128xf32> to vector<2x16x128xf32>
    %507 = arith.addf %506, %505 : vector<2x16x128xf32>
    %c0_335 = arith.constant 0 : index
    %c0_336 = arith.constant 0 : index
    %c0_337 = arith.constant 0 : index
    %508 = vector.load %arg7[%c0_335, %c0_336, %c0_337] : memref<2x16x128xf32, #tpu.memory_space<vmem>>, vector<2x16x128xf32>
    tpu.vector_store %arg7[%c0_335, %c0_336, %c0_337], %507 {strides = array<i32>} : memref<2x16x128xf32, #tpu.memory_space<vmem>>, vector<2x16x128xf32>,
    return
  }
  func.func @transform_0(%arg0: i32) -> (i32, i32, i32) {
    %c0_i32 = arith.constant 0 : i32
    %c0_i32_0 = arith.constant 0 : i32
    %c0_i32_1 = arith.constant 0 : i32
    %c0_i32_2 = arith.constant 0 : i32
    return %c0_i32, %c0_i32_0, %c0_i32_1 : i32, i32, i32
  }
  func.func @transform_1(%arg0: i32) -> (i32, i32) {
    %c0_i32 = arith.constant 0 : i32
    %c0_i32_0 = arith.constant 0 : i32
    %c0_i32_1 = arith.constant 0 : i32
    return %c0_i32, %c0_i32_0 : i32, i32
  }
  func.func @transform_2(%arg0: i32) -> (i32, i32) {
    %c0_i32 = arith.constant 0 : i32
    %c0_i32_0 = arith.constant 0 : i32
    %c0_i32_1 = arith.constant 0 : i32
    return %c0_i32, %c0_i32_0 : i32, i32
  }
  func.func @transform_3(%arg0: i32) -> (i32, i32) {
    %c0_i32 = arith.constant 0 : i32
    %c0_i32_0 = arith.constant 0 : i32
    %c0_i32_1 = arith.constant 0 : i32
    return %c0_i32, %c0_i32_0 : i32, i32
  }
  func.func @transform_4(%arg0: i32) -> (i32, i32, i32) {
    %c0_i32 = arith.constant 0 : i32
    %c0_i32_0 = arith.constant 0 : i32
    %c0_i32_1 = arith.constant 0 : i32
    %c0_i32_2 = arith.constant 0 : i32
    return %c0_i32, %c0_i32_0, %c0_i32_1 : i32, i32, i32
  }
  func.func @transform_5(%arg0: i32) -> (i32, i32, i32) {
    %c0_i32 = arith.constant 0 : i32
    %c0_i32_0 = arith.constant 0 : i32
    %c0_i32_1 = arith.constant 0 : i32
    %c0_i32_2 = arith.constant 0 : i32
    return %c0_i32, %c0_i32_0, %c0_i32_1 : i32, i32, i32
  }
  func.func @transform_6(%arg0: i32) -> (i32, i32, i32) {
    %c0_i32 = arith.constant 0 : i32
    %c0_i32_0 = arith.constant 0 : i32
    %c0_i32_1 = arith.constant 0 : i32
    %c0_i32_2 = arith.constant 0 : i32
    return %c0_i32, %c0_i32_0, %c0_i32_1 : i32, i32, i32
  }
}

</mosaic_0001>

<llo_original>
// kernel: tpu_custom_call.1
$region0: #{tpu_custom_call.1}
  #allocation0 [shape = 'u32[]', space=smem, size = 0x4, offset = 0x4, fixed_abs, tag = 'smem constant byte address 0x4 - core index']
  #allocation1 [shape = 'u32[72,128]{1,0:T(1,128)}', space=vmem, size = 0x9000, scoped, tag = 'internal scratch']
  #allocation2 [shape = 'f32[8,2,32,128]{3,2,1,0:T(8,128)}', space=vmem, size = 0x40000, scoped, tag = 'scratch operand']
  %s0 = inlined_call_operand.hbm [shape: f32[2,16,128], index: 0, kind: input, shape index: {}]
  %s1 = inlined_call_operand.hbm [shape: bf16[4224,128], index: 1, kind: input, shape index: {}]
  %s2 = inlined_call_operand.vmem [shape: f32[128,8], index: 2, kind: input, shape index: {}]
  %s3 = inlined_call_operand.hbm [shape: f32[8,128], index: 3, kind: input, shape index: {}]
  %s4 = inlined_call_operand.hbm [shape: f32[8,1,8], index: 4, kind: input, shape index: {}]
  %s5 = inlined_call_operand.hbm [shape: f32[8,1,8], index: 5, kind: input, shape index: {}]
  %s6 = inlined_call_operand.hbm [shape: f32[2,16,128], index: 6, kind: output, shape index: {}]
  %s7 = sld [smem:[#allocation0]]
  $region54: #{tpu_custom_call.1} parent=0
    _
  %s9 = ssub.s32 1, %s7
  %s10 = scalar_select 0, %s9, %s7
  $region1: #{tpu_custom_call.1} parent=0
    #allocation3 [shape = 'u8[16384]{0}', space=vmem, size = 0x4000, scoped, tag = 'input window, operand 0, single buffered']
    #allocation4 [shape = 's32[1]{0}', space=sflag, size = 0x4, scoped, tag = 'scoped memory for tpu_custom_call.1']
    #allocation5 [shape = 's32[1]{0}', space=sflag, size = 0x4, scoped, tag = 'scoped memory for tpu_custom_call.1']
    #allocation6 [shape = 'u8[1081344]{0}', space=vmem, size = 0x108000, scoped, tag = 'input window, operand 1, single buffered']
    #allocation7 [shape = 's32[1]{0}', space=sflag, size = 0x4, scoped, tag = 'scoped memory for tpu_custom_call.1']
    #allocation8 [shape = 'u8[4096]{0}', space=vmem, size = 0x1000, scoped, tag = 'input window, operand 3, single buffered']
    #allocation9 [shape = 'u8[4096]{0}', space=vmem, size = 0x1000, scoped, tag = 'input window, operand 4, single buffered']
    #allocation10 [shape = 's32[1]{0}', space=sflag, size = 0x4, scoped, tag = 'scoped memory for tpu_custom_call.1']
    #allocation11 [shape = 'u8[4096]{0}', space=vmem, size = 0x1000, scoped, tag = 'input window, operand 5, single buffered']
    #allocation12 [shape = 'u8[16384]{0}', space=vmem, size = 0x4000, scoped, tag = 'output window, operand 0, single buffered']
    %11 = vsyncpa [#allocation4], 0
    %12 = vsyncpa [#allocation7], 0
    %13 = vsyncpa [#allocation10], 0
    %14 = vsyncpa [#allocation5], 0
    // Predicated region
    $region2: #{tpu_custom_call.1} parent=1 // pred_check
      _
    $region3: #{tpu_custom_call.1} parent=1 // pred_check_branch
      %16 = sbr.rel (0) target = $region5
    $region4: #{tpu_custom_call.1} parent=1 // pred_region
      %18 = vsyncadd [#allocation4], 0
      %s19 = sshll.u32 %s0, 4
      %s20 = int_to_ptr.hbm [resolvable:$true] %s19
      %s21 = sshll.u32 [#allocation3], 4
      %s22 = int_to_ptr.vmem [resolvable:$true] %s21
      %27 = dma.hbm_to_vmem [thread:$0]  %s20, 512, %s22, [#allocation4], 128, 128, 8
    $region5: #{tpu_custom_call.1} parent=1 // pred_fallthru
      _
    // Predicated region
    $region6: #{tpu_custom_call.1} parent=1 // pred_check
      _
    $region7: #{tpu_custom_call.1} parent=1 // pred_check_branch
      %29 = sbr.rel (0) target = $region9
    $region8: #{tpu_custom_call.1} parent=1 // pred_region
      %31 = vsyncadd [#allocation7], 0
      %s32 = sshll.u32 %s1, 4
      %s33 = int_to_ptr.hbm [resolvable:$true] %s32
      %s34 = sshll.u32 [#allocation6], 4
      %s35 = int_to_ptr.vmem [resolvable:$true] %s34
      %40 = dma.hbm_to_vmem [thread:$0]  %s33, 33792, %s35, [#allocation7], 64, 64, 4
    $region9: #{tpu_custom_call.1} parent=1 // pred_fallthru
      _
    // Predicated region
    $region10: #{tpu_custom_call.1} parent=1 // pred_check
      _
    $region11: #{tpu_custom_call.1} parent=1 // pred_check_branch
      %42 = sbr.rel (0) target = $region13
    $region12: #{tpu_custom_call.1} parent=1 // pred_region
      _
    $region13: #{tpu_custom_call.1} parent=1 // pred_fallthru
      _
    // Predicated region
    $region14: #{tpu_custom_call.1} parent=1 // pred_check
      _
    $region15: #{tpu_custom_call.1} parent=1 // pred_check_branch
      %44 = sbr.rel (0) target = $region17
    $region16: #{tpu_custom_call.1} parent=1 // pred_region
      %46 = vsyncadd [#allocation7], 0
      %s48 = sshll.u32 %s3, 4
      %s49 = int_to_ptr.hbm [resolvable:$true] %s48
      %s50 = sshll.u32 [#allocation8], 4
      %s51 = int_to_ptr.vmem [resolvable:$true] %s50
      %53 = dma.hbm_to_vmem [thread:$0]  %s49, 128, %s51, [#allocation7]
    $region17: #{tpu_custom_call.1} parent=1 // pred_fallthru
      _
    // Predicated region
    $region18: #{tpu_custom_call.1} parent=1 // pred_check
      _
    $region19: #{tpu_custom_call.1} parent=1 // pred_check_branch
      %55 = sbr.rel (0) target = $region21
    $region20: #{tpu_custom_call.1} parent=1 // pred_region
      %57 = vsyncadd [#allocation10], 0
      %s58 = sshll.u32 %s4, 4
      %s59 = int_to_ptr.hbm [resolvable:$true] %s58
      %s60 = sshll.u32 [#allocation9], 4
      %s61 = int_to_ptr.vmem [resolvable:$true] %s60
      %66 = dma.hbm_to_vmem [thread:$0]  %s59, 128, %s61, [#allocation10], 16, 16, 1
    $region21: #{tpu_custom_call.1} parent=1 // pred_fallthru
      _
    // Predicated region
    $region22: #{tpu_custom_call.1} parent=1 // pred_check
      _
    $region23: #{tpu_custom_call.1} parent=1 // pred_check_branch
      %68 = sbr.rel (0) target = $region25
    $region24: #{tpu_custom_call.1} parent=1 // pred_region
      %70 = vsyncadd [#allocation10], 0
      %s71 = sshll.u32 %s5, 4
      %s72 = int_to_ptr.hbm [resolvable:$true] %s71
      %s73 = sshll.u32 [#allocation11], 4
      %s74 = int_to_ptr.vmem [resolvable:$true] %s73
      %79 = dma.hbm_to_vmem [thread:$0]  %s72, 128, %s74, [#allocation10], 16, 16, 1
    $region25: #{tpu_custom_call.1} parent=1 // pred_fallthru
      _
    // Predicated region
    $region26: #{tpu_custom_call.1} parent=1 // pred_check
      _
    $region27: #{tpu_custom_call.1} parent=1 // pred_check_branch
      %81 = sbr.rel (0) target = $region29
    $region28: #{tpu_custom_call.1} parent=1 // pred_region
      %83 = dma.done [#allocation4], 512
    $region29: #{tpu_custom_call.1} parent=1 // pred_fallthru
      _
    // Predicated region
    $region30: #{tpu_custom_call.1} parent=1 // pred_check
      _
    $region31: #{tpu_custom_call.1} parent=1 // pred_check_branch
      %85 = sbr.rel (0) target = $region33
    $region32: #{tpu_custom_call.1} parent=1 // pred_region
      %87 = dma.done [#allocation7], 33792
    $region33: #{tpu_custom_call.1} parent=1 // pred_fallthru
      _
    // Predicated region
    $region34: #{tpu_custom_call.1} parent=1 // pred_check
      _
    $region35: #{tpu_custom_call.1} parent=1 // pred_check_branch
      %89 = sbr.rel (0) target = $region37
    $region36: #{tpu_custom_call.1} parent=1 // pred_region
      %91 = dma.done [#allocation7], 128
    $region37: #{tpu_custom_call.1} parent=1 // pred_fallthru
      _
    // Predicated region
    $region38: #{tpu_custom_call.1} parent=1 // pred_check
      _
    $region39: #{tpu_custom_call.1} parent=1 // pred_check_branch
      %93 = sbr.rel (0) target = $region41
    $region40: #{tpu_custom_call.1} parent=1 // pred_region
      %95 = dma.done [#allocation10], 128
    $region41: #{tpu_custom_call.1} parent=1 // pred_fallthru
      _
    // Predicated region
    $region42: #{tpu_custom_call.1} parent=1 // pred_check
      _
    $region43: #{tpu_custom_call.1} parent=1 // pred_check_branch
      %97 = sbr.rel (0) target = $region45
    $region44: #{tpu_custom_call.1} parent=1 // pred_region
      %99 = dma.done [#allocation10], 128
    $region45: #{tpu_custom_call.1} parent=1 // pred_fallthru
      _
    %100 = vst [vmem:[#allocation2] sm:$0xff] 0.0
    %101 = vst [vmem:[#allocation2 + $0x20] sm:$0xff] 0.0
    %102 = vst [vmem:[#allocation2 + $0x40] sm:$0xff] 0.0
    %103 = vst [vmem:[#allocation2 + $0x60] sm:$0xff] 0.0
    %104 = vst [vmem:[#allocation2 + $0x80] sm:$0xff] 0.0
    %105 = vst [vmem:[#allocation2 + $0xa0] sm:$0xff] 0.0
    %106 = vst [vmem:[#allocation2 + $0xc0] sm:$0xff] 0.0
    %107 = vst [vmem:[#allocation2 + $0xe0] sm:$0xff] 0.0
    %108 = vst [vmem:[#allocation2 + $0x100] sm:$0xff] 0.0
    %109 = vst [vmem:[#allocation2 + $0x120] sm:$0xff] 0.0
    %110 = vst [vmem:[#allocation2 + $0x140] sm:$0xff] 0.0
    %111 = vst [vmem:[#allocation2 + $0x160] sm:$0xff] 0.0
    %112 = vst [vmem:[#allocation2 + $0x180] sm:$0xff] 0.0
    %113 = vst [vmem:[#allocation2 + $0x1a0] sm:$0xff] 0.0
    %114 = vst [vmem:[#allocation2 + $0x1c0] sm:$0xff] 0.0
    %115 = vst [vmem:[#allocation2 + $0x1e0] sm:$0xff] 0.0
    %116 = vst [vmem:[#allocation2 + $0x18] sm:$0xff] 0.0
    %117 = vst [vmem:[#allocation2 + $0x38] sm:$0xff] 0.0
    %118 = vst [vmem:[#allocation2 + $0x58] sm:$0xff] 0.0
    %119 = vst [vmem:[#allocation2 + $0x78] sm:$0xff] 0.0
    %120 = vst [vmem:[#allocation2 + $0x98] sm:$0xff] 0.0
    %121 = vst [vmem:[#allocation2 + $0xb8] sm:$0xff] 0.0
    %122 = vst [vmem:[#allocation2 + $0xd8] sm:$0xff] 0.0
    %123 = vst [vmem:[#allocation2 + $0xf8] sm:$0xff] 0.0
    %124 = vst [vmem:[#allocation2 + $0x118] sm:$0xff] 0.0
    %125 = vst [vmem:[#allocation2 + $0x138] sm:$0xff] 0.0
    %126 = vst [vmem:[#allocation2 + $0x158] sm:$0xff] 0.0
    %127 = vst [vmem:[#allocation2 + $0x178] sm:$0xff] 0.0
    %128 = vst [vmem:[#allocation2 + $0x198] sm:$0xff] 0.0
    %129 = vst [vmem:[#allocation2 + $0x1b8] sm:$0xff] 0.0
    %130 = vst [vmem:[#allocation2 + $0x1d8] sm:$0xff] 0.0
    %131 = vst [vmem:[#allocation2 + $0x1f8] sm:$0xff] 0.0
    %v132 = vld [vmem:[#allocation3] sm:$0xff]
    %v133 = vld [vmem:[#allocation3 + $0x8] sm:$0xff]
    %v134 = vld [vmem:[#allocation3 + $0x10] sm:$0xff]
    %v135 = vld [vmem:[#allocation3 + $0x18] sm:$0xff]
    %s136 = scalar_lea.vmem [#allocation2], 448
    %137 = vst [vmem:[%s136 + $0x8] sm:$0xff] %v132
    %138 = vst [vmem:[%s136 + $0x10] sm:$0xff] %v133
    %139 = vst [vmem:[%s136 + $0x28] sm:$0xff] %v134
    %140 = vst [vmem:[%s136 + $0x30] sm:$0xff] %v135
    %v141 = vld [vmem:[%s136 + $0x7] sm:$0xff]
    %v142 = vld [vmem:[%s136 + $0xf] sm:$0xff]
    %v143 = vld [vmem:[%s136 + $0x27] sm:$0xff]
    %v144 = vld [vmem:[%s136 + $0x2f] sm:$0xff]
    %v145 = vpack.c.bf16 %v141, %v141
    %v146 = vpack.c.bf16 %v142, %v142
    %v147 = vpack.c.bf16 %v143, %v143
    %v148 = vpack.c.bf16 %v144, %v144
    %v149 = vld [vmem:[%s136 + $0x8] sm:$0xff]
    %v150 = vld [vmem:[%s136 + $0x10] sm:$0xff]
    %v151 = vld [vmem:[%s136 + $0x28] sm:$0xff]
    %v152 = vld [vmem:[%s136 + $0x30] sm:$0xff]
    %v153 = vpack.c.bf16 %v149, %v149
    %v154 = vpack.c.bf16 %v150, %v150
    %v155 = vpack.c.bf16 %v151, %v151
    %v156 = vpack.c.bf16 %v152, %v152
    %v157 = vld [vmem:[%s136 + $0x9] sm:$0xff]
    %v158 = vld [vmem:[%s136 + $0x11] sm:$0xff]
    %v159 = vld [vmem:[%s136 + $0x29] sm:$0xff]
    %v160 = vld [vmem:[%s136 + $0x31] sm:$0xff]
    %v161 = vpack.c.bf16 %v157, %v157
    %v162 = vpack.c.bf16 %v158, %v158
    %v163 = vpack.c.bf16 %v159, %v159
    %v164 = vpack.c.bf16 %v160, %v160
    %v169 = vunpack.c.l.b16 %v145
    %v170 = vunpack.c.l.b16 %v146
    %v171 = vunpack.c.l.b16 %v147
    %v172 = vunpack.c.l.b16 %v148
    %v173 = vpack.c.b16 %v170, %v169
    %v174 = vpack.c.b16 %v172, %v171
    %v181 = vunpack.c.l.b16 %v153
    %v182 = vunpack.c.l.b16 %v154
    %v183 = vunpack.c.l.b16 %v155
    %v184 = vunpack.c.l.b16 %v156
    %v185 = vpack.c.b16 %v182, %v181
    %v186 = vpack.c.b16 %v184, %v183
    %v193 = vunpack.c.l.b16 %v161
    %v194 = vunpack.c.l.b16 %v162
    %v195 = vunpack.c.l.b16 %v163
    %v196 = vunpack.c.l.b16 %v164
    %v197 = vpack.c.b16 %v194, %v193
    %v198 = vpack.c.b16 %v196, %v195
    %v201 = vld [vmem:[#allocation6] sm:$0xf]
    %v202 = vld [vmem:[#allocation6 + $0x4] sm:$0xf]
    %v203 = vld [vmem:[#allocation6 + $0x8] sm:$0xf]
    %v204 = vld [vmem:[#allocation6 + $0xc] sm:$0xf]
    %v205 = vld [vmem:[#allocation6 + $0x10] sm:$0xf]
    %v206 = vld [vmem:[#allocation6 + $0x14] sm:$0xf]
    %v207 = vld [vmem:[#allocation6 + $0x18] sm:$0xf]
    %v208 = vld [vmem:[#allocation6 + $0x1c] sm:$0xf]
    %v209 = vld [vmem:[#allocation6 + $0x20] sm:$0xf]
    %v210 = vld [vmem:[#allocation6 + $0x24] sm:$0xf]
    %v211 = vld [vmem:[#allocation6 + $0x28] sm:$0xf]
    %v212 = vld [vmem:[#allocation6 + $0x2c] sm:$0xf]
    %v213 = vld [vmem:[#allocation6 + $0x30] sm:$0xf]
    %v214 = vld [vmem:[#allocation6 + $0x34] sm:$0xf]
    %v215 = vld [vmem:[#allocation6 + $0x38] sm:$0xf]
    %v216 = vld [vmem:[#allocation6 + $0x3c] sm:$0xf]
    %v217 = vld [vmem:[#allocation6 + $0x40] sm:$0xf]
    %v218 = vld [vmem:[#allocation6 + $0x44] sm:$0xf]
    %v219 = vld [vmem:[#allocation6 + $0x48] sm:$0xf]
    %v220 = vld [vmem:[#allocation6 + $0x4c] sm:$0xf]
    %v221 = vld [vmem:[#allocation6 + $0x50] sm:$0xf]
    %v222 = vld [vmem:[#allocation6 + $0x54] sm:$0xf]
    %v223 = vld [vmem:[#allocation6 + $0x58] sm:$0xf]
    %v224 = vld [vmem:[#allocation6 + $0x5c] sm:$0xf]
    %v225 = vld [vmem:[#allocation6 + $0x60] sm:$0xf]
    %v226 = vld [vmem:[#allocation6 + $0x64] sm:$0xf]
    %v227 = vld [vmem:[#allocation6 + $0x68] sm:$0xf]
    %v228 = vld [vmem:[#allocation6 + $0x6c] sm:$0xf]
    %v229 = vld [vmem:[#allocation6 + $0x70] sm:$0xf]
    %v230 = vld [vmem:[#allocation6 + $0x74] sm:$0xf]
    %v231 = vld [vmem:[#allocation6 + $0x78] sm:$0xf]
    %v232 = vld [vmem:[#allocation6 + $0x7c] sm:$0xf]
    %v233 = vld [vmem:[#allocation6 + $0x80] sm:$0xf]
    %v234 = vld [vmem:[#allocation6 + $0x84] sm:$0xf]
    %v235 = vld [vmem:[#allocation6 + $0x88] sm:$0xf]
    %v236 = vld [vmem:[#allocation6 + $0x8c] sm:$0xf]
    %v237 = vld [vmem:[#allocation6 + $0x90] sm:$0xf]
    %v238 = vld [vmem:[#allocation6 + $0x94] sm:$0xf]
    %v239 = vld [vmem:[#allocation6 + $0x98] sm:$0xf]
    %v240 = vld [vmem:[#allocation6 + $0x9c] sm:$0xf]
    %v241 = vld [vmem:[#allocation6 + $0xa0] sm:$0xf]
    %v242 = vld [vmem:[#allocation6 + $0xa4] sm:$0xf]
    %v243 = vld [vmem:[#allocation6 + $0xa8] sm:$0xf]
    %v244 = vld [vmem:[#allocation6 + $0xac] sm:$0xf]
    %v245 = vld [vmem:[#allocation6 + $0xb0] sm:$0xf]
    %v246 = vld [vmem:[#allocation6 + $0xb4] sm:$0xf]
    %v247 = vld [vmem:[#allocation6 + $0xb8] sm:$0xf]
    %v248 = vld [vmem:[#allocation6 + $0xbc] sm:$0xf]
    %v297 = vunpack.c.l.b16 %v201
    %v298 = vunpack.c.l.b16 %v202
    %v299 = vunpack.c.l.b16 %v203
    %v300 = vunpack.c.l.b16 %v204
    %v301 = vunpack.c.l.b16 %v205
    %v302 = vunpack.c.l.b16 %v206
    %v303 = vunpack.c.l.b16 %v207
    %v304 = vunpack.c.l.b16 %v208
    %v305 = vunpack.c.l.b16 %v209
    %v306 = vunpack.c.l.b16 %v210
    %v307 = vunpack.c.l.b16 %v211
    %v308 = vunpack.c.l.b16 %v212
    %v309 = vunpack.c.l.b16 %v213
    %v310 = vunpack.c.l.b16 %v214
    %v311 = vunpack.c.l.b16 %v215
    %v312 = vunpack.c.l.b16 %v216
    %v313 = vunpack.c.l.b16 %v217
    %v314 = vunpack.c.l.b16 %v218
    %v315 = vunpack.c.l.b16 %v219
    %v316 = vunpack.c.l.b16 %v220
    %v317 = vunpack.c.l.b16 %v221
    %v318 = vunpack.c.l.b16 %v222
    %v319 = vunpack.c.l.b16 %v223
    %v320 = vunpack.c.l.b16 %v224
    %v321 = vunpack.c.l.b16 %v225
    %v322 = vunpack.c.l.b16 %v226
    %v323 = vunpack.c.l.b16 %v227
    %v324 = vunpack.c.l.b16 %v228
    %v325 = vunpack.c.l.b16 %v229
    %v326 = vunpack.c.l.b16 %v230
    %v327 = vunpack.c.l.b16 %v231
    %v328 = vunpack.c.l.b16 %v232
    %v329 = vunpack.c.l.b16 %v233
    %v330 = vunpack.c.l.b16 %v234
    %v331 = vunpack.c.l.b16 %v235
    %v332 = vunpack.c.l.b16 %v236
    %v333 = vunpack.c.l.b16 %v237
    %v334 = vunpack.c.l.b16 %v238
    %v335 = vunpack.c.l.b16 %v239
    %v336 = vunpack.c.l.b16 %v240
    %v337 = vunpack.c.l.b16 %v241
    %v338 = vunpack.c.l.b16 %v242
    %v339 = vunpack.c.l.b16 %v243
    %v340 = vunpack.c.l.b16 %v244
    %v341 = vunpack.c.l.b16 %v245
    %v342 = vunpack.c.l.b16 %v246
    %v343 = vunpack.c.l.b16 %v247
    %v344 = vunpack.c.l.b16 %v248
    %v345 = vpack.c.b16 %v298, %v297
    %v346 = vpack.c.b16 %v300, %v299
    %v347 = vpack.c.b16 %v302, %v301
    %v348 = vpack.c.b16 %v304, %v303
    %v349 = vpack.c.b16 %v306, %v305
    %v350 = vpack.c.b16 %v308, %v307
    %v351 = vpack.c.b16 %v310, %v309
    %v352 = vpack.c.b16 %v312, %v311
    %v353 = vpack.c.b16 %v314, %v313
    %v354 = vpack.c.b16 %v316, %v315
    %v355 = vpack.c.b16 %v318, %v317
    %v356 = vpack.c.b16 %v320, %v319
    %v357 = vpack.c.b16 %v322, %v321
    %v358 = vpack.c.b16 %v324, %v323
    %v359 = vpack.c.b16 %v326, %v325
    %v360 = vpack.c.b16 %v328, %v327
    %v361 = vpack.c.b16 %v330, %v329
    %v362 = vpack.c.b16 %v332, %v331
    %v363 = vpack.c.b16 %v334, %v333
    %v364 = vpack.c.b16 %v336, %v335
    %v365 = vpack.c.b16 %v338, %v337
    %v366 = vpack.c.b16 %v340, %v339
    %v367 = vpack.c.b16 %v342, %v341
    %v368 = vpack.c.b16 %v344, %v343
    %393 = vmatpush.bf16.msra.mxu0 %v352
    %394 = vmatpush.bf16.msra.mxu0 %v351
    %395 = vmatpush.bf16.msra.mxu0 %v350
    %396 = vmatpush.bf16.msra.mxu0 %v349
    %397 = vmatpush.bf16.msra.mxu0 %v348
    %398 = vmatpush.bf16.msra.mxu0 %v347
    %399 = vmatpush.bf16.msra.mxu0 %v346
    %400 = vmatpush.bf16.msra.mxu0 %v345
    %401 = vmatmul.bf16.gmra.mxu0 %v173
    %v402 = vpop.f32.mrf.mxu0
    %v403 = vadd.f32 0.0, %v402
    %v404 = vpop.f32.mrf.mxu0
    %v405 = vadd.f32 0.0, %v404
    %406 = vmatmul.bf16.gmra.mxu0 %v174
    %v407 = vpop.f32.mrf.mxu0
    %v408 = vadd.f32 0.0, %v407
    %v409 = vpop.f32.mrf.mxu0
    %v410 = vadd.f32 0.0, %v409
    %411 = vdwg.mxu0
    %412 = vmatpush.bf16.msra.mxu0 %v360
    %413 = vmatpush.bf16.msra.mxu0 %v359
    %414 = vmatpush.bf16.msra.mxu0 %v358
    %415 = vmatpush.bf16.msra.mxu0 %v357
    %416 = vmatpush.bf16.msra.mxu0 %v356
    %417 = vmatpush.bf16.msra.mxu0 %v355
    %418 = vmatpush.bf16.msra.mxu0 %v354
    %419 = vmatpush.bf16.msra.mxu0 %v353
    %420 = vmatmul.bf16.gmra.mxu0 %v185
    %v421 = vpop.f32.mrf.mxu0
    %v422 = vadd.f32 %v403, %v421
    %v423 = vpop.f32.mrf.mxu0
    %v424 = vadd.f32 %v405, %v423
    %425 = vmatmul.bf16.gmra.mxu0 %v186
    %v426 = vpop.f32.mrf.mxu0
    %v427 = vadd.f32 %v408, %v426
    %v428 = vpop.f32.mrf.mxu0
    %v429 = vadd.f32 %v410, %v428
    %430 = vdwg.mxu0
    %431 = vmatpush.bf16.msra.mxu0 %v368
    %432 = vmatpush.bf16.msra.mxu0 %v367
    %433 = vmatpush.bf16.msra.mxu0 %v366
    %434 = vmatpush.bf16.msra.mxu0 %v365
    %435 = vmatpush.bf16.msra.mxu0 %v364
    %436 = vmatpush.bf16.msra.mxu0 %v363
    %437 = vmatpush.bf16.msra.mxu0 %v362
    %438 = vmatpush.bf16.msra.mxu0 %v361
    %439 = vmatmul.bf16.gmra.mxu0 %v197
    %v440 = vpop.f32.mrf.mxu0
    %v441 = vadd.f32 %v422, %v440
    %v442 = vpop.f32.mrf.mxu0
    %v443 = vadd.f32 %v424, %v442
    %444 = vmatmul.bf16.gmra.mxu0 %v198
    %v445 = vpop.f32.mrf.mxu0
    %v446 = vadd.f32 %v427, %v445
    %v447 = vpop.f32.mrf.mxu0
    %v448 = vadd.f32 %v429, %v447
    %449 = vdwg.mxu0
    %v450 = vadd.f32 %v441, %v443
    %v451 = vadd.f32 %v450, %v446
    %v452 = vadd.f32 %v451, %v448
    %v453 = vrot.slane %v452, 4
    %v454 = vadd.f32 %v452, %v453
    %v455 = vrot.slane %v454, 2
    %v456 = vadd.f32 %v454, %v455
    %v457 = vrot.slane %v456, 1
    %v458 = vadd.f32 %v456, %v457
    %v459 = vmul.f32 %v441, %v441
    %v460 = vmul.f32 %v443, %v443
    %v461 = vmul.f32 %v446, %v446
    %v462 = vmul.f32 %v448, %v448
    %v463 = vadd.f32 %v459, %v460
    %v464 = vadd.f32 %v463, %v461
    %v465 = vadd.f32 %v464, %v462
    %v466 = vrot.slane %v465, 4
    %v467 = vadd.f32 %v465, %v466
    %v468 = vrot.slane %v467, 2
    %v469 = vadd.f32 %v467, %v468
    %v470 = vrot.slane %v469, 1
    %v471 = vadd.f32 %v469, %v470
    %vm472 = vcmask 1040384
    %v473 = vsel %vm472, %v458, %v471
    %v474 = vld [vmem:[%s2] sm:$0xff]
    %v475 = vld [vmem:[%s2 + $0x8] sm:$0xff]
    %v476 = vld [vmem:[%s2 + $0x10] sm:$0xff]
    %v477 = vld [vmem:[%s2 + $0x18] sm:$0xff]
    %v478 = vld [vmem:[%s2 + $0x20] sm:$0xff]
    %v479 = vld [vmem:[%s2 + $0x28] sm:$0xff]
    %v480 = vld [vmem:[%s2 + $0x30] sm:$0xff]
    %v481 = vld [vmem:[%s2 + $0x38] sm:$0xff]
    %v482 = vld [vmem:[%s2 + $0x40] sm:$0xff]
    %v483 = vld [vmem:[%s2 + $0x48] sm:$0xff]
    %v484 = vld [vmem:[%s2 + $0x50] sm:$0xff]
    %v485 = vld [vmem:[%s2 + $0x58] sm:$0xff]
    %v486 = vld [vmem:[%s2 + $0x60] sm:$0xff]
    %v487 = vld [vmem:[%s2 + $0x68] sm:$0xff]
    %v488 = vld [vmem:[%s2 + $0x70] sm:$0xff]
    %v489 = vld [vmem:[%s2 + $0x78] sm:$0xff]
    %490 = vmatpush.msra.mxu0 %v489
    %491 = vmatpush.msra.mxu0 %v488
    %492 = vmatpush.msra.mxu0 %v487
    %493 = vmatpush.msra.mxu0 %v486
    %494 = vmatpush.msra.mxu0 %v485
    %495 = vmatpush.msra.mxu0 %v484
    %496 = vmatpush.msra.mxu0 %v483
    %497 = vmatpush.msra.mxu0 %v482
    %498 = vmatpush.msra.mxu0 %v481
    %499 = vmatpush.msra.mxu0 %v480
    %500 = vmatpush.msra.mxu0 %v479
    %501 = vmatpush.msra.mxu0 %v478
    %502 = vmatpush.msra.mxu0 %v477
    %503 = vmatpush.msra.mxu0 %v476
    %504 = vmatpush.msra.mxu0 %v475
    %505 = vmatpush.msra.mxu0 %v474
    %506 = vmatmul.f32.gmra.mxu0 %v473
    %v507 = vpop.f32.mrf.mxu0
    %v508 = vadd.f32 0.0, %v507
    %509 = vdwg.mxu0
    %v510 = vrcp.pop 512.0
    %v511 = vmul.f32 512.0, %v510
    %v512 = vsub.f32 1.0, %v511
    %v513 = vmul.f32 %v510, %v512
    %v514 = vadd.f32 %v510, %v513
    %vm515 = vweird.f32 %v510
    %v516 = vsel %vm515, %v510, %v514
    %v517 = vmul.f32 %v508, %v516
    %v518 = vmul.f32 %v517, %v517
    %v520 = vrot.slane %v518, 7
    %v522 = vsub.f32 %v517, %v520
    %v523 = vmax.f32 %v522, 0.0
    %v524 = vld [vmem:[#allocation9] sm:$0x1]
    %v525 = vadd.f32 %v523, 1e-05
    %v526 = vrsqrt.pop %v525
    %v527 = vmul.f32 %v526, %v525
    %v528 = vmul.f32 %v527, %v526
    %v529 = vmul.f32 0.5, %v528
    %v530 = vsub.f32 1.5, %v529
    %v531 = vmul.f32 %v526, %v530
    %vm532 = vweird.f32 %v525
    %vm533 = vweird.f32 %v526
    %vm534 = vmor %vm532, %vm533
    %v535 = vsel %vm534, %v526, %v531
    %537 = vst [vmem:[#allocation1] sm:$0xff] %v535
    %s538 = scalar_lea.vmem [#allocation1], 1
    %v539 = vld [vmem:[%s538] ss:$9 sm:$0xff]
    %v541 = vmul.f32 %v524, %v539
    %v542 = vld [vmem:[#allocation11] sm:$0x1]
    %v543 = vmul.f32 %v517, %v541
    %v544 = vsub.f32 %v542, %v543
    %v546 = vperm.slane %v544, 0
    %v548 = vsel %vm472, %v541, %v546
    %v549 = vld [vmem:[#allocation8] sm:$0xff]
    %vm550 = vcmask 64512
    %v552 = vsel %vm550, %v548, 0
    %554 = vmatpush.msra.mxu0 0.0
    %555 = vmatpush.msra.mxu0 0.0
    %556 = vmatpush.msra.mxu0 0.0
    %557 = vmatpush.msra.mxu0 0.0
    %558 = vmatpush.msra.mxu0 0.0
    %559 = vmatpush.msra.mxu0 0.0
    %560 = vmatpush.msra.mxu0 0.0
    %561 = vmatpush.msra.mxu0 0.0
    %562 = vmatpush.msra.mxu0 0.0
    %563 = vmatpush.msra.mxu0 0.0
    %564 = vmatpush.msra.mxu0 0.0
    %565 = vmatpush.msra.mxu0 0.0
    %566 = vmatpush.msra.mxu0 0.0
    %567 = vmatpush.msra.mxu0 0.0
    %568 = vmatpush.msra.mxu0 0.0
    %569 = vmatpush.msra.mxu0 %v549
    %570 = vmatmul.f32.gmra.mxu0 %v552
    %v571 = vpop.f32.mrf.mxu0
    %v572 = vadd.f32 0.0, %v571
    %573 = vdwg.mxu0
    %v574 = vperm.slane %v572, 0
    %v575 = vmul.f32 %v441, %v574
    %v576 = vmul.f32 %v443, %v574
    %v577 = vmul.f32 %v446, %v574
    %v578 = vmul.f32 %v448, %v574
    %v579 = vperm.slane %v572, 1
    %v580 = vadd.f32 %v575, %v579
    %v581 = vadd.f32 %v576, %v579
    %v582 = vadd.f32 %v577, %v579
    %v583 = vadd.f32 %v578, %v579
    %v584 = vmax.f32 %v580, 0.0
    %v585 = vmax.f32 %v581, 0.0
    %v586 = vmax.f32 %v582, 0.0
    %v587 = vmax.f32 %v583, 0.0
    %588 = vst [vmem:[#allocation2 + $0x8] sm:$0xff] %v584
    %589 = vst [vmem:[#allocation2 + $0x10] sm:$0xff] %v585
    %590 = vst [vmem:[#allocation2 + $0x28] sm:$0xff] %v586
    %591 = vst [vmem:[#allocation2 + $0x30] sm:$0xff] %v587
    %v592 = vld [vmem:[#allocation2 + $0x7] sm:$0xff]
    %v593 = vld [vmem:[#allocation2 + $0xf] sm:$0xff]
    %v594 = vld [vmem:[#allocation2 + $0x27] sm:$0xff]
    %v595 = vld [vmem:[#allocation2 + $0x2f] sm:$0xff]
    %v596 = vpack.c.bf16 %v592, %v592
    %v597 = vpack.c.bf16 %v593, %v593
    %v598 = vpack.c.bf16 %v594, %v594
    %v599 = vpack.c.bf16 %v595, %v595
    %v600 = vld [vmem:[#allocation2 + $0x8] sm:$0xff]
    %v601 = vld [vmem:[#allocation2 + $0x10] sm:$0xff]
    %v602 = vld [vmem:[#allocation2 + $0x28] sm:$0xff]
    %v603 = vld [vmem:[#allocation2 + $0x30] sm:$0xff]
    %v604 = vpack.c.bf16 %v600, %v600
    %v605 = vpack.c.bf16 %v601, %v601
    %v606 = vpack.c.bf16 %v602, %v602
    %v607 = vpack.c.bf16 %v603, %v603
    %v608 = vld [vmem:[#allocation2 + $0x9] sm:$0xff]
    %v609 = vld [vmem:[#allocation2 + $0x11] sm:$0xff]
    %v610 = vld [vmem:[#allocation2 + $0x29] sm:$0xff]
    %v611 = vld [vmem:[#allocation2 + $0x31] sm:$0xff]
    %v612 = vpack.c.bf16 %v608, %v608
    %v613 = vpack.c.bf16 %v609, %v609
    %v614 = vpack.c.bf16 %v610, %v610
    %v615 = vpack.c.bf16 %v611, %v611
    %v620 = vunpack.c.l.b16 %v596
    %v621 = vunpack.c.l.b16 %v597
    %v622 = vunpack.c.l.b16 %v598
    %v623 = vunpack.c.l.b16 %v599
    %v624 = vpack.c.b16 %v621, %v620
    %v625 = vpack.c.b16 %v623, %v622
    %v632 = vunpack.c.l.b16 %v604
    %v633 = vunpack.c.l.b16 %v605
    %v634 = vunpack.c.l.b16 %v606
    %v635 = vunpack.c.l.b16 %v607
    %v636 = vpack.c.b16 %v633, %v632
    %v637 = vpack.c.b16 %v635, %v634
    %v644 = vunpack.c.l.b16 %v612
    %v645 = vunpack.c.l.b16 %v613
    %v646 = vunpack.c.l.b16 %v614
    %v647 = vunpack.c.l.b16 %v615
    %v648 = vpack.c.b16 %v645, %v644
    %v649 = vpack.c.b16 %v647, %v646
    %v652 = vld [vmem:[#allocation6 + $0xc0] sm:$0xf]
    %v653 = vld [vmem:[#allocation6 + $0xc4] sm:$0xf]
    %v654 = vld [vmem:[#allocation6 + $0xc8] sm:$0xf]
    %v655 = vld [vmem:[#allocation6 + $0xcc] sm:$0xf]
    %v656 = vld [vmem:[#allocation6 + $0xd0] sm:$0xf]
    %v657 = vld [vmem:[#allocation6 + $0xd4] sm:$0xf]
    %v658 = vld [vmem:[#allocation6 + $0xd8] sm:$0xf]
    %v659 = vld [vmem:[#allocation6 + $0xdc] sm:$0xf]
    %v660 = vld [vmem:[#allocation6 + $0xe0] sm:$0xf]
    %v661 = vld [vmem:[#allocation6 + $0xe4] sm:$0xf]
    %v662 = vld [vmem:[#allocation6 + $0xe8] sm:$0xf]
    %v663 = vld [vmem:[#allocation6 + $0xec] sm:$0xf]
    %v664 = vld [vmem:[#allocation6 + $0xf0] sm:$0xf]
    %v665 = vld [vmem:[#allocation6 + $0xf4] sm:$0xf]
    %v666 = vld [vmem:[#allocation6 + $0xf8] sm:$0xf]
    %v667 = vld [vmem:[#allocation6 + $0xfc] sm:$0xf]
    %v668 = vld [vmem:[#allocation6 + $0x100] sm:$0xf]
    %v669 = vld [vmem:[#allocation6 + $0x104] sm:$0xf]
    %v670 = vld [vmem:[#allocation6 + $0x108] sm:$0xf]
    %v671 = vld [vmem:[#allocation6 + $0x10c] sm:$0xf]
    %v672 = vld [vmem:[#allocation6 + $0x110] sm:$0xf]
    %v673 = vld [vmem:[#allocation6 + $0x114] sm:$0xf]
    %v674 = vld [vmem:[#allocation6 + $0x118] sm:$0xf]
    %v675 = vld [vmem:[#allocation6 + $0x11c] sm:$0xf]
    %v676 = vld [vmem:[#allocation6 + $0x120] sm:$0xf]
    %v677 = vld [vmem:[#allocation6 + $0x124] sm:$0xf]
    %v678 = vld [vmem:[#allocation6 + $0x128] sm:$0xf]
    %v679 = vld [vmem:[#allocation6 + $0x12c] sm:$0xf]
    %v680 = vld [vmem:[#allocation6 + $0x130] sm:$0xf]
    %v681 = vld [vmem:[#allocation6 + $0x134] sm:$0xf]
    %v682 = vld [vmem:[#allocation6 + $0x138] sm:$0xf]
    %v683 = vld [vmem:[#allocation6 + $0x13c] sm:$0xf]
    %v684 = vld [vmem:[#allocation6 + $0x140] sm:$0xf]
    %v685 = vld [vmem:[#allocation6 + $0x144] sm:$0xf]
    %v686 = vld [vmem:[#allocation6 + $0x148] sm:$0xf]
    %v687 = vld [vmem:[#allocation6 + $0x14c] sm:$0xf]
    %v688 = vld [vmem:[#allocation6 + $0x150] sm:$0xf]
    %v689 = vld [vmem:[#allocation6 + $0x154] sm:$0xf]
    %v690 = vld [vmem:[#allocation6 + $0x158] sm:$0xf]
    %v691 = vld [vmem:[#allocation6 + $0x15c] sm:$0xf]
    %v692 = vld [vmem:[#allocation6 + $0x160] sm:$0xf]
    %v693 = vld [vmem:[#allocation6 + $0x164] sm:$0xf]
    %v694 = vld [vmem:[#allocation6 + $0x168] sm:$0xf]
    %v695 = vld [vmem:[#allocation6 + $0x16c] sm:$0xf]
    %v696 = vld [vmem:[#allocation6 + $0x170] sm:$0xf]
    %v697 = vld [vmem:[#allocation6 + $0x174] sm:$0xf]
    %v698 = vld [vmem:[#allocation6 + $0x178] sm:$0xf]
    %v699 = vld [vmem:[#allocation6 + $0x17c] sm:$0xf]
    %v748 = vunpack.c.l.b16 %v652
    %v749 = vunpack.c.l.b16 %v653
    %v750 = vunpack.c.l.b16 %v654
    %v751 = vunpack.c.l.b16 %v655
    %v752 = vunpack.c.l.b16 %v656
    %v753 = vunpack.c.l.b16 %v657
    %v754 = vunpack.c.l.b16 %v658
    %v755 = vunpack.c.l.b16 %v659
    %v756 = vunpack.c.l.b16 %v660
    %v757 = vunpack.c.l.b16 %v661
    %v758 = vunpack.c.l.b16 %v662
    %v759 = vunpack.c.l.b16 %v663
    %v760 = vunpack.c.l.b16 %v664
    %v761 = vunpack.c.l.b16 %v665
    %v762 = vunpack.c.l.b16 %v666
    %v763 = vunpack.c.l.b16 %v667
    %v764 = vunpack.c.l.b16 %v668
    %v765 = vunpack.c.l.b16 %v669
    %v766 = vunpack.c.l.b16 %v670
    %v767 = vunpack.c.l.b16 %v671
    %v768 = vunpack.c.l.b16 %v672
    %v769 = vunpack.c.l.b16 %v673
    %v770 = vunpack.c.l.b16 %v674
    %v771 = vunpack.c.l.b16 %v675
    %v772 = vunpack.c.l.b16 %v676
    %v773 = vunpack.c.l.b16 %v677
    %v774 = vunpack.c.l.b16 %v678
    %v775 = vunpack.c.l.b16 %v679
    %v776 = vunpack.c.l.b16 %v680
    %v777 = vunpack.c.l.b16 %v681
    %v778 = vunpack.c.l.b16 %v682
    %v779 = vunpack.c.l.b16 %v683
    %v780 = vunpack.c.l.b16 %v684
    %v781 = vunpack.c.l.b16 %v685
    %v782 = vunpack.c.l.b16 %v686
    %v783 = vunpack.c.l.b16 %v687
    %v784 = vunpack.c.l.b16 %v688
    %v785 = vunpack.c.l.b16 %v689
    %v786 = vunpack.c.l.b16 %v690
    %v787 = vunpack.c.l.b16 %v691
    %v788 = vunpack.c.l.b16 %v692
    %v789 = vunpack.c.l.b16 %v693
    %v790 = vunpack.c.l.b16 %v694
    %v791 = vunpack.c.l.b16 %v695
    %v792 = vunpack.c.l.b16 %v696
    %v793 = vunpack.c.l.b16 %v697
    %v794 = vunpack.c.l.b16 %v698
    %v795 = vunpack.c.l.b16 %v699
    %v796 = vpack.c.b16 %v749, %v748
    %v797 = vpack.c.b16 %v751, %v750
    %v798 = vpack.c.b16 %v753, %v752
    %v799 = vpack.c.b16 %v755, %v754
    %v800 = vpack.c.b16 %v757, %v756
    %v801 = vpack.c.b16 %v759, %v758
    %v802 = vpack.c.b16 %v761, %v760
    %v803 = vpack.c.b16 %v763, %v762
    %v804 = vpack.c.b16 %v765, %v764
    %v805 = vpack.c.b16 %v767, %v766
    %v806 = vpack.c.b16 %v769, %v768
    %v807 = vpack.c.b16 %v771, %v770
    %v808 = vpack.c.b16 %v773, %v772
    %v809 = vpack.c.b16 %v775, %v774
    %v810 = vpack.c.b16 %v777, %v776
    %v811 = vpack.c.b16 %v779, %v778
    %v812 = vpack.c.b16 %v781, %v780
    %v813 = vpack.c.b16 %v783, %v782
    %v814 = vpack.c.b16 %v785, %v784
    %v815 = vpack.c.b16 %v787, %v786
    %v816 = vpack.c.b16 %v789, %v788
    %v817 = vpack.c.b16 %v791, %v790
    %v818 = vpack.c.b16 %v793, %v792
    %v819 = vpack.c.b16 %v795, %v794
    %844 = vmatpush.bf16.msra.mxu0 %v803
    %845 = vmatpush.bf16.msra.mxu0 %v802
    %846 = vmatpush.bf16.msra.mxu0 %v801
    %847 = vmatpush.bf16.msra.mxu0 %v800
    %848 = vmatpush.bf16.msra.mxu0 %v799
    %849 = vmatpush.bf16.msra.mxu0 %v798
    %850 = vmatpush.bf16.msra.mxu0 %v797
    %851 = vmatpush.bf16.msra.mxu0 %v796
    %852 = vmatmul.bf16.gmra.mxu0 %v624
    %v853 = vpop.f32.mrf.mxu0
    %v854 = vadd.f32 0.0, %v853
    %v855 = vpop.f32.mrf.mxu0
    %v856 = vadd.f32 0.0, %v855
    %857 = vmatmul.bf16.gmra.mxu0 %v625
    %v858 = vpop.f32.mrf.mxu0
    %v859 = vadd.f32 0.0, %v858
    %v860 = vpop.f32.mrf.mxu0
    %v861 = vadd.f32 0.0, %v860
    %862 = vdwg.mxu0
    %863 = vmatpush.bf16.msra.mxu0 %v811
    %864 = vmatpush.bf16.msra.mxu0 %v810
    %865 = vmatpush.bf16.msra.mxu0 %v809
    %866 = vmatpush.bf16.msra.mxu0 %v808
    %867 = vmatpush.bf16.msra.mxu0 %v807
    %868 = vmatpush.bf16.msra.mxu0 %v806
    %869 = vmatpush.bf16.msra.mxu0 %v805
    %870 = vmatpush.bf16.msra.mxu0 %v804
    %871 = vmatmul.bf16.gmra.mxu0 %v636
    %v872 = vpop.f32.mrf.mxu0
    %v873 = vadd.f32 %v854, %v872
    %v874 = vpop.f32.mrf.mxu0
    %v875 = vadd.f32 %v856, %v874
    %876 = vmatmul.bf16.gmra.mxu0 %v637
    %v877 = vpop.f32.mrf.mxu0
    %v878 = vadd.f32 %v859, %v877
    %v879 = vpop.f32.mrf.mxu0
    %v880 = vadd.f32 %v861, %v879
    %881 = vdwg.mxu0
    %882 = vmatpush.bf16.msra.mxu0 %v819
    %883 = vmatpush.bf16.msra.mxu0 %v818
    %884 = vmatpush.bf16.msra.mxu0 %v817
    %885 = vmatpush.bf16.msra.mxu0 %v816
    %886 = vmatpush.bf16.msra.mxu0 %v815
    %887 = vmatpush.bf16.msra.mxu0 %v814
    %888 = vmatpush.bf16.msra.mxu0 %v813
    %889 = vmatpush.bf16.msra.mxu0 %v812
    %890 = vmatmul.bf16.gmra.mxu0 %v648
    %v891 = vpop.f32.mrf.mxu0
    %v892 = vadd.f32 %v873, %v891
    %v893 = vpop.f32.mrf.mxu0
    %v894 = vadd.f32 %v875, %v893
    %895 = vmatmul.bf16.gmra.mxu0 %v649
    %v896 = vpop.f32.mrf.mxu0
    %v897 = vadd.f32 %v878, %v896
    %v898 = vpop.f32.mrf.mxu0
    %v899 = vadd.f32 %v880, %v898
    %900 = vdwg.mxu0
    %v901 = vadd.f32 %v892, %v894
    %v902 = vadd.f32 %v901, %v897
    %v903 = vadd.f32 %v902, %v899
    %v904 = vrot.slane %v903, 4
    %v905 = vadd.f32 %v903, %v904
    %v906 = vrot.slane %v905, 2
    %v907 = vadd.f32 %v905, %v906
    %v908 = vrot.slane %v907, 1
    %v909 = vadd.f32 %v907, %v908
    %v910 = vmul.f32 %v892, %v892
    %v911 = vmul.f32 %v894, %v894
    %v912 = vmul.f32 %v897, %v897
    %v913 = vmul.f32 %v899, %v899
    %v914 = vadd.f32 %v910, %v911
    %v915 = vadd.f32 %v914, %v912
    %v916 = vadd.f32 %v915, %v913
    %v917 = vrot.slane %v916, 4
    %v918 = vadd.f32 %v916, %v917
    %v919 = vrot.slane %v918, 2
    %v920 = vadd.f32 %v918, %v919
    %v921 = vrot.slane %v920, 1
    %v922 = vadd.f32 %v920, %v921
    %v923 = vsel %vm472, %v909, %v922
    %v924 = vld [vmem:[%s2] sm:$0xff]
    %v925 = vld [vmem:[%s2 + $0x8] sm:$0xff]
    %v926 = vld [vmem:[%s2 + $0x10] sm:$0xff]
    %v927 = vld [vmem:[%s2 + $0x18] sm:$0xff]
    %v928 = vld [vmem:[%s2 + $0x20] sm:$0xff]
    %v929 = vld [vmem:[%s2 + $0x28] sm:$0xff]
    %v930 = vld [vmem:[%s2 + $0x30] sm:$0xff]
    %v931 = vld [vmem:[%s2 + $0x38] sm:$0xff]
    %v932 = vld [vmem:[%s2 + $0x40] sm:$0xff]
    %v933 = vld [vmem:[%s2 + $0x48] sm:$0xff]
    %v934 = vld [vmem:[%s2 + $0x50] sm:$0xff]
    %v935 = vld [vmem:[%s2 + $0x58] sm:$0xff]
    %v936 = vld [vmem:[%s2 + $0x60] sm:$0xff]
    %v937 = vld [vmem:[%s2 + $0x68] sm:$0xff]
    %v938 = vld [vmem:[%s2 + $0x70] sm:$0xff]
    %v939 = vld [vmem:[%s2 + $0x78] sm:$0xff]
    %940 = vmatpush.msra.mxu0 %v939
    %941 = vmatpush.msra.mxu0 %v938
    %942 = vmatpush.msra.mxu0 %v937
    %943 = vmatpush.msra.mxu0 %v936
    %944 = vmatpush.msra.mxu0 %v935
    %945 = vmatpush.msra.mxu0 %v934
    %946 = vmatpush.msra.mxu0 %v933
    %947 = vmatpush.msra.mxu0 %v932
    %948 = vmatpush.msra.mxu0 %v931
    %949 = vmatpush.msra.mxu0 %v930
    %950 = vmatpush.msra.mxu0 %v929
    %951 = vmatpush.msra.mxu0 %v928
    %952 = vmatpush.msra.mxu0 %v927
    %953 = vmatpush.msra.mxu0 %v926
    %954 = vmatpush.msra.mxu0 %v925
    %955 = vmatpush.msra.mxu0 %v924
    %956 = vmatmul.f32.gmra.mxu0 %v923
    %v957 = vpop.f32.mrf.mxu0
    %v958 = vadd.f32 0.0, %v957
    %959 = vdwg.mxu0
    %v960 = vmul.f32 %v958, %v516
    %v961 = vmul.f32 %v960, %v960
    %v963 = vrot.slane %v961, 7
    %v965 = vsub.f32 %v960, %v963
    %v966 = vmax.f32 %v965, 0.0
    %s967 = scalar_lea.vmem [#allocation9], 1
    %v968 = vld [vmem:[%s967] sm:$0x1]
    %v969 = vadd.f32 %v966, 1e-05
    %v970 = vrsqrt.pop %v969
    %v971 = vmul.f32 %v970, %v969
    %v972 = vmul.f32 %v971, %v970
    %v973 = vmul.f32 0.5, %v972
    %v974 = vsub.f32 1.5, %v973
    %v975 = vmul.f32 %v970, %v974
    %vm976 = vweird.f32 %v969
    %vm977 = vweird.f32 %v970
    %vm978 = vmor %vm976, %vm977
    %v979 = vsel %vm978, %v970, %v975
    %981 = vst [vmem:[#allocation1] sm:$0xff] %v979
    %s982 = scalar_lea.vmem [#allocation1], 1
    %v983 = vld [vmem:[%s982] ss:$9 sm:$0xff]
    %v985 = vmul.f32 %v968, %v983
    %s986 = scalar_lea.vmem [#allocation11], 1
    %v987 = vld [vmem:[%s986] sm:$0x1]
    %v988 = vmul.f32 %v960, %v985
    %v989 = vsub.f32 %v987, %v988
    %v991 = vperm.slane %v989, 0
    %v993 = vsel %vm472, %v985, %v991
    %v994 = vld [vmem:[#allocation8] sm:$0xff]
    %v996 = vsel %vm550, %v993, 0
    %998 = vmatpush.msra.mxu0 0.0
    %999 = vmatpush.msra.mxu0 0.0
    %1000 = vmatpush.msra.mxu0 0.0
    %1001 = vmatpush.msra.mxu0 0.0
    %1002 = vmatpush.msra.mxu0 0.0
    %1003 = vmatpush.msra.mxu0 0.0
    %1004 = vmatpush.msra.mxu0 0.0
    %1005 = vmatpush.msra.mxu0 0.0
    %1006 = vmatpush.msra.mxu0 0.0
    %1007 = vmatpush.msra.mxu0 0.0
    %1008 = vmatpush.msra.mxu0 0.0
    %1009 = vmatpush.msra.mxu0 0.0
    %1010 = vmatpush.msra.mxu0 0.0
    %1011 = vmatpush.msra.mxu0 0.0
    %1012 = vmatpush.msra.mxu0 0.0
    %1013 = vmatpush.msra.mxu0 %v994
    %1014 = vmatmul.f32.gmra.mxu0 %v996
    %v1015 = vpop.f32.mrf.mxu0
    %v1016 = vadd.f32 0.0, %v1015
    %1017 = vdwg.mxu0
    %v1018 = vperm.slane %v1016, 0
    %v1019 = vmul.f32 %v892, %v1018
    %v1020 = vmul.f32 %v894, %v1018
    %v1021 = vmul.f32 %v897, %v1018
    %v1022 = vmul.f32 %v899, %v1018
    %v1023 = vperm.slane %v1016, 1
    %v1024 = vadd.f32 %v1019, %v1023
    %v1025 = vadd.f32 %v1020, %v1023
    %v1026 = vadd.f32 %v1021, %v1023
    %v1027 = vadd.f32 %v1022, %v1023
    %v1028 = vmax.f32 %v1024, 0.0
    %v1029 = vmax.f32 %v1025, 0.0
    %v1030 = vmax.f32 %v1026, 0.0
    %v1031 = vmax.f32 %v1027, 0.0
    %s1032 = scalar_lea.vmem [#allocation2], 64
    %1033 = vst [vmem:[%s1032 + $0x8] sm:$0xff] %v1028
    %1034 = vst [vmem:[%s1032 + $0x10] sm:$0xff] %v1029
    %1035 = vst [vmem:[%s1032 + $0x28] sm:$0xff] %v1030
    %1036 = vst [vmem:[%s1032 + $0x30] sm:$0xff] %v1031
    %v1037 = vld [vmem:[%s1032 + $0x6] sm:$0xff]
    %v1038 = vld [vmem:[%s1032 + $0xe] sm:$0xff]
    %v1039 = vld [vmem:[%s1032 + $0x26] sm:$0xff]
    %v1040 = vld [vmem:[%s1032 + $0x2e] sm:$0xff]
    %v1041 = vpack.c.bf16 %v1037, %v1037
    %v1042 = vpack.c.bf16 %v1038, %v1038
    %v1043 = vpack.c.bf16 %v1039, %v1039
    %v1044 = vpack.c.bf16 %v1040, %v1040
    %v1045 = vld [vmem:[%s1032 + $0x8] sm:$0xff]
    %v1046 = vld [vmem:[%s1032 + $0x10] sm:$0xff]
    %v1047 = vld [vmem:[%s1032 + $0x28] sm:$0xff]
    %v1048 = vld [vmem:[%s1032 + $0x30] sm:$0xff]
    %v1049 = vpack.c.bf16 %v1045, %v1045
    %v1050 = vpack.c.bf16 %v1046, %v1046
    %v1051 = vpack.c.bf16 %v1047, %v1047
    %v1052 = vpack.c.bf16 %v1048, %v1048
    %v1053 = vld [vmem:[%s1032 + $0xa] sm:$0xff]
    %v1054 = vld [vmem:[%s1032 + $0x12] sm:$0xff]
    %v1055 = vld [vmem:[%s1032 + $0x2a] sm:$0xff]
    %v1056 = vld [vmem:[%s1032 + $0x32] sm:$0xff]
    %v1057 = vpack.c.bf16 %v1053, %v1053
    %v1058 = vpack.c.bf16 %v1054, %v1054
    %v1059 = vpack.c.bf16 %v1055, %v1055
    %v1060 = vpack.c.bf16 %v1056, %v1056
    %v1065 = vunpack.c.l.b16 %v1041
    %v1066 = vunpack.c.l.b16 %v1042
    %v1067 = vunpack.c.l.b16 %v1043
    %v1068 = vunpack.c.l.b16 %v1044
    %v1069 = vpack.c.b16 %v1066, %v1065
    %v1070 = vpack.c.b16 %v1068, %v1067
    %v1077 = vunpack.c.l.b16 %v1049
    %v1078 = vunpack.c.l.b16 %v1050
    %v1079 = vunpack.c.l.b16 %v1051
    %v1080 = vunpack.c.l.b16 %v1052
    %v1081 = vpack.c.b16 %v1078, %v1077
    %v1082 = vpack.c.b16 %v1080, %v1079
    %v1089 = vunpack.c.l.b16 %v1057
    %v1090 = vunpack.c.l.b16 %v1058
    %v1091 = vunpack.c.l.b16 %v1059
    %v1092 = vunpack.c.l.b16 %v1060
    %v1093 = vpack.c.b16 %v1090, %v1089
    %v1094 = vpack.c.b16 %v1092, %v1091
    %v1097 = vld [vmem:[#allocation6 + $0x180] sm:$0xf]
    %v1098 = vld [vmem:[#allocation6 + $0x184] sm:$0xf]
    %v1099 = vld [vmem:[#allocation6 + $0x188] sm:$0xf]
    %v1100 = vld [vmem:[#allocation6 + $0x18c] sm:$0xf]
    %v1101 = vld [vmem:[#allocation6 + $0x190] sm:$0xf]
    %v1102 = vld [vmem:[#allocation6 + $0x194] sm:$0xf]
    %v1103 = vld [vmem:[#allocation6 + $0x198] sm:$0xf]
    %v1104 = vld [vmem:[#allocation6 + $0x19c] sm:$0xf]
    %v1105 = vld [vmem:[#allocation6 + $0x1a0] sm:$0xf]
    %v1106 = vld [vmem:[#allocation6 + $0x1a4] sm:$0xf]
    %v1107 = vld [vmem:[#allocation6 + $0x1a8] sm:$0xf]
    %v1108 = vld [vmem:[#allocation6 + $0x1ac] sm:$0xf]
    %v1109 = vld [vmem:[#allocation6 + $0x1b0] sm:$0xf]
    %v1110 = vld [vmem:[#allocation6 + $0x1b4] sm:$0xf]
    %v1111 = vld [vmem:[#allocation6 + $0x1b8] sm:$0xf]
    %v1112 = vld [vmem:[#allocation6 + $0x1bc] sm:$0xf]
    %v1113 = vld [vmem:[#allocation6 + $0x1c0] sm:$0xf]
    %v1114 = vld [vmem:[#allocation6 + $0x1c4] sm:$0xf]
    %v1115 = vld [vmem:[#allocation6 + $0x1c8] sm:$0xf]
    %v1116 = vld [vmem:[#allocation6 + $0x1cc] sm:$0xf]
    %v1117 = vld [vmem:[#allocation6 + $0x1d0] sm:$0xf]
    %v1118 = vld [vmem:[#allocation6 + $0x1d4] sm:$0xf]
    %v1119 = vld [vmem:[#allocation6 + $0x1d8] sm:$0xf]
    %v1120 = vld [vmem:[#allocation6 + $0x1dc] sm:$0xf]
    %v1121 = vld [vmem:[#allocation6 + $0x1e0] sm:$0xf]
    %v1122 = vld [vmem:[#allocation6 + $0x1e4] sm:$0xf]
    %v1123 = vld [vmem:[#allocation6 + $0x1e8] sm:$0xf]
    %v1124 = vld [vmem:[#allocation6 + $0x1ec] sm:$0xf]
    %v1125 = vld [vmem:[#allocation6 + $0x1f0] sm:$0xf]
    %v1126 = vld [vmem:[#allocation6 + $0x1f4] sm:$0xf]
    %v1127 = vld [vmem:[#allocation6 + $0x1f8] sm:$0xf]
    %v1128 = vld [vmem:[#allocation6 + $0x1fc] sm:$0xf]
    %v1129 = vld [vmem:[#allocation6 + $0x200] sm:$0xf]
    %v1130 = vld [vmem:[#allocation6 + $0x204] sm:$0xf]
    %v1131 = vld [vmem:[#allocation6 + $0x208] sm:$0xf]
    %v1132 = vld [vmem:[#allocation6 + $0x20c] sm:$0xf]
    %v1133 = vld [vmem:[#allocation6 + $0x210] sm:$0xf]
    %v1134 = vld [vmem:[#allocation6 + $0x214] sm:$0xf]
    %v1135 = vld [vmem:[#allocation6 + $0x218] sm:$0xf]
    %v1136 = vld [vmem:[#allocation6 + $0x21c] sm:$0xf]
    %v1137 = vld [vmem:[#allocation6 + $0x220] sm:$0xf]
    %v1138 = vld [vmem:[#allocation6 + $0x224] sm:$0xf]
    %v1139 = vld [vmem:[#allocation6 + $0x228] sm:$0xf]
    %v1140 = vld [vmem:[#allocation6 + $0x22c] sm:$0xf]
    %v1141 = vld [vmem:[#allocation6 + $0x230] sm:$0xf]
    %v1142 = vld [vmem:[#allocation6 + $0x234] sm:$0xf]
    %v1143 = vld [vmem:[#allocation6 + $0x238] sm:$0xf]
    %v1144 = vld [vmem:[#allocation6 + $0x23c] sm:$0xf]
    %v1193 = vunpack.c.l.b16 %v1097
    %v1194 = vunpack.c.l.b16 %v1098
    %v1195 = vunpack.c.l.b16 %v1099
    %v1196 = vunpack.c.l.b16 %v1100
    %v1197 = vunpack.c.l.b16 %v1101
    %v1198 = vunpack.c.l.b16 %v1102
    %v1199 = vunpack.c.l.b16 %v1103
    %v1200 = vunpack.c.l.b16 %v1104
    %v1201 = vunpack.c.l.b16 %v1105
    %v1202 = vunpack.c.l.b16 %v1106
    %v1203 = vunpack.c.l.b16 %v1107
    %v1204 = vunpack.c.l.b16 %v1108
    %v1205 = vunpack.c.l.b16 %v1109
    %v1206 = vunpack.c.l.b16 %v1110
    %v1207 = vunpack.c.l.b16 %v1111
    %v1208 = vunpack.c.l.b16 %v1112
    %v1209 = vunpack.c.l.b16 %v1113
    %v1210 = vunpack.c.l.b16 %v1114
    %v1211 = vunpack.c.l.b16 %v1115
    %v1212 = vunpack.c.l.b16 %v1116
    %v1213 = vunpack.c.l.b16 %v1117
    %v1214 = vunpack.c.l.b16 %v1118
    %v1215 = vunpack.c.l.b16 %v1119
    %v1216 = vunpack.c.l.b16 %v1120
    %v1217 = vunpack.c.l.b16 %v1121
    %v1218 = vunpack.c.l.b16 %v1122
    %v1219 = vunpack.c.l.b16 %v1123
    %v1220 = vunpack.c.l.b16 %v1124
    %v1221 = vunpack.c.l.b16 %v1125
    %v1222 = vunpack.c.l.b16 %v1126
    %v1223 = vunpack.c.l.b16 %v1127
    %v1224 = vunpack.c.l.b16 %v1128
    %v1225 = vunpack.c.l.b16 %v1129
    %v1226 = vunpack.c.l.b16 %v1130
    %v1227 = vunpack.c.l.b16 %v1131
    %v1228 = vunpack.c.l.b16 %v1132
    %v1229 = vunpack.c.l.b16 %v1133
    %v1230 = vunpack.c.l.b16 %v1134
    %v1231 = vunpack.c.l.b16 %v1135
    %v1232 = vunpack.c.l.b16 %v1136
    %v1233 = vunpack.c.l.b16 %v1137
    %v1234 = vunpack.c.l.b16 %v1138
    %v1235 = vunpack.c.l.b16 %v1139
    %v1236 = vunpack.c.l.b16 %v1140
    %v1237 = vunpack.c.l.b16 %v1141
    %v1238 = vunpack.c.l.b16 %v1142
    %v1239 = vunpack.c.l.b16 %v1143
    %v1240 = vunpack.c.l.b16 %v1144
    %v1241 = vpack.c.b16 %v1194, %v1193
    %v1242 = vpack.c.b16 %v1196, %v1195
    %v1243 = vpack.c.b16 %v1198, %v1197
    %v1244 = vpack.c.b16 %v1200, %v1199
    %v1245 = vpack.c.b16 %v1202, %v1201
    %v1246 = vpack.c.b16 %v1204, %v1203
    %v1247 = vpack.c.b16 %v1206, %v1205
    %v1248 = vpack.c.b16 %v1208, %v1207
    %v1249 = vpack.c.b16 %v1210, %v1209
    %v1250 = vpack.c.b16 %v1212, %v1211
    %v1251 = vpack.c.b16 %v1214, %v1213
    %v1252 = vpack.c.b16 %v1216, %v1215
    %v1253 = vpack.c.b16 %v1218, %v1217
    %v1254 = vpack.c.b16 %v1220, %v1219
    %v1255 = vpack.c.b16 %v1222, %v1221
    %v1256 = vpack.c.b16 %v1224, %v1223
    %v1257 = vpack.c.b16 %v1226, %v1225
    %v1258 = vpack.c.b16 %v1228, %v1227
    %v1259 = vpack.c.b16 %v1230, %v1229
    %v1260 = vpack.c.b16 %v1232, %v1231
    %v1261 = vpack.c.b16 %v1234, %v1233
    %v1262 = vpack.c.b16 %v1236, %v1235
    %v1263 = vpack.c.b16 %v1238, %v1237
    %v1264 = vpack.c.b16 %v1240, %v1239
    %1289 = vmatpush.bf16.msra.mxu0 %v1248
    %1290 = vmatpush.bf16.msra.mxu0 %v1247
    %1291 = vmatpush.bf16.msra.mxu0 %v1246
    %1292 = vmatpush.bf16.msra.mxu0 %v1245
    %1293 = vmatpush.bf16.msra.mxu0 %v1244
    %1294 = vmatpush.bf16.msra.mxu0 %v1243
    %1295 = vmatpush.bf16.msra.mxu0 %v1242
    %1296 = vmatpush.bf16.msra.mxu0 %v1241
    %1297 = vmatmul.bf16.gmra.mxu0 %v1069
    %v1298 = vpop.f32.mrf.mxu0
    %v1299 = vadd.f32 0.0, %v1298
    %v1300 = vpop.f32.mrf.mxu0
    %v1301 = vadd.f32 0.0, %v1300
    %1302 = vmatmul.bf16.gmra.mxu0 %v1070
    %v1303 = vpop.f32.mrf.mxu0
    %v1304 = vadd.f32 0.0, %v1303
    %v1305 = vpop.f32.mrf.mxu0
    %v1306 = vadd.f32 0.0, %v1305
    %1307 = vdwg.mxu0
    %1308 = vmatpush.bf16.msra.mxu0 %v1256
    %1309 = vmatpush.bf16.msra.mxu0 %v1255
    %1310 = vmatpush.bf16.msra.mxu0 %v1254
    %1311 = vmatpush.bf16.msra.mxu0 %v1253
    %1312 = vmatpush.bf16.msra.mxu0 %v1252
    %1313 = vmatpush.bf16.msra.mxu0 %v1251
    %1314 = vmatpush.bf16.msra.mxu0 %v1250
    %1315 = vmatpush.bf16.msra.mxu0 %v1249
    %1316 = vmatmul.bf16.gmra.mxu0 %v1081
    %v1317 = vpop.f32.mrf.mxu0
    %v1318 = vadd.f32 %v1299, %v1317
    %v1319 = vpop.f32.mrf.mxu0
    %v1320 = vadd.f32 %v1301, %v1319
    %1321 = vmatmul.bf16.gmra.mxu0 %v1082
    %v1322 = vpop.f32.mrf.mxu0
    %v1323 = vadd.f32 %v1304, %v1322
    %v1324 = vpop.f32.mrf.mxu0
    %v1325 = vadd.f32 %v1306, %v1324
    %1326 = vdwg.mxu0
    %1327 = vmatpush.bf16.msra.mxu0 %v1264
    %1328 = vmatpush.bf16.msra.mxu0 %v1263
    %1329 = vmatpush.bf16.msra.mxu0 %v1262
    %1330 = vmatpush.bf16.msra.mxu0 %v1261
    %1331 = vmatpush.bf16.msra.mxu0 %v1260
    %1332 = vmatpush.bf16.msra.mxu0 %v1259
    %1333 = vmatpush.bf16.msra.mxu0 %v1258
    %1334 = vmatpush.bf16.msra.mxu0 %v1257
    %1335 = vmatmul.bf16.gmra.mxu0 %v1093
    %v1336 = vpop.f32.mrf.mxu0
    %v1337 = vadd.f32 %v1318, %v1336
    %v1338 = vpop.f32.mrf.mxu0
    %v1339 = vadd.f32 %v1320, %v1338
    %1340 = vmatmul.bf16.gmra.mxu0 %v1094
    %v1341 = vpop.f32.mrf.mxu0
    %v1342 = vadd.f32 %v1323, %v1341
    %v1343 = vpop.f32.mrf.mxu0
    %v1344 = vadd.f32 %v1325, %v1343
    %1345 = vdwg.mxu0
    %v1346 = vadd.f32 %v1337, %v1339
    %v1347 = vadd.f32 %v1346, %v1342
    %v1348 = vadd.f32 %v1347, %v1344
    %v1349 = vrot.slane %v1348, 4
    %v1350 = vadd.f32 %v1348, %v1349
    %v1351 = vrot.slane %v1350, 2
    %v1352 = vadd.f32 %v1350, %v1351
    %v1353 = vrot.slane %v1352, 1
    %v1354 = vadd.f32 %v1352, %v1353
    %v1355 = vmul.f32 %v1337, %v1337
    %v1356 = vmul.f32 %v1339, %v1339
    %v1357 = vmul.f32 %v1342, %v1342
    %v1358 = vmul.f32 %v1344, %v1344
    %v1359 = vadd.f32 %v1355, %v1356
    %v1360 = vadd.f32 %v1359, %v1357
    %v1361 = vadd.f32 %v1360, %v1358
    %v1362 = vrot.slane %v1361, 4
    %v1363 = vadd.f32 %v1361, %v1362
    %v1364 = vrot.slane %v1363, 2
    %v1365 = vadd.f32 %v1363, %v1364
    %v1366 = vrot.slane %v1365, 1
    %v1367 = vadd.f32 %v1365, %v1366
    %v1368 = vsel %vm472, %v1354, %v1367
    %v1369 = vld [vmem:[%s2] sm:$0xff]
    %v1370 = vld [vmem:[%s2 + $0x8] sm:$0xff]
    %v1371 = vld [vmem:[%s2 + $0x10] sm:$0xff]
    %v1372 = vld [vmem:[%s2 + $0x18] sm:$0xff]
    %v1373 = vld [vmem:[%s2 + $0x20] sm:$0xff]
    %v1374 = vld [vmem:[%s2 + $0x28] sm:$0xff]
    %v1375 = vld [vmem:[%s2 + $0x30] sm:$0xff]
    %v1376 = vld [vmem:[%s2 + $0x38] sm:$0xff]
    %v1377 = vld [vmem:[%s2 + $0x40] sm:$0xff]
    %v1378 = vld [vmem:[%s2 + $0x48] sm:$0xff]
    %v1379 = vld [vmem:[%s2 + $0x50] sm:$0xff]
    %v1380 = vld [vmem:[%s2 + $0x58] sm:$0xff]
    %v1381 = vld [vmem:[%s2 + $0x60] sm:$0xff]
    %v1382 = vld [vmem:[%s2 + $0x68] sm:$0xff]
    %v1383 = vld [vmem:[%s2 + $0x70] sm:$0xff]
    %v1384 = vld [vmem:[%s2 + $0x78] sm:$0xff]
    %1385 = vmatpush.msra.mxu0 %v1384
    %1386 = vmatpush.msra.mxu0 %v1383
    %1387 = vmatpush.msra.mxu0 %v1382
    %1388 = vmatpush.msra.mxu0 %v1381
    %1389 = vmatpush.msra.mxu0 %v1380
    %1390 = vmatpush.msra.mxu0 %v1379
    %1391 = vmatpush.msra.mxu0 %v1378
    %1392 = vmatpush.msra.mxu0 %v1377
    %1393 = vmatpush.msra.mxu0 %v1376
    %1394 = vmatpush.msra.mxu0 %v1375
    %1395 = vmatpush.msra.mxu0 %v1374
    %1396 = vmatpush.msra.mxu0 %v1373
    %1397 = vmatpush.msra.mxu0 %v1372
    %1398 = vmatpush.msra.mxu0 %v1371
    %1399 = vmatpush.msra.mxu0 %v1370
    %1400 = vmatpush.msra.mxu0 %v1369
    %1401 = vmatmul.f32.gmra.mxu0 %v1368
    %v1402 = vpop.f32.mrf.mxu0
    %v1403 = vadd.f32 0.0, %v1402
    %1404 = vdwg.mxu0
    %v1405 = vmul.f32 %v1403, %v516
    %v1406 = vmul.f32 %v1405, %v1405
    %v1408 = vrot.slane %v1406, 7
    %v1410 = vsub.f32 %v1405, %v1408
    %v1411 = vmax.f32 %v1410, 0.0
    %s1412 = scalar_lea.vmem [#allocation9], 2
    %v1413 = vld [vmem:[%s1412] sm:$0x1]
    %v1414 = vadd.f32 %v1411, 1e-05
    %v1415 = vrsqrt.pop %v1414
    %v1416 = vmul.f32 %v1415, %v1414
    %v1417 = vmul.f32 %v1416, %v1415
    %v1418 = vmul.f32 0.5, %v1417
    %v1419 = vsub.f32 1.5, %v1418
    %v1420 = vmul.f32 %v1415, %v1419
    %vm1421 = vweird.f32 %v1414
    %vm1422 = vweird.f32 %v1415
    %vm1423 = vmor %vm1421, %vm1422
    %v1424 = vsel %vm1423, %v1415, %v1420
    %1426 = vst [vmem:[#allocation1] sm:$0xff] %v1424
    %s1427 = scalar_lea.vmem [#allocation1], 1
    %v1428 = vld [vmem:[%s1427] ss:$9 sm:$0xff]
    %v1430 = vmul.f32 %v1413, %v1428
    %s1431 = scalar_lea.vmem [#allocation11], 2
    %v1432 = vld [vmem:[%s1431] sm:$0x1]
    %v1433 = vmul.f32 %v1405, %v1430
    %v1434 = vsub.f32 %v1432, %v1433
    %v1436 = vperm.slane %v1434, 0
    %v1438 = vsel %vm472, %v1430, %v1436
    %v1439 = vld [vmem:[#allocation8] sm:$0xff]
    %v1441 = vsel %vm550, %v1438, 0
    %1443 = vmatpush.msra.mxu0 0.0
    %1444 = vmatpush.msra.mxu0 0.0
    %1445 = vmatpush.msra.mxu0 0.0
    %1446 = vmatpush.msra.mxu0 0.0
    %1447 = vmatpush.msra.mxu0 0.0
    %1448 = vmatpush.msra.mxu0 0.0
    %1449 = vmatpush.msra.mxu0 0.0
    %1450 = vmatpush.msra.mxu0 0.0
    %1451 = vmatpush.msra.mxu0 0.0
    %1452 = vmatpush.msra.mxu0 0.0
    %1453 = vmatpush.msra.mxu0 0.0
    %1454 = vmatpush.msra.mxu0 0.0
    %1455 = vmatpush.msra.mxu0 0.0
    %1456 = vmatpush.msra.mxu0 0.0
    %1457 = vmatpush.msra.mxu0 0.0
    %1458 = vmatpush.msra.mxu0 %v1439
    %1459 = vmatmul.f32.gmra.mxu0 %v1441
    %v1460 = vpop.f32.mrf.mxu0
    %v1461 = vadd.f32 0.0, %v1460
    %1462 = vdwg.mxu0
    %v1463 = vperm.slane %v1461, 0
    %v1464 = vmul.f32 %v1337, %v1463
    %v1465 = vmul.f32 %v1339, %v1463
    %v1466 = vmul.f32 %v1342, %v1463
    %v1467 = vmul.f32 %v1344, %v1463
    %v1468 = vperm.slane %v1461, 1
    %v1469 = vadd.f32 %v1464, %v1468
    %v1470 = vadd.f32 %v1465, %v1468
    %v1471 = vadd.f32 %v1466, %v1468
    %v1472 = vadd.f32 %v1467, %v1468
    %v1473 = vmax.f32 %v1469, 0.0
    %v1474 = vmax.f32 %v1470, 0.0
    %v1475 = vmax.f32 %v1471, 0.0
    %v1476 = vmax.f32 %v1472, 0.0
    %s1477 = scalar_lea.vmem [#allocation2], 128
    %1478 = vst [vmem:[%s1477 + $0x8] sm:$0xff] %v1473
    %1479 = vst [vmem:[%s1477 + $0x10] sm:$0xff] %v1474
    %1480 = vst [vmem:[%s1477 + $0x28] sm:$0xff] %v1475
    %1481 = vst [vmem:[%s1477 + $0x30] sm:$0xff] %v1476
    %v1482 = vld [vmem:[%s1477 + $0x4] sm:$0xff]
    %v1483 = vld [vmem:[%s1477 + $0xc] sm:$0xff]
    %v1484 = vld [vmem:[%s1477 + $0x24] sm:$0xff]
    %v1485 = vld [vmem:[%s1477 + $0x2c] sm:$0xff]
    %v1486 = vpack.c.bf16 %v1482, %v1482
    %v1487 = vpack.c.bf16 %v1483, %v1483
    %v1488 = vpack.c.bf16 %v1484, %v1484
    %v1489 = vpack.c.bf16 %v1485, %v1485
    %v1490 = vld [vmem:[%s1477 + $0x8] sm:$0xff]
    %v1491 = vld [vmem:[%s1477 + $0x10] sm:$0xff]
    %v1492 = vld [vmem:[%s1477 + $0x28] sm:$0xff]
    %v1493 = vld [vmem:[%s1477 + $0x30] sm:$0xff]
    %v1494 = vpack.c.bf16 %v1490, %v1490
    %v1495 = vpack.c.bf16 %v1491, %v1491
    %v1496 = vpack.c.bf16 %v1492, %v1492
    %v1497 = vpack.c.bf16 %v1493, %v1493
    %v1498 = vld [vmem:[%s1477 + $0x14] sm:$0xff]
    %v1499 = vld [vmem:[%s1477 + $0x34] sm:$0xff]
    %v1500 = vpack.c.bf16 %v1498, %v1498
    %v1501 = vpack.c.bf16 %v1499, %v1499
    %v1506 = vunpack.c.l.b16 %v1486
    %v1507 = vunpack.c.l.b16 %v1487
    %v1508 = vunpack.c.l.b16 %v1488
    %v1509 = vunpack.c.l.b16 %v1489
    %v1510 = vpack.c.b16 %v1507, %v1506
    %v1511 = vpack.c.b16 %v1509, %v1508
    %v1518 = vunpack.c.l.b16 %v1494
    %v1519 = vunpack.c.l.b16 %v1495
    %v1520 = vunpack.c.l.b16 %v1496
    %v1521 = vunpack.c.l.b16 %v1497
    %v1522 = vpack.c.b16 %v1519, %v1518
    %v1523 = vpack.c.b16 %v1521, %v1520
    %v1528 = vunpack.c.l.b16 %v1500
    %v1529 = vunpack.c.l.b16 %v1501
    %v1530 = vpack.c.b16 %v1528, %v1507
    %v1531 = vpack.c.b16 %v1529, %v1509
    %v1534 = vld [vmem:[#allocation6 + $0x240] sm:$0xf]
    %v1535 = vld [vmem:[#allocation6 + $0x244] sm:$0xf]
    %v1536 = vld [vmem:[#allocation6 + $0x248] sm:$0xf]
    %v1537 = vld [vmem:[#allocation6 + $0x24c] sm:$0xf]
    %v1538 = vld [vmem:[#allocation6 + $0x250] sm:$0xf]
    %v1539 = vld [vmem:[#allocation6 + $0x254] sm:$0xf]
    %v1540 = vld [vmem:[#allocation6 + $0x258] sm:$0xf]
    %v1541 = vld [vmem:[#allocation6 + $0x25c] sm:$0xf]
    %v1542 = vld [vmem:[#allocation6 + $0x260] sm:$0xf]
    %v1543 = vld [vmem:[#allocation6 + $0x264] sm:$0xf]
    %v1544 = vld [vmem:[#allocation6 + $0x268] sm:$0xf]
    %v1545 = vld [vmem:[#allocation6 + $0x26c] sm:$0xf]
    %v1546 = vld [vmem:[#allocation6 + $0x270] sm:$0xf]
    %v1547 = vld [vmem:[#allocation6 + $0x274] sm:$0xf]
    %v1548 = vld [vmem:[#allocation6 + $0x278] sm:$0xf]
    %v1549 = vld [vmem:[#allocation6 + $0x27c] sm:$0xf]
    %v1550 = vld [vmem:[#allocation6 + $0x280] sm:$0xf]
    %v1551 = vld [vmem:[#allocation6 + $0x284] sm:$0xf]
    %v1552 = vld [vmem:[#allocation6 + $0x288] sm:$0xf]
    %v1553 = vld [vmem:[#allocation6 + $0x28c] sm:$0xf]
    %v1554 = vld [vmem:[#allocation6 + $0x290] sm:$0xf]
    %v1555 = vld [vmem:[#allocation6 + $0x294] sm:$0xf]
    %v1556 = vld [vmem:[#allocation6 + $0x298] sm:$0xf]
    %v1557 = vld [vmem:[#allocation6 + $0x29c] sm:$0xf]
    %v1558 = vld [vmem:[#allocation6 + $0x2a0] sm:$0xf]
    %v1559 = vld [vmem:[#allocation6 + $0x2a4] sm:$0xf]
    %v1560 = vld [vmem:[#allocation6 + $0x2a8] sm:$0xf]
    %v1561 = vld [vmem:[#allocation6 + $0x2ac] sm:$0xf]
    %v1562 = vld [vmem:[#allocation6 + $0x2b0] sm:$0xf]
    %v1563 = vld [vmem:[#allocation6 + $0x2b4] sm:$0xf]
    %v1564 = vld [vmem:[#allocation6 + $0x2b8] sm:$0xf]
    %v1565 = vld [vmem:[#allocation6 + $0x2bc] sm:$0xf]
    %v1566 = vld [vmem:[#allocation6 + $0x2c0] sm:$0xf]
    %v1567 = vld [vmem:[#allocation6 + $0x2c4] sm:$0xf]
    %v1568 = vld [vmem:[#allocation6 + $0x2c8] sm:$0xf]
    %v1569 = vld [vmem:[#allocation6 + $0x2cc] sm:$0xf]
    %v1570 = vld [vmem:[#allocation6 + $0x2d0] sm:$0xf]
    %v1571 = vld [vmem:[#allocation6 + $0x2d4] sm:$0xf]
    %v1572 = vld [vmem:[#allocation6 + $0x2d8] sm:$0xf]
    %v1573 = vld [vmem:[#allocation6 + $0x2dc] sm:$0xf]
    %v1574 = vld [vmem:[#allocation6 + $0x2e0] sm:$0xf]
    %v1575 = vld [vmem:[#allocation6 + $0x2e4] sm:$0xf]
    %v1576 = vld [vmem:[#allocation6 + $0x2e8] sm:$0xf]
    %v1577 = vld [vmem:[#allocation6 + $0x2ec] sm:$0xf]
    %v1578 = vld [vmem:[#allocation6 + $0x2f0] sm:$0xf]
    %v1579 = vld [vmem:[#allocation6 + $0x2f4] sm:$0xf]
    %v1580 = vld [vmem:[#allocation6 + $0x2f8] sm:$0xf]
    %v1581 = vld [vmem:[#allocation6 + $0x2fc] sm:$0xf]
    %v1630 = vunpack.c.l.b16 %v1534
    %v1631 = vunpack.c.l.b16 %v1535
    %v1632 = vunpack.c.l.b16 %v1536
    %v1633 = vunpack.c.l.b16 %v1537
    %v1634 = vunpack.c.l.b16 %v1538
    %v1635 = vunpack.c.l.b16 %v1539
    %v1636 = vunpack.c.l.b16 %v1540
    %v1637 = vunpack.c.l.b16 %v1541
    %v1638 = vunpack.c.l.b16 %v1542
    %v1639 = vunpack.c.l.b16 %v1543
    %v1640 = vunpack.c.l.b16 %v1544
    %v1641 = vunpack.c.l.b16 %v1545
    %v1642 = vunpack.c.l.b16 %v1546
    %v1643 = vunpack.c.l.b16 %v1547
    %v1644 = vunpack.c.l.b16 %v1548
    %v1645 = vunpack.c.l.b16 %v1549
    %v1646 = vunpack.c.l.b16 %v1550
    %v1647 = vunpack.c.l.b16 %v1551
    %v1648 = vunpack.c.l.b16 %v1552
    %v1649 = vunpack.c.l.b16 %v1553
    %v1650 = vunpack.c.l.b16 %v1554
    %v1651 = vunpack.c.l.b16 %v1555
    %v1652 = vunpack.c.l.b16 %v1556
    %v1653 = vunpack.c.l.b16 %v1557
    %v1654 = vunpack.c.l.b16 %v1558
    %v1655 = vunpack.c.l.b16 %v1559
    %v1656 = vunpack.c.l.b16 %v1560
    %v1657 = vunpack.c.l.b16 %v1561
    %v1658 = vunpack.c.l.b16 %v1562
    %v1659 = vunpack.c.l.b16 %v1563
    %v1660 = vunpack.c.l.b16 %v1564
    %v1661 = vunpack.c.l.b16 %v1565
    %v1662 = vunpack.c.l.b16 %v1566
    %v1663 = vunpack.c.l.b16 %v1567
    %v1664 = vunpack.c.l.b16 %v1568
    %v1665 = vunpack.c.l.b16 %v1569
    %v1666 = vunpack.c.l.b16 %v1570
    %v1667 = vunpack.c.l.b16 %v1571
    %v1668 = vunpack.c.l.b16 %v1572
    %v1669 = vunpack.c.l.b16 %v1573
    %v1670 = vunpack.c.l.b16 %v1574
    %v1671 = vunpack.c.l.b16 %v1575
    %v1672 = vunpack.c.l.b16 %v1576
    %v1673 = vunpack.c.l.b16 %v1577
    %v1674 = vunpack.c.l.b16 %v1578
    %v1675 = vunpack.c.l.b16 %v1579
    %v1676 = vunpack.c.l.b16 %v1580
    %v1677 = vunpack.c.l.b16 %v1581
    %v1678 = vpack.c.b16 %v1631, %v1630
    %v1679 = vpack.c.b16 %v1633, %v1632
    %v1680 = vpack.c.b16 %v1635, %v1634
    %v1681 = vpack.c.b16 %v1637, %v1636
    %v1682 = vpack.c.b16 %v1639, %v1638
    %v1683 = vpack.c.b16 %v1641, %v1640
    %v1684 = vpack.c.b16 %v1643, %v1642
    %v1685 = vpack.c.b16 %v1645, %v1644
    %v1686 = vpack.c.b16 %v1647, %v1646
    %v1687 = vpack.c.b16 %v1649, %v1648
    %v1688 = vpack.c.b16 %v1651, %v1650
    %v1689 = vpack.c.b16 %v1653, %v1652
    %v1690 = vpack.c.b16 %v1655, %v1654
    %v1691 = vpack.c.b16 %v1657, %v1656
    %v1692 = vpack.c.b16 %v1659, %v1658
    %v1693 = vpack.c.b16 %v1661, %v1660
    %v1694 = vpack.c.b16 %v1663, %v1662
    %v1695 = vpack.c.b16 %v1665, %v1664
    %v1696 = vpack.c.b16 %v1667, %v1666
    %v1697 = vpack.c.b16 %v1669, %v1668
    %v1698 = vpack.c.b16 %v1671, %v1670
    %v1699 = vpack.c.b16 %v1673, %v1672
    %v1700 = vpack.c.b16 %v1675, %v1674
    %v1701 = vpack.c.b16 %v1677, %v1676
    %1726 = vmatpush.bf16.msra.mxu0 %v1685
    %1727 = vmatpush.bf16.msra.mxu0 %v1684
    %1728 = vmatpush.bf16.msra.mxu0 %v1683
    %1729 = vmatpush.bf16.msra.mxu0 %v1682
    %1730 = vmatpush.bf16.msra.mxu0 %v1681
    %1731 = vmatpush.bf16.msra.mxu0 %v1680
    %1732 = vmatpush.bf16.msra.mxu0 %v1679
    %1733 = vmatpush.bf16.msra.mxu0 %v1678
    %1734 = vmatmul.bf16.gmra.mxu0 %v1510
    %v1735 = vpop.f32.mrf.mxu0
    %v1736 = vadd.f32 0.0, %v1735
    %v1737 = vpop.f32.mrf.mxu0
    %v1738 = vadd.f32 0.0, %v1737
    %1739 = vmatmul.bf16.gmra.mxu0 %v1511
    %v1740 = vpop.f32.mrf.mxu0
    %v1741 = vadd.f32 0.0, %v1740
    %v1742 = vpop.f32.mrf.mxu0
    %v1743 = vadd.f32 0.0, %v1742
    %1744 = vdwg.mxu0
    %1745 = vmatpush.bf16.msra.mxu0 %v1693
    %1746 = vmatpush.bf16.msra.mxu0 %v1692
    %1747 = vmatpush.bf16.msra.mxu0 %v1691
    %1748 = vmatpush.bf16.msra.mxu0 %v1690
    %1749 = vmatpush.bf16.msra.mxu0 %v1689
    %1750 = vmatpush.bf16.msra.mxu0 %v1688
    %1751 = vmatpush.bf16.msra.mxu0 %v1687
    %1752 = vmatpush.bf16.msra.mxu0 %v1686
    %1753 = vmatmul.bf16.gmra.mxu0 %v1522
    %v1754 = vpop.f32.mrf.mxu0
    %v1755 = vadd.f32 %v1736, %v1754
    %v1756 = vpop.f32.mrf.mxu0
    %v1757 = vadd.f32 %v1738, %v1756
    %1758 = vmatmul.bf16.gmra.mxu0 %v1523
    %v1759 = vpop.f32.mrf.mxu0
    %v1760 = vadd.f32 %v1741, %v1759
    %v1761 = vpop.f32.mrf.mxu0
    %v1762 = vadd.f32 %v1743, %v1761
    %1763 = vdwg.mxu0
    %1764 = vmatpush.bf16.msra.mxu0 %v1701
    %1765 = vmatpush.bf16.msra.mxu0 %v1700
    %1766 = vmatpush.bf16.msra.mxu0 %v1699
    %1767 = vmatpush.bf16.msra.mxu0 %v1698
    %1768 = vmatpush.bf16.msra.mxu0 %v1697
    %1769 = vmatpush.bf16.msra.mxu0 %v1696
    %1770 = vmatpush.bf16.msra.mxu0 %v1695
    %1771 = vmatpush.bf16.msra.mxu0 %v1694
    %1772 = vmatmul.bf16.gmra.mxu0 %v1530
    %v1773 = vpop.f32.mrf.mxu0
    %v1774 = vadd.f32 %v1755, %v1773
    %v1775 = vpop.f32.mrf.mxu0
    %v1776 = vadd.f32 %v1757, %v1775
    %1777 = vmatmul.bf16.gmra.mxu0 %v1531
    %v1778 = vpop.f32.mrf.mxu0
    %v1779 = vadd.f32 %v1760, %v1778
    %v1780 = vpop.f32.mrf.mxu0
    %v1781 = vadd.f32 %v1762, %v1780
    %1782 = vdwg.mxu0
    %v1783 = vadd.f32 %v1774, %v1776
    %v1784 = vadd.f32 %v1783, %v1779
    %v1785 = vadd.f32 %v1784, %v1781
    %v1786 = vrot.slane %v1785, 4
    %v1787 = vadd.f32 %v1785, %v1786
    %v1788 = vrot.slane %v1787, 2
    %v1789 = vadd.f32 %v1787, %v1788
    %v1790 = vrot.slane %v1789, 1
    %v1791 = vadd.f32 %v1789, %v1790
    %v1792 = vmul.f32 %v1774, %v1774
    %v1793 = vmul.f32 %v1776, %v1776
    %v1794 = vmul.f32 %v1779, %v1779
    %v1795 = vmul.f32 %v1781, %v1781
    %v1796 = vadd.f32 %v1792, %v1793
    %v1797 = vadd.f32 %v1796, %v1794
    %v1798 = vadd.f32 %v1797, %v1795
    %v1799 = vrot.slane %v1798, 4
    %v1800 = vadd.f32 %v1798, %v1799
    %v1801 = vrot.slane %v1800, 2
    %v1802 = vadd.f32 %v1800, %v1801
    %v1803 = vrot.slane %v1802, 1
    %v1804 = vadd.f32 %v1802, %v1803
    %v1805 = vsel %vm472, %v1791, %v1804
    %v1806 = vld [vmem:[%s2] sm:$0xff]
    %v1807 = vld [vmem:[%s2 + $0x8] sm:$0xff]
    %v1808 = vld [vmem:[%s2 + $0x10] sm:$0xff]
    %v1809 = vld [vmem:[%s2 + $0x18] sm:$0xff]
    %v1810 = vld [vmem:[%s2 + $0x20] sm:$0xff]
    %v1811 = vld [vmem:[%s2 + $0x28] sm:$0xff]
    %v1812 = vld [vmem:[%s2 + $0x30] sm:$0xff]
    %v1813 = vld [vmem:[%s2 + $0x38] sm:$0xff]
    %v1814 = vld [vmem:[%s2 + $0x40] sm:$0xff]
    %v1815 = vld [vmem:[%s2 + $0x48] sm:$0xff]
    %v1816 = vld [vmem:[%s2 + $0x50] sm:$0xff]
    %v1817 = vld [vmem:[%s2 + $0x58] sm:$0xff]
    %v1818 = vld [vmem:[%s2 + $0x60] sm:$0xff]
    %v1819 = vld [vmem:[%s2 + $0x68] sm:$0xff]
    %v1820 = vld [vmem:[%s2 + $0x70] sm:$0xff]
    %v1821 = vld [vmem:[%s2 + $0x78] sm:$0xff]
    %1822 = vmatpush.msra.mxu0 %v1821
    %1823 = vmatpush.msra.mxu0 %v1820
    %1824 = vmatpush.msra.mxu0 %v1819
    %1825 = vmatpush.msra.mxu0 %v1818
    %1826 = vmatpush.msra.mxu0 %v1817
    %1827 = vmatpush.msra.mxu0 %v1816
    %1828 = vmatpush.msra.mxu0 %v1815
    %1829 = vmatpush.msra.mxu0 %v1814
    %1830 = vmatpush.msra.mxu0 %v1813
    %1831 = vmatpush.msra.mxu0 %v1812
    %1832 = vmatpush.msra.mxu0 %v1811
    %1833 = vmatpush.msra.mxu0 %v1810
    %1834 = vmatpush.msra.mxu0 %v1809
    %1835 = vmatpush.msra.mxu0 %v1808
    %1836 = vmatpush.msra.mxu0 %v1807
    %1837 = vmatpush.msra.mxu0 %v1806
    %1838 = vmatmul.f32.gmra.mxu0 %v1805
    %v1839 = vpop.f32.mrf.mxu0
    %v1840 = vadd.f32 0.0, %v1839
    %1841 = vdwg.mxu0
    %v1842 = vmul.f32 %v1840, %v516
    %v1843 = vmul.f32 %v1842, %v1842
    %v1845 = vrot.slane %v1843, 7
    %v1847 = vsub.f32 %v1842, %v1845
    %v1848 = vmax.f32 %v1847, 0.0
    %s1849 = scalar_lea.vmem [#allocation9], 3
    %v1850 = vld [vmem:[%s1849] sm:$0x1]
    %v1851 = vadd.f32 %v1848, 1e-05
    %v1852 = vrsqrt.pop %v1851
    %v1853 = vmul.f32 %v1852, %v1851
    %v1854 = vmul.f32 %v1853, %v1852
    %v1855 = vmul.f32 0.5, %v1854
    %v1856 = vsub.f32 1.5, %v1855
    %v1857 = vmul.f32 %v1852, %v1856
    %vm1858 = vweird.f32 %v1851
    %vm1859 = vweird.f32 %v1852
    %vm1860 = vmor %vm1858, %vm1859
    %v1861 = vsel %vm1860, %v1852, %v1857
    %1863 = vst [vmem:[#allocation1] sm:$0xff] %v1861
    %s1864 = scalar_lea.vmem [#allocation1], 1
    %v1865 = vld [vmem:[%s1864] ss:$9 sm:$0xff]
    %v1867 = vmul.f32 %v1850, %v1865
    %s1868 = scalar_lea.vmem [#allocation11], 3
    %v1869 = vld [vmem:[%s1868] sm:$0x1]
    %v1870 = vmul.f32 %v1842, %v1867
    %v1871 = vsub.f32 %v1869, %v1870
    %v1873 = vperm.slane %v1871, 0
    %v1875 = vsel %vm472, %v1867, %v1873
    %v1876 = vld [vmem:[#allocation8] sm:$0xff]
    %v1878 = vsel %vm550, %v1875, 0
    %1880 = vmatpush.msra.mxu0 0.0
    %1881 = vmatpush.msra.mxu0 0.0
    %1882 = vmatpush.msra.mxu0 0.0
    %1883 = vmatpush.msra.mxu0 0.0
    %1884 = vmatpush.msra.mxu0 0.0
    %1885 = vmatpush.msra.mxu0 0.0
    %1886 = vmatpush.msra.mxu0 0.0
    %1887 = vmatpush.msra.mxu0 0.0
    %1888 = vmatpush.msra.mxu0 0.0
    %1889 = vmatpush.msra.mxu0 0.0
    %1890 = vmatpush.msra.mxu0 0.0
    %1891 = vmatpush.msra.mxu0 0.0
    %1892 = vmatpush.msra.mxu0 0.0
    %1893 = vmatpush.msra.mxu0 0.0
    %1894 = vmatpush.msra.mxu0 0.0
    %1895 = vmatpush.msra.mxu0 %v1876
    %1896 = vmatmul.f32.gmra.mxu0 %v1878
    %v1897 = vpop.f32.mrf.mxu0
    %v1898 = vadd.f32 0.0, %v1897
    %1899 = vdwg.mxu0
    %v1900 = vperm.slane %v1898, 0
    %v1901 = vmul.f32 %v1774, %v1900
    %v1902 = vmul.f32 %v1776, %v1900
    %v1903 = vmul.f32 %v1779, %v1900
    %v1904 = vmul.f32 %v1781, %v1900
    %v1905 = vperm.slane %v1898, 1
    %v1906 = vadd.f32 %v1901, %v1905
    %v1907 = vadd.f32 %v1902, %v1905
    %v1908 = vadd.f32 %v1903, %v1905
    %v1909 = vadd.f32 %v1904, %v1905
    %v1910 = vmax.f32 %v1906, 0.0
    %v1911 = vmax.f32 %v1907, 0.0
    %v1912 = vmax.f32 %v1908, 0.0
    %v1913 = vmax.f32 %v1909, 0.0
    %s1914 = scalar_lea.vmem [#allocation2], 192
    %1915 = vst [vmem:[%s1914 + $0x8] sm:$0xff] %v1910
    %1916 = vst [vmem:[%s1914 + $0x10] sm:$0xff] %v1911
    %1917 = vst [vmem:[%s1914 + $0x28] sm:$0xff] %v1912
    %1918 = vst [vmem:[%s1914 + $0x30] sm:$0xff] %v1913
    %v1919 = vld [vmem:[%s1914] sm:$0xff]
    %v1920 = vld [vmem:[%s1914 + $0x8] sm:$0xff]
    %v1921 = vld [vmem:[%s1914 + $0x20] sm:$0xff]
    %v1922 = vld [vmem:[%s1914 + $0x28] sm:$0xff]
    %v1923 = vpack.c.bf16 %v1919, %v1919
    %v1924 = vpack.c.bf16 %v1920, %v1920
    %v1925 = vpack.c.bf16 %v1921, %v1921
    %v1926 = vpack.c.bf16 %v1922, %v1922
    %v1927 = vld [vmem:[%s1914 + $0x10] sm:$0xff]
    %v1928 = vld [vmem:[%s1914 + $0x30] sm:$0xff]
    %v1929 = vpack.c.bf16 %v1927, %v1927
    %v1930 = vpack.c.bf16 %v1928, %v1928
    %v1931 = vld [vmem:[%s1914 + $0x18] sm:$0xff]
    %v1932 = vld [vmem:[%s1914 + $0x38] sm:$0xff]
    %v1933 = vpack.c.bf16 %v1931, %v1931
    %v1934 = vpack.c.bf16 %v1932, %v1932
    %v1939 = vunpack.c.l.b16 %v1923
    %v1940 = vunpack.c.l.b16 %v1924
    %v1941 = vunpack.c.l.b16 %v1925
    %v1942 = vunpack.c.l.b16 %v1926
    %v1943 = vpack.c.b16 %v1940, %v1939
    %v1944 = vpack.c.b16 %v1942, %v1941
    %v1949 = vunpack.c.l.b16 %v1929
    %v1950 = vunpack.c.l.b16 %v1930
    %v1951 = vpack.c.b16 %v1949, %v1940
    %v1952 = vpack.c.b16 %v1950, %v1942
    %v1957 = vunpack.c.l.b16 %v1933
    %v1958 = vunpack.c.l.b16 %v1934
    %v1959 = vpack.c.b16 %v1957, %v1949
    %v1960 = vpack.c.b16 %v1958, %v1950
    %v1963 = vld [vmem:[#allocation6 + $0x300] sm:$0xf]
    %v1964 = vld [vmem:[#allocation6 + $0x304] sm:$0xf]
    %v1965 = vld [vmem:[#allocation6 + $0x308] sm:$0xf]
    %v1966 = vld [vmem:[#allocation6 + $0x30c] sm:$0xf]
    %v1967 = vld [vmem:[#allocation6 + $0x310] sm:$0xf]
    %v1968 = vld [vmem:[#allocation6 + $0x314] sm:$0xf]
    %v1969 = vld [vmem:[#allocation6 + $0x318] sm:$0xf]
    %v1970 = vld [vmem:[#allocation6 + $0x31c] sm:$0xf]
    %v1971 = vld [vmem:[#allocation6 + $0x320] sm:$0xf]
    %v1972 = vld [vmem:[#allocation6 + $0x324] sm:$0xf]
    %v1973 = vld [vmem:[#allocation6 + $0x328] sm:$0xf]
    %v1974 = vld [vmem:[#allocation6 + $0x32c] sm:$0xf]
    %v1975 = vld [vmem:[#allocation6 + $0x330] sm:$0xf]
    %v1976 = vld [vmem:[#allocation6 + $0x334] sm:$0xf]
    %v1977 = vld [vmem:[#allocation6 + $0x338] sm:$0xf]
    %v1978 = vld [vmem:[#allocation6 + $0x33c] sm:$0xf]
    %v1979 = vld [vmem:[#allocation6 + $0x340] sm:$0xf]
    %v1980 = vld [vmem:[#allocation6 + $0x344] sm:$0xf]
    %v1981 = vld [vmem:[#allocation6 + $0x348] sm:$0xf]
    %v1982 = vld [vmem:[#allocation6 + $0x34c] sm:$0xf]
    %v1983 = vld [vmem:[#allocation6 + $0x350] sm:$0xf]
    %v1984 = vld [vmem:[#allocation6 + $0x354] sm:$0xf]
    %v1985 = vld [vmem:[#allocation6 + $0x358] sm:$0xf]
    %v1986 = vld [vmem:[#allocation6 + $0x35c] sm:$0xf]
    %v1987 = vld [vmem:[#allocation6 + $0x360] sm:$0xf]
    %v1988 = vld [vmem:[#allocation6 + $0x364] sm:$0xf]
    %v1989 = vld [vmem:[#allocation6 + $0x368] sm:$0xf]
    %v1990 = vld [vmem:[#allocation6 + $0x36c] sm:$0xf]
    %v1991 = vld [vmem:[#allocation6 + $0x370] sm:$0xf]
    %v1992 = vld [vmem:[#allocation6 + $0x374] sm:$0xf]
    %v1993 = vld [vmem:[#allocation6 + $0x378] sm:$0xf]
    %v1994 = vld [vmem:[#allocation6 + $0x37c] sm:$0xf]
    %v1995 = vld [vmem:[#allocation6 + $0x380] sm:$0xf]
    %v1996 = vld [vmem:[#allocation6 + $0x384] sm:$0xf]
    %v1997 = vld [vmem:[#allocation6 + $0x388] sm:$0xf]
    %v1998 = vld [vmem:[#allocation6 + $0x38c] sm:$0xf]
    %v1999 = vld [vmem:[#allocation6 + $0x390] sm:$0xf]
    %v2000 = vld [vmem:[#allocation6 + $0x394] sm:$0xf]
    %v2001 = vld [vmem:[#allocation6 + $0x398] sm:$0xf]
    %v2002 = vld [vmem:[#allocation6 + $0x39c] sm:$0xf]
    %v2003 = vld [vmem:[#allocation6 + $0x3a0] sm:$0xf]
    %v2004 = vld [vmem:[#allocation6 + $0x3a4] sm:$0xf]
    %v2005 = vld [vmem:[#allocation6 + $0x3a8] sm:$0xf]
    %v2006 = vld [vmem:[#allocation6 + $0x3ac] sm:$0xf]
    %v2007 = vld [vmem:[#allocation6 + $0x3b0] sm:$0xf]
    %v2008 = vld [vmem:[#allocation6 + $0x3b4] sm:$0xf]
    %v2009 = vld [vmem:[#allocation6 + $0x3b8] sm:$0xf]
    %v2010 = vld [vmem:[#allocation6 + $0x3bc] sm:$0xf]
    %v2059 = vunpack.c.l.b16 %v1963
    %v2060 = vunpack.c.l.b16 %v1964
    %v2061 = vunpack.c.l.b16 %v1965
    %v2062 = vunpack.c.l.b16 %v1966
    %v2063 = vunpack.c.l.b16 %v1967
    %v2064 = vunpack.c.l.b16 %v1968
    %v2065 = vunpack.c.l.b16 %v1969
    %v2066 = vunpack.c.l.b16 %v1970
    %v2067 = vunpack.c.l.b16 %v1971
    %v2068 = vunpack.c.l.b16 %v1972
    %v2069 = vunpack.c.l.b16 %v1973
    %v2070 = vunpack.c.l.b16 %v1974
    %v2071 = vunpack.c.l.b16 %v1975
    %v2072 = vunpack.c.l.b16 %v1976
    %v2073 = vunpack.c.l.b16 %v1977
    %v2074 = vunpack.c.l.b16 %v1978
    %v2075 = vunpack.c.l.b16 %v1979
    %v2076 = vunpack.c.l.b16 %v1980
    %v2077 = vunpack.c.l.b16 %v1981
    %v2078 = vunpack.c.l.b16 %v1982
    %v2079 = vunpack.c.l.b16 %v1983
    %v2080 = vunpack.c.l.b16 %v1984
    %v2081 = vunpack.c.l.b16 %v1985
    %v2082 = vunpack.c.l.b16 %v1986
    %v2083 = vunpack.c.l.b16 %v1987
    %v2084 = vunpack.c.l.b16 %v1988
    %v2085 = vunpack.c.l.b16 %v1989
    %v2086 = vunpack.c.l.b16 %v1990
    %v2087 = vunpack.c.l.b16 %v1991
    %v2088 = vunpack.c.l.b16 %v1992
    %v2089 = vunpack.c.l.b16 %v1993
    %v2090 = vunpack.c.l.b16 %v1994
    %v2091 = vunpack.c.l.b16 %v1995
    %v2092 = vunpack.c.l.b16 %v1996
    %v2093 = vunpack.c.l.b16 %v1997
    %v2094 = vunpack.c.l.b16 %v1998
    %v2095 = vunpack.c.l.b16 %v1999
    %v2096 = vunpack.c.l.b16 %v2000
    %v2097 = vunpack.c.l.b16 %v2001
    %v2098 = vunpack.c.l.b16 %v2002
    %v2099 = vunpack.c.l.b16 %v2003
    %v2100 = vunpack.c.l.b16 %v2004
    %v2101 = vunpack.c.l.b16 %v2005
    %v2102 = vunpack.c.l.b16 %v2006
    %v2103 = vunpack.c.l.b16 %v2007
    %v2104 = vunpack.c.l.b16 %v2008
    %v2105 = vunpack.c.l.b16 %v2009
    %v2106 = vunpack.c.l.b16 %v2010
    %v2107 = vpack.c.b16 %v2060, %v2059
    %v2108 = vpack.c.b16 %v2062, %v2061
    %v2109 = vpack.c.b16 %v2064, %v2063
    %v2110 = vpack.c.b16 %v2066, %v2065
    %v2111 = vpack.c.b16 %v2068, %v2067
    %v2112 = vpack.c.b16 %v2070, %v2069
    %v2113 = vpack.c.b16 %v2072, %v2071
    %v2114 = vpack.c.b16 %v2074, %v2073
    %v2115 = vpack.c.b16 %v2076, %v2075
    %v2116 = vpack.c.b16 %v2078, %v2077
    %v2117 = vpack.c.b16 %v2080, %v2079
    %v2118 = vpack.c.b16 %v2082, %v2081
    %v2119 = vpack.c.b16 %v2084, %v2083
    %v2120 = vpack.c.b16 %v2086, %v2085
    %v2121 = vpack.c.b16 %v2088, %v2087
    %v2122 = vpack.c.b16 %v2090, %v2089
    %v2123 = vpack.c.b16 %v2092, %v2091
    %v2124 = vpack.c.b16 %v2094, %v2093
    %v2125 = vpack.c.b16 %v2096, %v2095
    %v2126 = vpack.c.b16 %v2098, %v2097
    %v2127 = vpack.c.b16 %v2100, %v2099
    %v2128 = vpack.c.b16 %v2102, %v2101
    %v2129 = vpack.c.b16 %v2104, %v2103
    %v2130 = vpack.c.b16 %v2106, %v2105
    %2155 = vmatpush.bf16.msra.mxu0 %v2114
    %2156 = vmatpush.bf16.msra.mxu0 %v2113
    %2157 = vmatpush.bf16.msra.mxu0 %v2112
    %2158 = vmatpush.bf16.msra.mxu0 %v2111
    %2159 = vmatpush.bf16.msra.mxu0 %v2110
    %2160 = vmatpush.bf16.msra.mxu0 %v2109
    %2161 = vmatpush.bf16.msra.mxu0 %v2108
    %2162 = vmatpush.bf16.msra.mxu0 %v2107
    %2163 = vmatmul.bf16.gmra.mxu0 %v1943
    %v2164 = vpop.f32.mrf.mxu0
    %v2165 = vadd.f32 0.0, %v2164
    %v2166 = vpop.f32.mrf.mxu0
    %v2167 = vadd.f32 0.0, %v2166
    %2168 = vmatmul.bf16.gmra.mxu0 %v1944
    %v2169 = vpop.f32.mrf.mxu0
    %v2170 = vadd.f32 0.0, %v2169
    %v2171 = vpop.f32.mrf.mxu0
    %v2172 = vadd.f32 0.0, %v2171
    %2173 = vdwg.mxu0
    %2174 = vmatpush.bf16.msra.mxu0 %v2122
    %2175 = vmatpush.bf16.msra.mxu0 %v2121
    %2176 = vmatpush.bf16.msra.mxu0 %v2120
    %2177 = vmatpush.bf16.msra.mxu0 %v2119
    %2178 = vmatpush.bf16.msra.mxu0 %v2118
    %2179 = vmatpush.bf16.msra.mxu0 %v2117
    %2180 = vmatpush.bf16.msra.mxu0 %v2116
    %2181 = vmatpush.bf16.msra.mxu0 %v2115
    %2182 = vmatmul.bf16.gmra.mxu0 %v1951
    %v2183 = vpop.f32.mrf.mxu0
    %v2184 = vadd.f32 %v2165, %v2183
    %v2185 = vpop.f32.mrf.mxu0
    %v2186 = vadd.f32 %v2167, %v2185
    %2187 = vmatmul.bf16.gmra.mxu0 %v1952
    %v2188 = vpop.f32.mrf.mxu0
    %v2189 = vadd.f32 %v2170, %v2188
    %v2190 = vpop.f32.mrf.mxu0
    %v2191 = vadd.f32 %v2172, %v2190
    %2192 = vdwg.mxu0
    %2193 = vmatpush.bf16.msra.mxu0 %v2130
    %2194 = vmatpush.bf16.msra.mxu0 %v2129
    %2195 = vmatpush.bf16.msra.mxu0 %v2128
    %2196 = vmatpush.bf16.msra.mxu0 %v2127
    %2197 = vmatpush.bf16.msra.mxu0 %v2126
    %2198 = vmatpush.bf16.msra.mxu0 %v2125
    %2199 = vmatpush.bf16.msra.mxu0 %v2124
    %2200 = vmatpush.bf16.msra.mxu0 %v2123
    %2201 = vmatmul.bf16.gmra.mxu0 %v1959
    %v2202 = vpop.f32.mrf.mxu0
    %v2203 = vadd.f32 %v2184, %v2202
    %v2204 = vpop.f32.mrf.mxu0
    %v2205 = vadd.f32 %v2186, %v2204
    %2206 = vmatmul.bf16.gmra.mxu0 %v1960
    %v2207 = vpop.f32.mrf.mxu0
    %v2208 = vadd.f32 %v2189, %v2207
    %v2209 = vpop.f32.mrf.mxu0
    %v2210 = vadd.f32 %v2191, %v2209
    %2211 = vdwg.mxu0
    %v2212 = vadd.f32 %v2203, %v2205
    %v2213 = vadd.f32 %v2212, %v2208
    %v2214 = vadd.f32 %v2213, %v2210
    %v2215 = vrot.slane %v2214, 4
    %v2216 = vadd.f32 %v2214, %v2215
    %v2217 = vrot.slane %v2216, 2
    %v2218 = vadd.f32 %v2216, %v2217
    %v2219 = vrot.slane %v2218, 1
    %v2220 = vadd.f32 %v2218, %v2219
    %v2221 = vmul.f32 %v2203, %v2203
    %v2222 = vmul.f32 %v2205, %v2205
    %v2223 = vmul.f32 %v2208, %v2208
    %v2224 = vmul.f32 %v2210, %v2210
    %v2225 = vadd.f32 %v2221, %v2222
    %v2226 = vadd.f32 %v2225, %v2223
    %v2227 = vadd.f32 %v2226, %v2224
    %v2228 = vrot.slane %v2227, 4
    %v2229 = vadd.f32 %v2227, %v2228
    %v2230 = vrot.slane %v2229, 2
    %v2231 = vadd.f32 %v2229, %v2230
    %v2232 = vrot.slane %v2231, 1
    %v2233 = vadd.f32 %v2231, %v2232
    %v2234 = vsel %vm472, %v2220, %v2233
    %v2235 = vld [vmem:[%s2] sm:$0xff]
    %v2236 = vld [vmem:[%s2 + $0x8] sm:$0xff]
    %v2237 = vld [vmem:[%s2 + $0x10] sm:$0xff]
    %v2238 = vld [vmem:[%s2 + $0x18] sm:$0xff]
    %v2239 = vld [vmem:[%s2 + $0x20] sm:$0xff]
    %v2240 = vld [vmem:[%s2 + $0x28] sm:$0xff]
    %v2241 = vld [vmem:[%s2 + $0x30] sm:$0xff]
    %v2242 = vld [vmem:[%s2 + $0x38] sm:$0xff]
    %v2243 = vld [vmem:[%s2 + $0x40] sm:$0xff]
    %v2244 = vld [vmem:[%s2 + $0x48] sm:$0xff]
    %v2245 = vld [vmem:[%s2 + $0x50] sm:$0xff]
    %v2246 = vld [vmem:[%s2 + $0x58] sm:$0xff]
    %v2247 = vld [vmem:[%s2 + $0x60] sm:$0xff]
    %v2248 = vld [vmem:[%s2 + $0x68] sm:$0xff]
    %v2249 = vld [vmem:[%s2 + $0x70] sm:$0xff]
    %v2250 = vld [vmem:[%s2 + $0x78] sm:$0xff]
    %2251 = vmatpush.msra.mxu0 %v2250
    %2252 = vmatpush.msra.mxu0 %v2249
    %2253 = vmatpush.msra.mxu0 %v2248
    %2254 = vmatpush.msra.mxu0 %v2247
    %2255 = vmatpush.msra.mxu0 %v2246
    %2256 = vmatpush.msra.mxu0 %v2245
    %2257 = vmatpush.msra.mxu0 %v2244
    %2258 = vmatpush.msra.mxu0 %v2243
    %2259 = vmatpush.msra.mxu0 %v2242
    %2260 = vmatpush.msra.mxu0 %v2241
    %2261 = vmatpush.msra.mxu0 %v2240
    %2262 = vmatpush.msra.mxu0 %v2239
    %2263 = vmatpush.msra.mxu0 %v2238
    %2264 = vmatpush.msra.mxu0 %v2237
    %2265 = vmatpush.msra.mxu0 %v2236
    %2266 = vmatpush.msra.mxu0 %v2235
    %2267 = vmatmul.f32.gmra.mxu0 %v2234
    %v2268 = vpop.f32.mrf.mxu0
    %v2269 = vadd.f32 0.0, %v2268
    %2270 = vdwg.mxu0
    %v2271 = vmul.f32 %v2269, %v516
    %v2272 = vmul.f32 %v2271, %v2271
    %v2274 = vrot.slane %v2272, 7
    %v2276 = vsub.f32 %v2271, %v2274
    %v2277 = vmax.f32 %v2276, 0.0
    %s2278 = scalar_lea.vmem [#allocation9], 4
    %v2279 = vld [vmem:[%s2278] sm:$0x1]
    %v2280 = vadd.f32 %v2277, 1e-05
    %v2281 = vrsqrt.pop %v2280
    %v2282 = vmul.f32 %v2281, %v2280
    %v2283 = vmul.f32 %v2282, %v2281
    %v2284 = vmul.f32 0.5, %v2283
    %v2285 = vsub.f32 1.5, %v2284
    %v2286 = vmul.f32 %v2281, %v2285
    %vm2287 = vweird.f32 %v2280
    %vm2288 = vweird.f32 %v2281
    %vm2289 = vmor %vm2287, %vm2288
    %v2290 = vsel %vm2289, %v2281, %v2286
    %2292 = vst [vmem:[#allocation1] sm:$0xff] %v2290
    %s2293 = scalar_lea.vmem [#allocation1], 1
    %v2294 = vld [vmem:[%s2293] ss:$9 sm:$0xff]
    %v2296 = vmul.f32 %v2279, %v2294
    %s2297 = scalar_lea.vmem [#allocation11], 4
    %v2298 = vld [vmem:[%s2297] sm:$0x1]
    %v2299 = vmul.f32 %v2271, %v2296
    %v2300 = vsub.f32 %v2298, %v2299
    %v2302 = vperm.slane %v2300, 0
    %v2304 = vsel %vm472, %v2296, %v2302
    %v2305 = vld [vmem:[#allocation8] sm:$0xff]
    %v2307 = vsel %vm550, %v2304, 0
    %2309 = vmatpush.msra.mxu0 0.0
    %2310 = vmatpush.msra.mxu0 0.0
    %2311 = vmatpush.msra.mxu0 0.0
    %2312 = vmatpush.msra.mxu0 0.0
    %2313 = vmatpush.msra.mxu0 0.0
    %2314 = vmatpush.msra.mxu0 0.0
    %2315 = vmatpush.msra.mxu0 0.0
    %2316 = vmatpush.msra.mxu0 0.0
    %2317 = vmatpush.msra.mxu0 0.0
    %2318 = vmatpush.msra.mxu0 0.0
    %2319 = vmatpush.msra.mxu0 0.0
    %2320 = vmatpush.msra.mxu0 0.0
    %2321 = vmatpush.msra.mxu0 0.0
    %2322 = vmatpush.msra.mxu0 0.0
    %2323 = vmatpush.msra.mxu0 0.0
    %2324 = vmatpush.msra.mxu0 %v2305
    %2325 = vmatmul.f32.gmra.mxu0 %v2307
    %v2326 = vpop.f32.mrf.mxu0
    %v2327 = vadd.f32 0.0, %v2326
    %2328 = vdwg.mxu0
    %v2329 = vperm.slane %v2327, 0
    %v2330 = vmul.f32 %v2203, %v2329
    %v2331 = vmul.f32 %v2205, %v2329
    %v2332 = vmul.f32 %v2208, %v2329
    %v2333 = vmul.f32 %v2210, %v2329
    %v2334 = vperm.slane %v2327, 1
    %v2335 = vadd.f32 %v2330, %v2334
    %v2336 = vadd.f32 %v2331, %v2334
    %v2337 = vadd.f32 %v2332, %v2334
    %v2338 = vadd.f32 %v2333, %v2334
    %v2339 = vmax.f32 %v2335, 0.0
    %v2340 = vmax.f32 %v2336, 0.0
    %v2341 = vmax.f32 %v2337, 0.0
    %v2342 = vmax.f32 %v2338, 0.0
    %s2343 = scalar_lea.vmem [#allocation2], 256
    %2344 = vst [vmem:[%s2343 + $0x8] sm:$0xff] %v2339
    %2345 = vst [vmem:[%s2343 + $0x10] sm:$0xff] %v2340
    %2346 = vst [vmem:[%s2343 + $0x28] sm:$0xff] %v2341
    %2347 = vst [vmem:[%s2343 + $0x30] sm:$0xff] %v2342
    %v2348 = vld [vmem:[%s2343 + $0x4] sm:$0xff]
    %v2349 = vld [vmem:[%s2343 + $0xc] sm:$0xff]
    %v2350 = vld [vmem:[%s2343 + $0x24] sm:$0xff]
    %v2351 = vld [vmem:[%s2343 + $0x2c] sm:$0xff]
    %v2352 = vpack.c.bf16 %v2348, %v2348
    %v2353 = vpack.c.bf16 %v2349, %v2349
    %v2354 = vpack.c.bf16 %v2350, %v2350
    %v2355 = vpack.c.bf16 %v2351, %v2351
    %v2356 = vld [vmem:[%s2343 + $0x8] sm:$0xff]
    %v2357 = vld [vmem:[%s2343 + $0x10] sm:$0xff]
    %v2358 = vld [vmem:[%s2343 + $0x28] sm:$0xff]
    %v2359 = vld [vmem:[%s2343 + $0x30] sm:$0xff]
    %v2360 = vpack.c.bf16 %v2356, %v2356
    %v2361 = vpack.c.bf16 %v2357, %v2357
    %v2362 = vpack.c.bf16 %v2358, %v2358
    %v2363 = vpack.c.bf16 %v2359, %v2359
    %v2364 = vld [vmem:[%s2343 + $0x14] sm:$0xff]
    %v2365 = vld [vmem:[%s2343 + $0x34] sm:$0xff]
    %v2366 = vpack.c.bf16 %v2364, %v2364
    %v2367 = vpack.c.bf16 %v2365, %v2365
    %v2368 = vld [vmem:[%s1914 + $0x4] sm:$0xff]
    %v2369 = vld [vmem:[%s1914 + $0xc] sm:$0xff]
    %v2370 = vld [vmem:[%s1914 + $0x24] sm:$0xff]
    %v2371 = vld [vmem:[%s1914 + $0x2c] sm:$0xff]
    %v2372 = vpack.c.bf16 %v2368, %v2368
    %v2373 = vpack.c.bf16 %v2369, %v2369
    %v2374 = vpack.c.bf16 %v2370, %v2370
    %v2375 = vpack.c.bf16 %v2371, %v2371
    %v2376 = vld [vmem:[%s1914 + $0x8] sm:$0xff]
    %v2377 = vld [vmem:[%s1914 + $0x10] sm:$0xff]
    %v2378 = vld [vmem:[%s1914 + $0x28] sm:$0xff]
    %v2379 = vld [vmem:[%s1914 + $0x30] sm:$0xff]
    %v2380 = vpack.c.bf16 %v2376, %v2376
    %v2381 = vpack.c.bf16 %v2377, %v2377
    %v2382 = vpack.c.bf16 %v2378, %v2378
    %v2383 = vpack.c.bf16 %v2379, %v2379
    %v2384 = vld [vmem:[%s1914 + $0x14] sm:$0xff]
    %v2385 = vld [vmem:[%s1914 + $0x34] sm:$0xff]
    %v2386 = vpack.c.bf16 %v2384, %v2384
    %v2387 = vpack.c.bf16 %v2385, %v2385
    %v2392 = vunpack.c.l.b16 %v2352
    %v2393 = vunpack.c.l.b16 %v2353
    %v2394 = vunpack.c.l.b16 %v2354
    %v2395 = vunpack.c.l.b16 %v2355
    %v2396 = vpack.c.b16 %v2393, %v2392
    %v2397 = vpack.c.b16 %v2395, %v2394
    %v2404 = vunpack.c.l.b16 %v2360
    %v2405 = vunpack.c.l.b16 %v2361
    %v2406 = vunpack.c.l.b16 %v2362
    %v2407 = vunpack.c.l.b16 %v2363
    %v2408 = vpack.c.b16 %v2405, %v2404
    %v2409 = vpack.c.b16 %v2407, %v2406
    %v2414 = vunpack.c.l.b16 %v2366
    %v2415 = vunpack.c.l.b16 %v2367
    %v2416 = vpack.c.b16 %v2414, %v2393
    %v2417 = vpack.c.b16 %v2415, %v2395
    %v2424 = vunpack.c.l.b16 %v2372
    %v2425 = vunpack.c.l.b16 %v2373
    %v2426 = vunpack.c.l.b16 %v2374
    %v2427 = vunpack.c.l.b16 %v2375
    %v2428 = vpack.c.b16 %v2425, %v2424
    %v2429 = vpack.c.b16 %v2427, %v2426
    %v2436 = vunpack.c.l.b16 %v2380
    %v2437 = vunpack.c.l.b16 %v2381
    %v2438 = vunpack.c.l.b16 %v2382
    %v2439 = vunpack.c.l.b16 %v2383
    %v2440 = vpack.c.b16 %v2437, %v2436
    %v2441 = vpack.c.b16 %v2439, %v2438
    %v2446 = vunpack.c.l.b16 %v2386
    %v2447 = vunpack.c.l.b16 %v2387
    %v2448 = vpack.c.b16 %v2446, %v2425
    %v2449 = vpack.c.b16 %v2447, %v2427
    %v2452 = vld [vmem:[#allocation6 + $0x3c0] sm:$0xf]
    %v2453 = vld [vmem:[#allocation6 + $0x3c4] sm:$0xf]
    %v2454 = vld [vmem:[#allocation6 + $0x3c8] sm:$0xf]
    %v2455 = vld [vmem:[#allocation6 + $0x3cc] sm:$0xf]
    %v2456 = vld [vmem:[#allocation6 + $0x3d0] sm:$0xf]
    %v2457 = vld [vmem:[#allocation6 + $0x3d4] sm:$0xf]
    %v2458 = vld [vmem:[#allocation6 + $0x3d8] sm:$0xf]
    %v2459 = vld [vmem:[#allocation6 + $0x3dc] sm:$0xf]
    %v2460 = vld [vmem:[#allocation6 + $0x3e0] sm:$0xf]
    %v2461 = vld [vmem:[#allocation6 + $0x3e4] sm:$0xf]
    %v2462 = vld [vmem:[#allocation6 + $0x3e8] sm:$0xf]
    %v2463 = vld [vmem:[#allocation6 + $0x3ec] sm:$0xf]
    %v2464 = vld [vmem:[#allocation6 + $0x3f0] sm:$0xf]
    %v2465 = vld [vmem:[#allocation6 + $0x3f4] sm:$0xf]
    %v2466 = vld [vmem:[#allocation6 + $0x3f8] sm:$0xf]
    %v2467 = vld [vmem:[#allocation6 + $0x3fc] sm:$0xf]
    %v2468 = vld [vmem:[#allocation6 + $0x400] sm:$0xf]
    %v2469 = vld [vmem:[#allocation6 + $0x404] sm:$0xf]
    %v2470 = vld [vmem:[#allocation6 + $0x408] sm:$0xf]
    %v2471 = vld [vmem:[#allocation6 + $0x40c] sm:$0xf]
    %v2472 = vld [vmem:[#allocation6 + $0x410] sm:$0xf]
    %v2473 = vld [vmem:[#allocation6 + $0x414] sm:$0xf]
    %v2474 = vld [vmem:[#allocation6 + $0x418] sm:$0xf]
    %v2475 = vld [vmem:[#allocation6 + $0x41c] sm:$0xf]
    %v2476 = vld [vmem:[#allocation6 + $0x420] sm:$0xf]
    %v2477 = vld [vmem:[#allocation6 + $0x424] sm:$0xf]
    %v2478 = vld [vmem:[#allocation6 + $0x428] sm:$0xf]
    %v2479 = vld [vmem:[#allocation6 + $0x42c] sm:$0xf]
    %v2480 = vld [vmem:[#allocation6 + $0x430] sm:$0xf]
    %v2481 = vld [vmem:[#allocation6 + $0x434] sm:$0xf]
    %v2482 = vld [vmem:[#allocation6 + $0x438] sm:$0xf]
    %v2483 = vld [vmem:[#allocation6 + $0x43c] sm:$0xf]
    %v2484 = vld [vmem:[#allocation6 + $0x440] sm:$0xf]
    %v2485 = vld [vmem:[#allocation6 + $0x444] sm:$0xf]
    %v2486 = vld [vmem:[#allocation6 + $0x448] sm:$0xf]
    %v2487 = vld [vmem:[#allocation6 + $0x44c] sm:$0xf]
    %v2488 = vld [vmem:[#allocation6 + $0x450] sm:$0xf]
    %v2489 = vld [vmem:[#allocation6 + $0x454] sm:$0xf]
    %v2490 = vld [vmem:[#allocation6 + $0x458] sm:$0xf]
    %v2491 = vld [vmem:[#allocation6 + $0x45c] sm:$0xf]
    %v2492 = vld [vmem:[#allocation6 + $0x460] sm:$0xf]
    %v2493 = vld [vmem:[#allocation6 + $0x464] sm:$0xf]
    %v2494 = vld [vmem:[#allocation6 + $0x468] sm:$0xf]
    %v2495 = vld [vmem:[#allocation6 + $0x46c] sm:$0xf]
    %v2496 = vld [vmem:[#allocation6 + $0x470] sm:$0xf]
    %v2497 = vld [vmem:[#allocation6 + $0x474] sm:$0xf]
    %v2498 = vld [vmem:[#allocation6 + $0x478] sm:$0xf]
    %v2499 = vld [vmem:[#allocation6 + $0x47c] sm:$0xf]
    %v2500 = vld [vmem:[#allocation6 + $0x480] sm:$0xf]
    %v2501 = vld [vmem:[#allocation6 + $0x484] sm:$0xf]
    %v2502 = vld [vmem:[#allocation6 + $0x488] sm:$0xf]
    %v2503 = vld [vmem:[#allocation6 + $0x48c] sm:$0xf]
    %v2504 = vld [vmem:[#allocation6 + $0x490] sm:$0xf]
    %v2505 = vld [vmem:[#allocation6 + $0x494] sm:$0xf]
    %v2506 = vld [vmem:[#allocation6 + $0x498] sm:$0xf]
    %v2507 = vld [vmem:[#allocation6 + $0x49c] sm:$0xf]
    %v2508 = vld [vmem:[#allocation6 + $0x4a0] sm:$0xf]
    %v2509 = vld [vmem:[#allocation6 + $0x4a4] sm:$0xf]
    %v2510 = vld [vmem:[#allocation6 + $0x4a8] sm:$0xf]
    %v2511 = vld [vmem:[#allocation6 + $0x4ac] sm:$0xf]
    %v2512 = vld [vmem:[#allocation6 + $0x4b0] sm:$0xf]
    %v2513 = vld [vmem:[#allocation6 + $0x4b4] sm:$0xf]
    %v2514 = vld [vmem:[#allocation6 + $0x4b8] sm:$0xf]
    %v2515 = vld [vmem:[#allocation6 + $0x4bc] sm:$0xf]
    %v2516 = vld [vmem:[#allocation6 + $0x4c0] sm:$0xf]
    %v2517 = vld [vmem:[#allocation6 + $0x4c4] sm:$0xf]
    %v2518 = vld [vmem:[#allocation6 + $0x4c8] sm:$0xf]
    %v2519 = vld [vmem:[#allocation6 + $0x4cc] sm:$0xf]
    %v2520 = vld [vmem:[#allocation6 + $0x4d0] sm:$0xf]
    %v2521 = vld [vmem:[#allocation6 + $0x4d4] sm:$0xf]
    %v2522 = vld [vmem:[#allocation6 + $0x4d8] sm:$0xf]
    %v2523 = vld [vmem:[#allocation6 + $0x4dc] sm:$0xf]
    %v2524 = vld [vmem:[#allocation6 + $0x4e0] sm:$0xf]
    %v2525 = vld [vmem:[#allocation6 + $0x4e4] sm:$0xf]
    %v2526 = vld [vmem:[#allocation6 + $0x4e8] sm:$0xf]
    %v2527 = vld [vmem:[#allocation6 + $0x4ec] sm:$0xf]
    %v2528 = vld [vmem:[#allocation6 + $0x4f0] sm:$0xf]
    %v2529 = vld [vmem:[#allocation6 + $0x4f4] sm:$0xf]
    %v2530 = vld [vmem:[#allocation6 + $0x4f8] sm:$0xf]
    %v2531 = vld [vmem:[#allocation6 + $0x4fc] sm:$0xf]
    %v2532 = vld [vmem:[#allocation6 + $0x500] sm:$0xf]
    %v2533 = vld [vmem:[#allocation6 + $0x504] sm:$0xf]
    %v2534 = vld [vmem:[#allocation6 + $0x508] sm:$0xf]
    %v2535 = vld [vmem:[#allocation6 + $0x50c] sm:$0xf]
    %v2536 = vld [vmem:[#allocation6 + $0x510] sm:$0xf]
    %v2537 = vld [vmem:[#allocation6 + $0x514] sm:$0xf]
    %v2538 = vld [vmem:[#allocation6 + $0x518] sm:$0xf]
    %v2539 = vld [vmem:[#allocation6 + $0x51c] sm:$0xf]
    %v2540 = vld [vmem:[#allocation6 + $0x520] sm:$0xf]
    %v2541 = vld [vmem:[#allocation6 + $0x524] sm:$0xf]
    %v2542 = vld [vmem:[#allocation6 + $0x528] sm:$0xf]
    %v2543 = vld [vmem:[#allocation6 + $0x52c] sm:$0xf]
    %v2544 = vld [vmem:[#allocation6 + $0x530] sm:$0xf]
    %v2545 = vld [vmem:[#allocation6 + $0x534] sm:$0xf]
    %v2546 = vld [vmem:[#allocation6 + $0x538] sm:$0xf]
    %v2547 = vld [vmem:[#allocation6 + $0x53c] sm:$0xf]
    %v2644 = vunpack.c.l.b16 %v2452
    %v2645 = vunpack.c.l.b16 %v2453
    %v2646 = vunpack.c.l.b16 %v2454
    %v2647 = vunpack.c.l.b16 %v2455
    %v2648 = vunpack.c.l.b16 %v2456
    %v2649 = vunpack.c.l.b16 %v2457
    %v2650 = vunpack.c.l.b16 %v2458
    %v2651 = vunpack.c.l.b16 %v2459
    %v2652 = vunpack.c.l.b16 %v2460
    %v2653 = vunpack.c.l.b16 %v2461
    %v2654 = vunpack.c.l.b16 %v2462
    %v2655 = vunpack.c.l.b16 %v2463
    %v2656 = vunpack.c.l.b16 %v2464
    %v2657 = vunpack.c.l.b16 %v2465
    %v2658 = vunpack.c.l.b16 %v2466
    %v2659 = vunpack.c.l.b16 %v2467
    %v2660 = vunpack.c.l.b16 %v2468
    %v2661 = vunpack.c.l.b16 %v2469
    %v2662 = vunpack.c.l.b16 %v2470
    %v2663 = vunpack.c.l.b16 %v2471
    %v2664 = vunpack.c.l.b16 %v2472
    %v2665 = vunpack.c.l.b16 %v2473
    %v2666 = vunpack.c.l.b16 %v2474
    %v2667 = vunpack.c.l.b16 %v2475
    %v2668 = vunpack.c.l.b16 %v2476
    %v2669 = vunpack.c.l.b16 %v2477
    %v2670 = vunpack.c.l.b16 %v2478
    %v2671 = vunpack.c.l.b16 %v2479
    %v2672 = vunpack.c.l.b16 %v2480
    %v2673 = vunpack.c.l.b16 %v2481
    %v2674 = vunpack.c.l.b16 %v2482
    %v2675 = vunpack.c.l.b16 %v2483
    %v2676 = vunpack.c.l.b16 %v2484
    %v2677 = vunpack.c.l.b16 %v2485
    %v2678 = vunpack.c.l.b16 %v2486
    %v2679 = vunpack.c.l.b16 %v2487
    %v2680 = vunpack.c.l.b16 %v2488
    %v2681 = vunpack.c.l.b16 %v2489
    %v2682 = vunpack.c.l.b16 %v2490
    %v2683 = vunpack.c.l.b16 %v2491
    %v2684 = vunpack.c.l.b16 %v2492
    %v2685 = vunpack.c.l.b16 %v2493
    %v2686 = vunpack.c.l.b16 %v2494
    %v2687 = vunpack.c.l.b16 %v2495
    %v2688 = vunpack.c.l.b16 %v2496
    %v2689 = vunpack.c.l.b16 %v2497
    %v2690 = vunpack.c.l.b16 %v2498
    %v2691 = vunpack.c.l.b16 %v2499
    %v2692 = vunpack.c.l.b16 %v2500
    %v2693 = vunpack.c.l.b16 %v2501
    %v2694 = vunpack.c.l.b16 %v2502
    %v2695 = vunpack.c.l.b16 %v2503
    %v2696 = vunpack.c.l.b16 %v2504
    %v2697 = vunpack.c.l.b16 %v2505
    %v2698 = vunpack.c.l.b16 %v2506
    %v2699 = vunpack.c.l.b16 %v2507
    %v2700 = vunpack.c.l.b16 %v2508
    %v2701 = vunpack.c.l.b16 %v2509
    %v2702 = vunpack.c.l.b16 %v2510
    %v2703 = vunpack.c.l.b16 %v2511
    %v2704 = vunpack.c.l.b16 %v2512
    %v2705 = vunpack.c.l.b16 %v2513
    %v2706 = vunpack.c.l.b16 %v2514
    %v2707 = vunpack.c.l.b16 %v2515
    %v2708 = vunpack.c.l.b16 %v2516
    %v2709 = vunpack.c.l.b16 %v2517
    %v2710 = vunpack.c.l.b16 %v2518
    %v2711 = vunpack.c.l.b16 %v2519
    %v2712 = vunpack.c.l.b16 %v2520
    %v2713 = vunpack.c.l.b16 %v2521
    %v2714 = vunpack.c.l.b16 %v2522
    %v2715 = vunpack.c.l.b16 %v2523
    %v2716 = vunpack.c.l.b16 %v2524
    %v2717 = vunpack.c.l.b16 %v2525
    %v2718 = vunpack.c.l.b16 %v2526
    %v2719 = vunpack.c.l.b16 %v2527
    %v2720 = vunpack.c.l.b16 %v2528
    %v2721 = vunpack.c.l.b16 %v2529
    %v2722 = vunpack.c.l.b16 %v2530
    %v2723 = vunpack.c.l.b16 %v2531
    %v2724 = vunpack.c.l.b16 %v2532
    %v2725 = vunpack.c.l.b16 %v2533
    %v2726 = vunpack.c.l.b16 %v2534
    %v2727 = vunpack.c.l.b16 %v2535
    %v2728 = vunpack.c.l.b16 %v2536
    %v2729 = vunpack.c.l.b16 %v2537
    %v2730 = vunpack.c.l.b16 %v2538
    %v2731 = vunpack.c.l.b16 %v2539
    %v2732 = vunpack.c.l.b16 %v2540
    %v2733 = vunpack.c.l.b16 %v2541
    %v2734 = vunpack.c.l.b16 %v2542
    %v2735 = vunpack.c.l.b16 %v2543
    %v2736 = vunpack.c.l.b16 %v2544
    %v2737 = vunpack.c.l.b16 %v2545
    %v2738 = vunpack.c.l.b16 %v2546
    %v2739 = vunpack.c.l.b16 %v2547
    %v2740 = vpack.c.b16 %v2645, %v2644
    %v2741 = vpack.c.b16 %v2647, %v2646
    %v2742 = vpack.c.b16 %v2649, %v2648
    %v2743 = vpack.c.b16 %v2651, %v2650
    %v2744 = vpack.c.b16 %v2653, %v2652
    %v2745 = vpack.c.b16 %v2655, %v2654
    %v2746 = vpack.c.b16 %v2657, %v2656
    %v2747 = vpack.c.b16 %v2659, %v2658
    %v2748 = vpack.c.b16 %v2661, %v2660
    %v2749 = vpack.c.b16 %v2663, %v2662
    %v2750 = vpack.c.b16 %v2665, %v2664
    %v2751 = vpack.c.b16 %v2667, %v2666
    %v2752 = vpack.c.b16 %v2669, %v2668
    %v2753 = vpack.c.b16 %v2671, %v2670
    %v2754 = vpack.c.b16 %v2673, %v2672
    %v2755 = vpack.c.b16 %v2675, %v2674
    %v2756 = vpack.c.b16 %v2677, %v2676
    %v2757 = vpack.c.b16 %v2679, %v2678
    %v2758 = vpack.c.b16 %v2681, %v2680
    %v2759 = vpack.c.b16 %v2683, %v2682
    %v2760 = vpack.c.b16 %v2685, %v2684
    %v2761 = vpack.c.b16 %v2687, %v2686
    %v2762 = vpack.c.b16 %v2689, %v2688
    %v2763 = vpack.c.b16 %v2691, %v2690
    %v2764 = vpack.c.b16 %v2693, %v2692
    %v2765 = vpack.c.b16 %v2695, %v2694
    %v2766 = vpack.c.b16 %v2697, %v2696
    %v2767 = vpack.c.b16 %v2699, %v2698
    %v2768 = vpack.c.b16 %v2701, %v2700
    %v2769 = vpack.c.b16 %v2703, %v2702
    %v2770 = vpack.c.b16 %v2705, %v2704
    %v2771 = vpack.c.b16 %v2707, %v2706
    %v2772 = vpack.c.b16 %v2709, %v2708
    %v2773 = vpack.c.b16 %v2711, %v2710
    %v2774 = vpack.c.b16 %v2713, %v2712
    %v2775 = vpack.c.b16 %v2715, %v2714
    %v2776 = vpack.c.b16 %v2717, %v2716
    %v2777 = vpack.c.b16 %v2719, %v2718
    %v2778 = vpack.c.b16 %v2721, %v2720
    %v2779 = vpack.c.b16 %v2723, %v2722
    %v2780 = vpack.c.b16 %v2725, %v2724
    %v2781 = vpack.c.b16 %v2727, %v2726
    %v2782 = vpack.c.b16 %v2729, %v2728
    %v2783 = vpack.c.b16 %v2731, %v2730
    %v2784 = vpack.c.b16 %v2733, %v2732
    %v2785 = vpack.c.b16 %v2735, %v2734
    %v2786 = vpack.c.b16 %v2737, %v2736
    %v2787 = vpack.c.b16 %v2739, %v2738
    %2836 = vmatpush.bf16.msra.mxu0 %v2747
    %2837 = vmatpush.bf16.msra.mxu0 %v2746
    %2838 = vmatpush.bf16.msra.mxu0 %v2745
    %2839 = vmatpush.bf16.msra.mxu0 %v2744
    %2840 = vmatpush.bf16.msra.mxu0 %v2743
    %2841 = vmatpush.bf16.msra.mxu0 %v2742
    %2842 = vmatpush.bf16.msra.mxu0 %v2741
    %2843 = vmatpush.bf16.msra.mxu0 %v2740
    %2844 = vmatmul.bf16.gmra.mxu0 %v2396
    %v2845 = vpop.f32.mrf.mxu0
    %v2846 = vadd.f32 0.0, %v2845
    %v2847 = vpop.f32.mrf.mxu0
    %v2848 = vadd.f32 0.0, %v2847
    %2849 = vmatmul.bf16.gmra.mxu0 %v2397
    %v2850 = vpop.f32.mrf.mxu0
    %v2851 = vadd.f32 0.0, %v2850
    %v2852 = vpop.f32.mrf.mxu0
    %v2853 = vadd.f32 0.0, %v2852
    %2854 = vdwg.mxu0
    %2855 = vmatpush.bf16.msra.mxu0 %v2755
    %2856 = vmatpush.bf16.msra.mxu0 %v2754
    %2857 = vmatpush.bf16.msra.mxu0 %v2753
    %2858 = vmatpush.bf16.msra.mxu0 %v2752
    %2859 = vmatpush.bf16.msra.mxu0 %v2751
    %2860 = vmatpush.bf16.msra.mxu0 %v2750
    %2861 = vmatpush.bf16.msra.mxu0 %v2749
    %2862 = vmatpush.bf16.msra.mxu0 %v2748
    %2863 = vmatmul.bf16.gmra.mxu0 %v2408
    %v2864 = vpop.f32.mrf.mxu0
    %v2865 = vadd.f32 %v2846, %v2864
    %v2866 = vpop.f32.mrf.mxu0
    %v2867 = vadd.f32 %v2848, %v2866
    %2868 = vmatmul.bf16.gmra.mxu0 %v2409
    %v2869 = vpop.f32.mrf.mxu0
    %v2870 = vadd.f32 %v2851, %v2869
    %v2871 = vpop.f32.mrf.mxu0
    %v2872 = vadd.f32 %v2853, %v2871
    %2873 = vdwg.mxu0
    %2874 = vmatpush.bf16.msra.mxu0 %v2763
    %2875 = vmatpush.bf16.msra.mxu0 %v2762
    %2876 = vmatpush.bf16.msra.mxu0 %v2761
    %2877 = vmatpush.bf16.msra.mxu0 %v2760
    %2878 = vmatpush.bf16.msra.mxu0 %v2759
    %2879 = vmatpush.bf16.msra.mxu0 %v2758
    %2880 = vmatpush.bf16.msra.mxu0 %v2757
    %2881 = vmatpush.bf16.msra.mxu0 %v2756
    %2882 = vmatmul.bf16.gmra.mxu0 %v2416
    %v2883 = vpop.f32.mrf.mxu0
    %v2884 = vadd.f32 %v2865, %v2883
    %v2885 = vpop.f32.mrf.mxu0
    %v2886 = vadd.f32 %v2867, %v2885
    %2887 = vmatmul.bf16.gmra.mxu0 %v2417
    %v2888 = vpop.f32.mrf.mxu0
    %v2889 = vadd.f32 %v2870, %v2888
    %v2890 = vpop.f32.mrf.mxu0
    %v2891 = vadd.f32 %v2872, %v2890
    %2892 = vdwg.mxu0
    %2893 = vmatpush.bf16.msra.mxu0 %v2771
    %2894 = vmatpush.bf16.msra.mxu0 %v2770
    %2895 = vmatpush.bf16.msra.mxu0 %v2769
    %2896 = vmatpush.bf16.msra.mxu0 %v2768
    %2897 = vmatpush.bf16.msra.mxu0 %v2767
    %2898 = vmatpush.bf16.msra.mxu0 %v2766
    %2899 = vmatpush.bf16.msra.mxu0 %v2765
    %2900 = vmatpush.bf16.msra.mxu0 %v2764
    %2901 = vmatmul.bf16.gmra.mxu0 %v2428
    %v2902 = vpop.f32.mrf.mxu0
    %v2903 = vadd.f32 %v2884, %v2902
    %v2904 = vpop.f32.mrf.mxu0
    %v2905 = vadd.f32 %v2886, %v2904
    %2906 = vmatmul.bf16.gmra.mxu0 %v2429
    %v2907 = vpop.f32.mrf.mxu0
    %v2908 = vadd.f32 %v2889, %v2907
    %v2909 = vpop.f32.mrf.mxu0
    %v2910 = vadd.f32 %v2891, %v2909
    %2911 = vdwg.mxu0
    %2912 = vmatpush.bf16.msra.mxu0 %v2779
    %2913 = vmatpush.bf16.msra.mxu0 %v2778
    %2914 = vmatpush.bf16.msra.mxu0 %v2777
    %2915 = vmatpush.bf16.msra.mxu0 %v2776
    %2916 = vmatpush.bf16.msra.mxu0 %v2775
    %2917 = vmatpush.bf16.msra.mxu0 %v2774
    %2918 = vmatpush.bf16.msra.mxu0 %v2773
    %2919 = vmatpush.bf16.msra.mxu0 %v2772
    %2920 = vmatmul.bf16.gmra.mxu0 %v2440
    %v2921 = vpop.f32.mrf.mxu0
    %v2922 = vadd.f32 %v2903, %v2921
    %v2923 = vpop.f32.mrf.mxu0
    %v2924 = vadd.f32 %v2905, %v2923
    %2925 = vmatmul.bf16.gmra.mxu0 %v2441
    %v2926 = vpop.f32.mrf.mxu0
    %v2927 = vadd.f32 %v2908, %v2926
    %v2928 = vpop.f32.mrf.mxu0
    %v2929 = vadd.f32 %v2910, %v2928
    %2930 = vdwg.mxu0
    %2931 = vmatpush.bf16.msra.mxu0 %v2787
    %2932 = vmatpush.bf16.msra.mxu0 %v2786
    %2933 = vmatpush.bf16.msra.mxu0 %v2785
    %2934 = vmatpush.bf16.msra.mxu0 %v2784
    %2935 = vmatpush.bf16.msra.mxu0 %v2783
    %2936 = vmatpush.bf16.msra.mxu0 %v2782
    %2937 = vmatpush.bf16.msra.mxu0 %v2781
    %2938 = vmatpush.bf16.msra.mxu0 %v2780
    %2939 = vmatmul.bf16.gmra.mxu0 %v2448
    %v2940 = vpop.f32.mrf.mxu0
    %v2941 = vadd.f32 %v2922, %v2940
    %v2942 = vpop.f32.mrf.mxu0
    %v2943 = vadd.f32 %v2924, %v2942
    %2944 = vmatmul.bf16.gmra.mxu0 %v2449
    %v2945 = vpop.f32.mrf.mxu0
    %v2946 = vadd.f32 %v2927, %v2945
    %v2947 = vpop.f32.mrf.mxu0
    %v2948 = vadd.f32 %v2929, %v2947
    %2949 = vdwg.mxu0
    %v2950 = vadd.f32 %v2941, %v2943
    %v2951 = vadd.f32 %v2950, %v2946
    %v2952 = vadd.f32 %v2951, %v2948
    %v2953 = vrot.slane %v2952, 4
    %v2954 = vadd.f32 %v2952, %v2953
    %v2955 = vrot.slane %v2954, 2
    %v2956 = vadd.f32 %v2954, %v2955
    %v2957 = vrot.slane %v2956, 1
    %v2958 = vadd.f32 %v2956, %v2957
    %v2959 = vmul.f32 %v2941, %v2941
    %v2960 = vmul.f32 %v2943, %v2943
    %v2961 = vmul.f32 %v2946, %v2946
    %v2962 = vmul.f32 %v2948, %v2948
    %v2963 = vadd.f32 %v2959, %v2960
    %v2964 = vadd.f32 %v2963, %v2961
    %v2965 = vadd.f32 %v2964, %v2962
    %v2966 = vrot.slane %v2965, 4
    %v2967 = vadd.f32 %v2965, %v2966
    %v2968 = vrot.slane %v2967, 2
    %v2969 = vadd.f32 %v2967, %v2968
    %v2970 = vrot.slane %v2969, 1
    %v2971 = vadd.f32 %v2969, %v2970
    %v2972 = vsel %vm472, %v2958, %v2971
    %v2973 = vld [vmem:[%s2] sm:$0xff]
    %v2974 = vld [vmem:[%s2 + $0x8] sm:$0xff]
    %v2975 = vld [vmem:[%s2 + $0x10] sm:$0xff]
    %v2976 = vld [vmem:[%s2 + $0x18] sm:$0xff]
    %v2977 = vld [vmem:[%s2 + $0x20] sm:$0xff]
    %v2978 = vld [vmem:[%s2 + $0x28] sm:$0xff]
    %v2979 = vld [vmem:[%s2 + $0x30] sm:$0xff]
    %v2980 = vld [vmem:[%s2 + $0x38] sm:$0xff]
    %v2981 = vld [vmem:[%s2 + $0x40] sm:$0xff]
    %v2982 = vld [vmem:[%s2 + $0x48] sm:$0xff]
    %v2983 = vld [vmem:[%s2 + $0x50] sm:$0xff]
    %v2984 = vld [vmem:[%s2 + $0x58] sm:$0xff]
    %v2985 = vld [vmem:[%s2 + $0x60] sm:$0xff]
    %v2986 = vld [vmem:[%s2 + $0x68] sm:$0xff]
    %v2987 = vld [vmem:[%s2 + $0x70] sm:$0xff]
    %v2988 = vld [vmem:[%s2 + $0x78] sm:$0xff]
    %2989 = vmatpush.msra.mxu0 %v2988
    %2990 = vmatpush.msra.mxu0 %v2987
    %2991 = vmatpush.msra.mxu0 %v2986
    %2992 = vmatpush.msra.mxu0 %v2985
    %2993 = vmatpush.msra.mxu0 %v2984
    %2994 = vmatpush.msra.mxu0 %v2983
    %2995 = vmatpush.msra.mxu0 %v2982
    %2996 = vmatpush.msra.mxu0 %v2981
    %2997 = vmatpush.msra.mxu0 %v2980
    %2998 = vmatpush.msra.mxu0 %v2979
    %2999 = vmatpush.msra.mxu0 %v2978
    %3000 = vmatpush.msra.mxu0 %v2977
    %3001 = vmatpush.msra.mxu0 %v2976
    %3002 = vmatpush.msra.mxu0 %v2975
    %3003 = vmatpush.msra.mxu0 %v2974
    %3004 = vmatpush.msra.mxu0 %v2973
    %3005 = vmatmul.f32.gmra.mxu0 %v2972
    %v3006 = vpop.f32.mrf.mxu0
    %v3007 = vadd.f32 0.0, %v3006
    %3008 = vdwg.mxu0
    %v3009 = vmul.f32 %v3007, %v516
    %v3010 = vmul.f32 %v3009, %v3009
    %v3012 = vrot.slane %v3010, 7
    %v3014 = vsub.f32 %v3009, %v3012
    %v3015 = vmax.f32 %v3014, 0.0
    %s3016 = scalar_lea.vmem [#allocation9], 5
    %v3017 = vld [vmem:[%s3016] sm:$0x1]
    %v3018 = vadd.f32 %v3015, 1e-05
    %v3019 = vrsqrt.pop %v3018
    %v3020 = vmul.f32 %v3019, %v3018
    %v3021 = vmul.f32 %v3020, %v3019
    %v3022 = vmul.f32 0.5, %v3021
    %v3023 = vsub.f32 1.5, %v3022
    %v3024 = vmul.f32 %v3019, %v3023
    %vm3025 = vweird.f32 %v3018
    %vm3026 = vweird.f32 %v3019
    %vm3027 = vmor %vm3025, %vm3026
    %v3028 = vsel %vm3027, %v3019, %v3024
    %3030 = vst [vmem:[#allocation1] sm:$0xff] %v3028
    %s3031 = scalar_lea.vmem [#allocation1], 1
    %v3032 = vld [vmem:[%s3031] ss:$9 sm:$0xff]
    %v3034 = vmul.f32 %v3017, %v3032
    %s3035 = scalar_lea.vmem [#allocation11], 5
    %v3036 = vld [vmem:[%s3035] sm:$0x1]
    %v3037 = vmul.f32 %v3009, %v3034
    %v3038 = vsub.f32 %v3036, %v3037
    %v3040 = vperm.slane %v3038, 0
    %v3042 = vsel %vm472, %v3034, %v3040
    %v3043 = vld [vmem:[#allocation8] sm:$0xff]
    %v3045 = vsel %vm550, %v3042, 0
    %3047 = vmatpush.msra.mxu0 0.0
    %3048 = vmatpush.msra.mxu0 0.0
    %3049 = vmatpush.msra.mxu0 0.0
    %3050 = vmatpush.msra.mxu0 0.0
    %3051 = vmatpush.msra.mxu0 0.0
    %3052 = vmatpush.msra.mxu0 0.0
    %3053 = vmatpush.msra.mxu0 0.0
    %3054 = vmatpush.msra.mxu0 0.0
    %3055 = vmatpush.msra.mxu0 0.0
    %3056 = vmatpush.msra.mxu0 0.0
    %3057 = vmatpush.msra.mxu0 0.0
    %3058 = vmatpush.msra.mxu0 0.0
    %3059 = vmatpush.msra.mxu0 0.0
    %3060 = vmatpush.msra.mxu0 0.0
    %3061 = vmatpush.msra.mxu0 0.0
    %3062 = vmatpush.msra.mxu0 %v3043
    %3063 = vmatmul.f32.gmra.mxu0 %v3045
    %v3064 = vpop.f32.mrf.mxu0
    %v3065 = vadd.f32 0.0, %v3064
    %3066 = vdwg.mxu0
    %v3067 = vperm.slane %v3065, 0
    %v3068 = vmul.f32 %v2941, %v3067
    %v3069 = vmul.f32 %v2943, %v3067
    %v3070 = vmul.f32 %v2946, %v3067
    %v3071 = vmul.f32 %v2948, %v3067
    %v3072 = vperm.slane %v3065, 1
    %v3073 = vadd.f32 %v3068, %v3072
    %v3074 = vadd.f32 %v3069, %v3072
    %v3075 = vadd.f32 %v3070, %v3072
    %v3076 = vadd.f32 %v3071, %v3072
    %v3077 = vmax.f32 %v3073, 0.0
    %v3078 = vmax.f32 %v3074, 0.0
    %v3079 = vmax.f32 %v3075, 0.0
    %v3080 = vmax.f32 %v3076, 0.0
    %s3081 = scalar_lea.vmem [#allocation2], 320
    %3082 = vst [vmem:[%s3081 + $0x8] sm:$0xff] %v3077
    %3083 = vst [vmem:[%s3081 + $0x10] sm:$0xff] %v3078
    %3084 = vst [vmem:[%s3081 + $0x28] sm:$0xff] %v3079
    %3085 = vst [vmem:[%s3081 + $0x30] sm:$0xff] %v3080
    %v3086 = vld [vmem:[%s3081 + $0x6] sm:$0xff]
    %v3087 = vld [vmem:[%s3081 + $0xe] sm:$0xff]
    %v3088 = vld [vmem:[%s3081 + $0x26] sm:$0xff]
    %v3089 = vld [vmem:[%s3081 + $0x2e] sm:$0xff]
    %v3090 = vpack.c.bf16 %v3086, %v3086
    %v3091 = vpack.c.bf16 %v3087, %v3087
    %v3092 = vpack.c.bf16 %v3088, %v3088
    %v3093 = vpack.c.bf16 %v3089, %v3089
    %v3094 = vld [vmem:[%s3081 + $0x8] sm:$0xff]
    %v3095 = vld [vmem:[%s3081 + $0x10] sm:$0xff]
    %v3096 = vld [vmem:[%s3081 + $0x28] sm:$0xff]
    %v3097 = vld [vmem:[%s3081 + $0x30] sm:$0xff]
    %v3098 = vpack.c.bf16 %v3094, %v3094
    %v3099 = vpack.c.bf16 %v3095, %v3095
    %v3100 = vpack.c.bf16 %v3096, %v3096
    %v3101 = vpack.c.bf16 %v3097, %v3097
    %v3102 = vld [vmem:[%s3081 + $0xa] sm:$0xff]
    %v3103 = vld [vmem:[%s3081 + $0x12] sm:$0xff]
    %v3104 = vld [vmem:[%s3081 + $0x2a] sm:$0xff]
    %v3105 = vld [vmem:[%s3081 + $0x32] sm:$0xff]
    %v3106 = vpack.c.bf16 %v3102, %v3102
    %v3107 = vpack.c.bf16 %v3103, %v3103
    %v3108 = vpack.c.bf16 %v3104, %v3104
    %v3109 = vpack.c.bf16 %v3105, %v3105
    %v3110 = vld [vmem:[%s1477 + $0x6] sm:$0xff]
    %v3111 = vld [vmem:[%s1477 + $0xe] sm:$0xff]
    %v3112 = vld [vmem:[%s1477 + $0x26] sm:$0xff]
    %v3113 = vld [vmem:[%s1477 + $0x2e] sm:$0xff]
    %v3114 = vpack.c.bf16 %v3110, %v3110
    %v3115 = vpack.c.bf16 %v3111, %v3111
    %v3116 = vpack.c.bf16 %v3112, %v3112
    %v3117 = vpack.c.bf16 %v3113, %v3113
    %v3118 = vld [vmem:[%s1477 + $0x8] sm:$0xff]
    %v3119 = vld [vmem:[%s1477 + $0x10] sm:$0xff]
    %v3120 = vld [vmem:[%s1477 + $0x28] sm:$0xff]
    %v3121 = vld [vmem:[%s1477 + $0x30] sm:$0xff]
    %v3122 = vpack.c.bf16 %v3118, %v3118
    %v3123 = vpack.c.bf16 %v3119, %v3119
    %v3124 = vpack.c.bf16 %v3120, %v3120
    %v3125 = vpack.c.bf16 %v3121, %v3121
    %v3126 = vld [vmem:[%s1477 + $0xa] sm:$0xff]
    %v3127 = vld [vmem:[%s1477 + $0x12] sm:$0xff]
    %v3128 = vld [vmem:[%s1477 + $0x2a] sm:$0xff]
    %v3129 = vld [vmem:[%s1477 + $0x32] sm:$0xff]
    %v3130 = vpack.c.bf16 %v3126, %v3126
    %v3131 = vpack.c.bf16 %v3127, %v3127
    %v3132 = vpack.c.bf16 %v3128, %v3128
    %v3133 = vpack.c.bf16 %v3129, %v3129
    %v3138 = vunpack.c.l.b16 %v3090
    %v3139 = vunpack.c.l.b16 %v3091
    %v3140 = vunpack.c.l.b16 %v3092
    %v3141 = vunpack.c.l.b16 %v3093
    %v3142 = vpack.c.b16 %v3139, %v3138
    %v3143 = vpack.c.b16 %v3141, %v3140
    %v3150 = vunpack.c.l.b16 %v3098
    %v3151 = vunpack.c.l.b16 %v3099
    %v3152 = vunpack.c.l.b16 %v3100
    %v3153 = vunpack.c.l.b16 %v3101
    %v3154 = vpack.c.b16 %v3151, %v3150
    %v3155 = vpack.c.b16 %v3153, %v3152
    %v3162 = vunpack.c.l.b16 %v3106
    %v3163 = vunpack.c.l.b16 %v3107
    %v3164 = vunpack.c.l.b16 %v3108
    %v3165 = vunpack.c.l.b16 %v3109
    %v3166 = vpack.c.b16 %v3163, %v3162
    %v3167 = vpack.c.b16 %v3165, %v3164
    %v3174 = vunpack.c.l.b16 %v3114
    %v3175 = vunpack.c.l.b16 %v3115
    %v3176 = vunpack.c.l.b16 %v3116
    %v3177 = vunpack.c.l.b16 %v3117
    %v3178 = vpack.c.b16 %v3175, %v3174
    %v3179 = vpack.c.b16 %v3177, %v3176
    %v3186 = vunpack.c.l.b16 %v3122
    %v3187 = vunpack.c.l.b16 %v3123
    %v3188 = vunpack.c.l.b16 %v3124
    %v3189 = vunpack.c.l.b16 %v3125
    %v3190 = vpack.c.b16 %v3187, %v3186
    %v3191 = vpack.c.b16 %v3189, %v3188
    %v3198 = vunpack.c.l.b16 %v3130
    %v3199 = vunpack.c.l.b16 %v3131
    %v3200 = vunpack.c.l.b16 %v3132
    %v3201 = vunpack.c.l.b16 %v3133
    %v3202 = vpack.c.b16 %v3199, %v3198
    %v3203 = vpack.c.b16 %v3201, %v3200
    %v3206 = vld [vmem:[#allocation6 + $0x540] sm:$0xf]
    %v3207 = vld [vmem:[#allocation6 + $0x544] sm:$0xf]
    %v3208 = vld [vmem:[#allocation6 + $0x548] sm:$0xf]
    %v3209 = vld [vmem:[#allocation6 + $0x54c] sm:$0xf]
    %v3210 = vld [vmem:[#allocation6 + $0x550] sm:$0xf]
    %v3211 = vld [vmem:[#allocation6 + $0x554] sm:$0xf]
    %v3212 = vld [vmem:[#allocation6 + $0x558] sm:$0xf]
    %v3213 = vld [vmem:[#allocation6 + $0x55c] sm:$0xf]
    %v3214 = vld [vmem:[#allocation6 + $0x560] sm:$0xf]
    %v3215 = vld [vmem:[#allocation6 + $0x564] sm:$0xf]
    %v3216 = vld [vmem:[#allocation6 + $0x568] sm:$0xf]
    %v3217 = vld [vmem:[#allocation6 + $0x56c] sm:$0xf]
    %v3218 = vld [vmem:[#allocation6 + $0x570] sm:$0xf]
    %v3219 = vld [vmem:[#allocation6 + $0x574] sm:$0xf]
    %v3220 = vld [vmem:[#allocation6 + $0x578] sm:$0xf]
    %v3221 = vld [vmem:[#allocation6 + $0x57c] sm:$0xf]
    %v3222 = vld [vmem:[#allocation6 + $0x580] sm:$0xf]
    %v3223 = vld [vmem:[#allocation6 + $0x584] sm:$0xf]
    %v3224 = vld [vmem:[#allocation6 + $0x588] sm:$0xf]
    %v3225 = vld [vmem:[#allocation6 + $0x58c] sm:$0xf]
    %v3226 = vld [vmem:[#allocation6 + $0x590] sm:$0xf]
    %v3227 = vld [vmem:[#allocation6 + $0x594] sm:$0xf]
    %v3228 = vld [vmem:[#allocation6 + $0x598] sm:$0xf]
    %v3229 = vld [vmem:[#allocation6 + $0x59c] sm:$0xf]
    %v3230 = vld [vmem:[#allocation6 + $0x5a0] sm:$0xf]
    %v3231 = vld [vmem:[#allocation6 + $0x5a4] sm:$0xf]
    %v3232 = vld [vmem:[#allocation6 + $0x5a8] sm:$0xf]
    %v3233 = vld [vmem:[#allocation6 + $0x5ac] sm:$0xf]
    %v3234 = vld [vmem:[#allocation6 + $0x5b0] sm:$0xf]
    %v3235 = vld [vmem:[#allocation6 + $0x5b4] sm:$0xf]
    %v3236 = vld [vmem:[#allocation6 + $0x5b8] sm:$0xf]
    %v3237 = vld [vmem:[#allocation6 + $0x5bc] sm:$0xf]
    %v3238 = vld [vmem:[#allocation6 + $0x5c0] sm:$0xf]
    %v3239 = vld [vmem:[#allocation6 + $0x5c4] sm:$0xf]
    %v3240 = vld [vmem:[#allocation6 + $0x5c8] sm:$0xf]
    %v3241 = vld [vmem:[#allocation6 + $0x5cc] sm:$0xf]
    %v3242 = vld [vmem:[#allocation6 + $0x5d0] sm:$0xf]
    %v3243 = vld [vmem:[#allocation6 + $0x5d4] sm:$0xf]
    %v3244 = vld [vmem:[#allocation6 + $0x5d8] sm:$0xf]
    %v3245 = vld [vmem:[#allocation6 + $0x5dc] sm:$0xf]
    %v3246 = vld [vmem:[#allocation6 + $0x5e0] sm:$0xf]
    %v3247 = vld [vmem:[#allocation6 + $0x5e4] sm:$0xf]
    %v3248 = vld [vmem:[#allocation6 + $0x5e8] sm:$0xf]
    %v3249 = vld [vmem:[#allocation6 + $0x5ec] sm:$0xf]
    %v3250 = vld [vmem:[#allocation6 + $0x5f0] sm:$0xf]
    %v3251 = vld [vmem:[#allocation6 + $0x5f4] sm:$0xf]
    %v3252 = vld [vmem:[#allocation6 + $0x5f8] sm:$0xf]
    %v3253 = vld [vmem:[#allocation6 + $0x5fc] sm:$0xf]
    %v3254 = vld [vmem:[#allocation6 + $0x600] sm:$0xf]
    %v3255 = vld [vmem:[#allocation6 + $0x604] sm:$0xf]
    %v3256 = vld [vmem:[#allocation6 + $0x608] sm:$0xf]
    %v3257 = vld [vmem:[#allocation6 + $0x60c] sm:$0xf]
    %v3258 = vld [vmem:[#allocation6 + $0x610] sm:$0xf]
    %v3259 = vld [vmem:[#allocation6 + $0x614] sm:$0xf]
    %v3260 = vld [vmem:[#allocation6 + $0x618] sm:$0xf]
    %v3261 = vld [vmem:[#allocation6 + $0x61c] sm:$0xf]
    %v3262 = vld [vmem:[#allocation6 + $0x620] sm:$0xf]
    %v3263 = vld [vmem:[#allocation6 + $0x624] sm:$0xf]
    %v3264 = vld [vmem:[#allocation6 + $0x628] sm:$0xf]
    %v3265 = vld [vmem:[#allocation6 + $0x62c] sm:$0xf]
    %v3266 = vld [vmem:[#allocation6 + $0x630] sm:$0xf]
    %v3267 = vld [vmem:[#allocation6 + $0x634] sm:$0xf]
    %v3268 = vld [vmem:[#allocation6 + $0x638] sm:$0xf]
    %v3269 = vld [vmem:[#allocation6 + $0x63c] sm:$0xf]
    %v3270 = vld [vmem:[#allocation6 + $0x640] sm:$0xf]
    %v3271 = vld [vmem:[#allocation6 + $0x644] sm:$0xf]
    %v3272 = vld [vmem:[#allocation6 + $0x648] sm:$0xf]
    %v3273 = vld [vmem:[#allocation6 + $0x64c] sm:$0xf]
    %v3274 = vld [vmem:[#allocation6 + $0x650] sm:$0xf]
    %v3275 = vld [vmem:[#allocation6 + $0x654] sm:$0xf]
    %v3276 = vld [vmem:[#allocation6 + $0x658] sm:$0xf]
    %v3277 = vld [vmem:[#allocation6 + $0x65c] sm:$0xf]
    %v3278 = vld [vmem:[#allocation6 + $0x660] sm:$0xf]
    %v3279 = vld [vmem:[#allocation6 + $0x664] sm:$0xf]
    %v3280 = vld [vmem:[#allocation6 + $0x668] sm:$0xf]
    %v3281 = vld [vmem:[#allocation6 + $0x66c] sm:$0xf]
    %v3282 = vld [vmem:[#allocation6 + $0x670] sm:$0xf]
    %v3283 = vld [vmem:[#allocation6 + $0x674] sm:$0xf]
    %v3284 = vld [vmem:[#allocation6 + $0x678] sm:$0xf]
    %v3285 = vld [vmem:[#allocation6 + $0x67c] sm:$0xf]
    %v3286 = vld [vmem:[#allocation6 + $0x680] sm:$0xf]
    %v3287 = vld [vmem:[#allocation6 + $0x684] sm:$0xf]
    %v3288 = vld [vmem:[#allocation6 + $0x688] sm:$0xf]
    %v3289 = vld [vmem:[#allocation6 + $0x68c] sm:$0xf]
    %v3290 = vld [vmem:[#allocation6 + $0x690] sm:$0xf]
    %v3291 = vld [vmem:[#allocation6 + $0x694] sm:$0xf]
    %v3292 = vld [vmem:[#allocation6 + $0x698] sm:$0xf]
    %v3293 = vld [vmem:[#allocation6 + $0x69c] sm:$0xf]
    %v3294 = vld [vmem:[#allocation6 + $0x6a0] sm:$0xf]
    %v3295 = vld [vmem:[#allocation6 + $0x6a4] sm:$0xf]
    %v3296 = vld [vmem:[#allocation6 + $0x6a8] sm:$0xf]
    %v3297 = vld [vmem:[#allocation6 + $0x6ac] sm:$0xf]
    %v3298 = vld [vmem:[#allocation6 + $0x6b0] sm:$0xf]
    %v3299 = vld [vmem:[#allocation6 + $0x6b4] sm:$0xf]
    %v3300 = vld [vmem:[#allocation6 + $0x6b8] sm:$0xf]
    %v3301 = vld [vmem:[#allocation6 + $0x6bc] sm:$0xf]
    %v3398 = vunpack.c.l.b16 %v3206
    %v3399 = vunpack.c.l.b16 %v3207
    %v3400 = vunpack.c.l.b16 %v3208
    %v3401 = vunpack.c.l.b16 %v3209
    %v3402 = vunpack.c.l.b16 %v3210
    %v3403 = vunpack.c.l.b16 %v3211
    %v3404 = vunpack.c.l.b16 %v3212
    %v3405 = vunpack.c.l.b16 %v3213
    %v3406 = vunpack.c.l.b16 %v3214
    %v3407 = vunpack.c.l.b16 %v3215
    %v3408 = vunpack.c.l.b16 %v3216
    %v3409 = vunpack.c.l.b16 %v3217
    %v3410 = vunpack.c.l.b16 %v3218
    %v3411 = vunpack.c.l.b16 %v3219
    %v3412 = vunpack.c.l.b16 %v3220
    %v3413 = vunpack.c.l.b16 %v3221
    %v3414 = vunpack.c.l.b16 %v3222
    %v3415 = vunpack.c.l.b16 %v3223
    %v3416 = vunpack.c.l.b16 %v3224
    %v3417 = vunpack.c.l.b16 %v3225
    %v3418 = vunpack.c.l.b16 %v3226
    %v3419 = vunpack.c.l.b16 %v3227
    %v3420 = vunpack.c.l.b16 %v3228
    %v3421 = vunpack.c.l.b16 %v3229
    %v3422 = vunpack.c.l.b16 %v3230
    %v3423 = vunpack.c.l.b16 %v3231
    %v3424 = vunpack.c.l.b16 %v3232
    %v3425 = vunpack.c.l.b16 %v3233
    %v3426 = vunpack.c.l.b16 %v3234
    %v3427 = vunpack.c.l.b16 %v3235
    %v3428 = vunpack.c.l.b16 %v3236
    %v3429 = vunpack.c.l.b16 %v3237
    %v3430 = vunpack.c.l.b16 %v3238
    %v3431 = vunpack.c.l.b16 %v3239
    %v3432 = vunpack.c.l.b16 %v3240
    %v3433 = vunpack.c.l.b16 %v3241
    %v3434 = vunpack.c.l.b16 %v3242
    %v3435 = vunpack.c.l.b16 %v3243
    %v3436 = vunpack.c.l.b16 %v3244
    %v3437 = vunpack.c.l.b16 %v3245
    %v3438 = vunpack.c.l.b16 %v3246
    %v3439 = vunpack.c.l.b16 %v3247
    %v3440 = vunpack.c.l.b16 %v3248
    %v3441 = vunpack.c.l.b16 %v3249
    %v3442 = vunpack.c.l.b16 %v3250
    %v3443 = vunpack.c.l.b16 %v3251
    %v3444 = vunpack.c.l.b16 %v3252
    %v3445 = vunpack.c.l.b16 %v3253
    %v3446 = vunpack.c.l.b16 %v3254
    %v3447 = vunpack.c.l.b16 %v3255
    %v3448 = vunpack.c.l.b16 %v3256
    %v3449 = vunpack.c.l.b16 %v3257
    %v3450 = vunpack.c.l.b16 %v3258
    %v3451 = vunpack.c.l.b16 %v3259
    %v3452 = vunpack.c.l.b16 %v3260
    %v3453 = vunpack.c.l.b16 %v3261
    %v3454 = vunpack.c.l.b16 %v3262
    %v3455 = vunpack.c.l.b16 %v3263
    %v3456 = vunpack.c.l.b16 %v3264
    %v3457 = vunpack.c.l.b16 %v3265
    %v3458 = vunpack.c.l.b16 %v3266
    %v3459 = vunpack.c.l.b16 %v3267
    %v3460 = vunpack.c.l.b16 %v3268
    %v3461 = vunpack.c.l.b16 %v3269
    %v3462 = vunpack.c.l.b16 %v3270
    %v3463 = vunpack.c.l.b16 %v3271
    %v3464 = vunpack.c.l.b16 %v3272
    %v3465 = vunpack.c.l.b16 %v3273
    %v3466 = vunpack.c.l.b16 %v3274
    %v3467 = vunpack.c.l.b16 %v3275
    %v3468 = vunpack.c.l.b16 %v3276
    %v3469 = vunpack.c.l.b16 %v3277
    %v3470 = vunpack.c.l.b16 %v3278
    %v3471 = vunpack.c.l.b16 %v3279
    %v3472 = vunpack.c.l.b16 %v3280
    %v3473 = vunpack.c.l.b16 %v3281
    %v3474 = vunpack.c.l.b16 %v3282
    %v3475 = vunpack.c.l.b16 %v3283
    %v3476 = vunpack.c.l.b16 %v3284
    %v3477 = vunpack.c.l.b16 %v3285
    %v3478 = vunpack.c.l.b16 %v3286
    %v3479 = vunpack.c.l.b16 %v3287
    %v3480 = vunpack.c.l.b16 %v3288
    %v3481 = vunpack.c.l.b16 %v3289
    %v3482 = vunpack.c.l.b16 %v3290
    %v3483 = vunpack.c.l.b16 %v3291
    %v3484 = vunpack.c.l.b16 %v3292
    %v3485 = vunpack.c.l.b16 %v3293
    %v3486 = vunpack.c.l.b16 %v3294
    %v3487 = vunpack.c.l.b16 %v3295
    %v3488 = vunpack.c.l.b16 %v3296
    %v3489 = vunpack.c.l.b16 %v3297
    %v3490 = vunpack.c.l.b16 %v3298
    %v3491 = vunpack.c.l.b16 %v3299
    %v3492 = vunpack.c.l.b16 %v3300
    %v3493 = vunpack.c.l.b16 %v3301
    %v3494 = vpack.c.b16 %v3399, %v3398
    %v3495 = vpack.c.b16 %v3401, %v3400
    %v3496 = vpack.c.b16 %v3403, %v3402
    %v3497 = vpack.c.b16 %v3405, %v3404
    %v3498 = vpack.c.b16 %v3407, %v3406
    %v3499 = vpack.c.b16 %v3409, %v3408
    %v3500 = vpack.c.b16 %v3411, %v3410
    %v3501 = vpack.c.b16 %v3413, %v3412
    %v3502 = vpack.c.b16 %v3415, %v3414
    %v3503 = vpack.c.b16 %v3417, %v3416
    %v3504 = vpack.c.b16 %v3419, %v3418
    %v3505 = vpack.c.b16 %v3421, %v3420
    %v3506 = vpack.c.b16 %v3423, %v3422
    %v3507 = vpack.c.b16 %v3425, %v3424
    %v3508 = vpack.c.b16 %v3427, %v3426
    %v3509 = vpack.c.b16 %v3429, %v3428
    %v3510 = vpack.c.b16 %v3431, %v3430
    %v3511 = vpack.c.b16 %v3433, %v3432
    %v3512 = vpack.c.b16 %v3435, %v3434
    %v3513 = vpack.c.b16 %v3437, %v3436
    %v3514 = vpack.c.b16 %v3439, %v3438
    %v3515 = vpack.c.b16 %v3441, %v3440
    %v3516 = vpack.c.b16 %v3443, %v3442
    %v3517 = vpack.c.b16 %v3445, %v3444
    %v3518 = vpack.c.b16 %v3447, %v3446
    %v3519 = vpack.c.b16 %v3449, %v3448
    %v3520 = vpack.c.b16 %v3451, %v3450
    %v3521 = vpack.c.b16 %v3453, %v3452
    %v3522 = vpack.c.b16 %v3455, %v3454
    %v3523 = vpack.c.b16 %v3457, %v3456
    %v3524 = vpack.c.b16 %v3459, %v3458
    %v3525 = vpack.c.b16 %v3461, %v3460
    %v3526 = vpack.c.b16 %v3463, %v3462
    %v3527 = vpack.c.b16 %v3465, %v3464
    %v3528 = vpack.c.b16 %v3467, %v3466
    %v3529 = vpack.c.b16 %v3469, %v3468
    %v3530 = vpack.c.b16 %v3471, %v3470
    %v3531 = vpack.c.b16 %v3473, %v3472
    %v3532 = vpack.c.b16 %v3475, %v3474
    %v3533 = vpack.c.b16 %v3477, %v3476
    %v3534 = vpack.c.b16 %v3479, %v3478
    %v3535 = vpack.c.b16 %v3481, %v3480
    %v3536 = vpack.c.b16 %v3483, %v3482
    %v3537 = vpack.c.b16 %v3485, %v3484
    %v3538 = vpack.c.b16 %v3487, %v3486
    %v3539 = vpack.c.b16 %v3489, %v3488
    %v3540 = vpack.c.b16 %v3491, %v3490
    %v3541 = vpack.c.b16 %v3493, %v3492
    %3590 = vmatpush.bf16.msra.mxu0 %v3501
    %3591 = vmatpush.bf16.msra.mxu0 %v3500
    %3592 = vmatpush.bf16.msra.mxu0 %v3499
    %3593 = vmatpush.bf16.msra.mxu0 %v3498
    %3594 = vmatpush.bf16.msra.mxu0 %v3497
    %3595 = vmatpush.bf16.msra.mxu0 %v3496
    %3596 = vmatpush.bf16.msra.mxu0 %v3495
    %3597 = vmatpush.bf16.msra.mxu0 %v3494
    %3598 = vmatmul.bf16.gmra.mxu0 %v3142
    %v3599 = vpop.f32.mrf.mxu0
    %v3600 = vadd.f32 0.0, %v3599
    %v3601 = vpop.f32.mrf.mxu0
    %v3602 = vadd.f32 0.0, %v3601
    %3603 = vmatmul.bf16.gmra.mxu0 %v3143
    %v3604 = vpop.f32.mrf.mxu0
    %v3605 = vadd.f32 0.0, %v3604
    %v3606 = vpop.f32.mrf.mxu0
    %v3607 = vadd.f32 0.0, %v3606
    %3608 = vdwg.mxu0
    %3609 = vmatpush.bf16.msra.mxu0 %v3509
    %3610 = vmatpush.bf16.msra.mxu0 %v3508
    %3611 = vmatpush.bf16.msra.mxu0 %v3507
    %3612 = vmatpush.bf16.msra.mxu0 %v3506
    %3613 = vmatpush.bf16.msra.mxu0 %v3505
    %3614 = vmatpush.bf16.msra.mxu0 %v3504
    %3615 = vmatpush.bf16.msra.mxu0 %v3503
    %3616 = vmatpush.bf16.msra.mxu0 %v3502
    %3617 = vmatmul.bf16.gmra.mxu0 %v3154
    %v3618 = vpop.f32.mrf.mxu0
    %v3619 = vadd.f32 %v3600, %v3618
    %v3620 = vpop.f32.mrf.mxu0
    %v3621 = vadd.f32 %v3602, %v3620
    %3622 = vmatmul.bf16.gmra.mxu0 %v3155
    %v3623 = vpop.f32.mrf.mxu0
    %v3624 = vadd.f32 %v3605, %v3623
    %v3625 = vpop.f32.mrf.mxu0
    %v3626 = vadd.f32 %v3607, %v3625
    %3627 = vdwg.mxu0
    %3628 = vmatpush.bf16.msra.mxu0 %v3517
    %3629 = vmatpush.bf16.msra.mxu0 %v3516
    %3630 = vmatpush.bf16.msra.mxu0 %v3515
    %3631 = vmatpush.bf16.msra.mxu0 %v3514
    %3632 = vmatpush.bf16.msra.mxu0 %v3513
    %3633 = vmatpush.bf16.msra.mxu0 %v3512
    %3634 = vmatpush.bf16.msra.mxu0 %v3511
    %3635 = vmatpush.bf16.msra.mxu0 %v3510
    %3636 = vmatmul.bf16.gmra.mxu0 %v3166
    %v3637 = vpop.f32.mrf.mxu0
    %v3638 = vadd.f32 %v3619, %v3637
    %v3639 = vpop.f32.mrf.mxu0
    %v3640 = vadd.f32 %v3621, %v3639
    %3641 = vmatmul.bf16.gmra.mxu0 %v3167
    %v3642 = vpop.f32.mrf.mxu0
    %v3643 = vadd.f32 %v3624, %v3642
    %v3644 = vpop.f32.mrf.mxu0
    %v3645 = vadd.f32 %v3626, %v3644
    %3646 = vdwg.mxu0
    %3647 = vmatpush.bf16.msra.mxu0 %v3525
    %3648 = vmatpush.bf16.msra.mxu0 %v3524
    %3649 = vmatpush.bf16.msra.mxu0 %v3523
    %3650 = vmatpush.bf16.msra.mxu0 %v3522
    %3651 = vmatpush.bf16.msra.mxu0 %v3521
    %3652 = vmatpush.bf16.msra.mxu0 %v3520
    %3653 = vmatpush.bf16.msra.mxu0 %v3519
    %3654 = vmatpush.bf16.msra.mxu0 %v3518
    %3655 = vmatmul.bf16.gmra.mxu0 %v3178
    %v3656 = vpop.f32.mrf.mxu0
    %v3657 = vadd.f32 %v3638, %v3656
    %v3658 = vpop.f32.mrf.mxu0
    %v3659 = vadd.f32 %v3640, %v3658
    %3660 = vmatmul.bf16.gmra.mxu0 %v3179
    %v3661 = vpop.f32.mrf.mxu0
    %v3662 = vadd.f32 %v3643, %v3661
    %v3663 = vpop.f32.mrf.mxu0
    %v3664 = vadd.f32 %v3645, %v3663
    %3665 = vdwg.mxu0
    %3666 = vmatpush.bf16.msra.mxu0 %v3533
    %3667 = vmatpush.bf16.msra.mxu0 %v3532
    %3668 = vmatpush.bf16.msra.mxu0 %v3531
    %3669 = vmatpush.bf16.msra.mxu0 %v3530
    %3670 = vmatpush.bf16.msra.mxu0 %v3529
    %3671 = vmatpush.bf16.msra.mxu0 %v3528
    %3672 = vmatpush.bf16.msra.mxu0 %v3527
    %3673 = vmatpush.bf16.msra.mxu0 %v3526
    %3674 = vmatmul.bf16.gmra.mxu0 %v3190
    %v3675 = vpop.f32.mrf.mxu0
    %v3676 = vadd.f32 %v3657, %v3675
    %v3677 = vpop.f32.mrf.mxu0
    %v3678 = vadd.f32 %v3659, %v3677
    %3679 = vmatmul.bf16.gmra.mxu0 %v3191
    %v3680 = vpop.f32.mrf.mxu0
    %v3681 = vadd.f32 %v3662, %v3680
    %v3682 = vpop.f32.mrf.mxu0
    %v3683 = vadd.f32 %v3664, %v3682
    %3684 = vdwg.mxu0
    %3685 = vmatpush.bf16.msra.mxu0 %v3541
    %3686 = vmatpush.bf16.msra.mxu0 %v3540
    %3687 = vmatpush.bf16.msra.mxu0 %v3539
    %3688 = vmatpush.bf16.msra.mxu0 %v3538
    %3689 = vmatpush.bf16.msra.mxu0 %v3537
    %3690 = vmatpush.bf16.msra.mxu0 %v3536
    %3691 = vmatpush.bf16.msra.mxu0 %v3535
    %3692 = vmatpush.bf16.msra.mxu0 %v3534
    %3693 = vmatmul.bf16.gmra.mxu0 %v3202
    %v3694 = vpop.f32.mrf.mxu0
    %v3695 = vadd.f32 %v3676, %v3694
    %v3696 = vpop.f32.mrf.mxu0
    %v3697 = vadd.f32 %v3678, %v3696
    %3698 = vmatmul.bf16.gmra.mxu0 %v3203
    %v3699 = vpop.f32.mrf.mxu0
    %v3700 = vadd.f32 %v3681, %v3699
    %v3701 = vpop.f32.mrf.mxu0
    %v3702 = vadd.f32 %v3683, %v3701
    %3703 = vdwg.mxu0
    %v3704 = vadd.f32 %v3695, %v3697
    %v3705 = vadd.f32 %v3704, %v3700
    %v3706 = vadd.f32 %v3705, %v3702
    %v3707 = vrot.slane %v3706, 4
    %v3708 = vadd.f32 %v3706, %v3707
    %v3709 = vrot.slane %v3708, 2
    %v3710 = vadd.f32 %v3708, %v3709
    %v3711 = vrot.slane %v3710, 1
    %v3712 = vadd.f32 %v3710, %v3711
    %v3713 = vmul.f32 %v3695, %v3695
    %v3714 = vmul.f32 %v3697, %v3697
    %v3715 = vmul.f32 %v3700, %v3700
    %v3716 = vmul.f32 %v3702, %v3702
    %v3717 = vadd.f32 %v3713, %v3714
    %v3718 = vadd.f32 %v3717, %v3715
    %v3719 = vadd.f32 %v3718, %v3716
    %v3720 = vrot.slane %v3719, 4
    %v3721 = vadd.f32 %v3719, %v3720
    %v3722 = vrot.slane %v3721, 2
    %v3723 = vadd.f32 %v3721, %v3722
    %v3724 = vrot.slane %v3723, 1
    %v3725 = vadd.f32 %v3723, %v3724
    %v3726 = vsel %vm472, %v3712, %v3725
    %v3727 = vld [vmem:[%s2] sm:$0xff]
    %v3728 = vld [vmem:[%s2 + $0x8] sm:$0xff]
    %v3729 = vld [vmem:[%s2 + $0x10] sm:$0xff]
    %v3730 = vld [vmem:[%s2 + $0x18] sm:$0xff]
    %v3731 = vld [vmem:[%s2 + $0x20] sm:$0xff]
    %v3732 = vld [vmem:[%s2 + $0x28] sm:$0xff]
    %v3733 = vld [vmem:[%s2 + $0x30] sm:$0xff]
    %v3734 = vld [vmem:[%s2 + $0x38] sm:$0xff]
    %v3735 = vld [vmem:[%s2 + $0x40] sm:$0xff]
    %v3736 = vld [vmem:[%s2 + $0x48] sm:$0xff]
    %v3737 = vld [vmem:[%s2 + $0x50] sm:$0xff]
    %v3738 = vld [vmem:[%s2 + $0x58] sm:$0xff]
    %v3739 = vld [vmem:[%s2 + $0x60] sm:$0xff]
    %v3740 = vld [vmem:[%s2 + $0x68] sm:$0xff]
    %v3741 = vld [vmem:[%s2 + $0x70] sm:$0xff]
    %v3742 = vld [vmem:[%s2 + $0x78] sm:$0xff]
    %3743 = vmatpush.msra.mxu0 %v3742
    %3744 = vmatpush.msra.mxu0 %v3741
    %3745 = vmatpush.msra.mxu0 %v3740
    %3746 = vmatpush.msra.mxu0 %v3739
    %3747 = vmatpush.msra.mxu0 %v3738
    %3748 = vmatpush.msra.mxu0 %v3737
    %3749 = vmatpush.msra.mxu0 %v3736
    %3750 = vmatpush.msra.mxu0 %v3735
    %3751 = vmatpush.msra.mxu0 %v3734
    %3752 = vmatpush.msra.mxu0 %v3733
    %3753 = vmatpush.msra.mxu0 %v3732
    %3754 = vmatpush.msra.mxu0 %v3731
    %3755 = vmatpush.msra.mxu0 %v3730
    %3756 = vmatpush.msra.mxu0 %v3729
    %3757 = vmatpush.msra.mxu0 %v3728
    %3758 = vmatpush.msra.mxu0 %v3727
    %3759 = vmatmul.f32.gmra.mxu0 %v3726
    %v3760 = vpop.f32.mrf.mxu0
    %v3761 = vadd.f32 0.0, %v3760
    %3762 = vdwg.mxu0
    %v3763 = vmul.f32 %v3761, %v516
    %v3764 = vmul.f32 %v3763, %v3763
    %v3766 = vrot.slane %v3764, 7
    %v3768 = vsub.f32 %v3763, %v3766
    %v3769 = vmax.f32 %v3768, 0.0
    %s3770 = scalar_lea.vmem [#allocation9], 6
    %v3771 = vld [vmem:[%s3770] sm:$0x1]
    %v3772 = vadd.f32 %v3769, 1e-05
    %v3773 = vrsqrt.pop %v3772
    %v3774 = vmul.f32 %v3773, %v3772
    %v3775 = vmul.f32 %v3774, %v3773
    %v3776 = vmul.f32 0.5, %v3775
    %v3777 = vsub.f32 1.5, %v3776
    %v3778 = vmul.f32 %v3773, %v3777
    %vm3779 = vweird.f32 %v3772
    %vm3780 = vweird.f32 %v3773
    %vm3781 = vmor %vm3779, %vm3780
    %v3782 = vsel %vm3781, %v3773, %v3778
    %3784 = vst [vmem:[#allocation1] sm:$0xff] %v3782
    %s3785 = scalar_lea.vmem [#allocation1], 1
    %v3786 = vld [vmem:[%s3785] ss:$9 sm:$0xff]
    %v3788 = vmul.f32 %v3771, %v3786
    %s3789 = scalar_lea.vmem [#allocation11], 6
    %v3790 = vld [vmem:[%s3789] sm:$0x1]
    %v3791 = vmul.f32 %v3763, %v3788
    %v3792 = vsub.f32 %v3790, %v3791
    %v3794 = vperm.slane %v3792, 0
    %v3796 = vsel %vm472, %v3788, %v3794
    %v3797 = vld [vmem:[#allocation8] sm:$0xff]
    %v3799 = vsel %vm550, %v3796, 0
    %3801 = vmatpush.msra.mxu0 0.0
    %3802 = vmatpush.msra.mxu0 0.0
    %3803 = vmatpush.msra.mxu0 0.0
    %3804 = vmatpush.msra.mxu0 0.0
    %3805 = vmatpush.msra.mxu0 0.0
    %3806 = vmatpush.msra.mxu0 0.0
    %3807 = vmatpush.msra.mxu0 0.0
    %3808 = vmatpush.msra.mxu0 0.0
    %3809 = vmatpush.msra.mxu0 0.0
    %3810 = vmatpush.msra.mxu0 0.0
    %3811 = vmatpush.msra.mxu0 0.0
    %3812 = vmatpush.msra.mxu0 0.0
    %3813 = vmatpush.msra.mxu0 0.0
    %3814 = vmatpush.msra.mxu0 0.0
    %3815 = vmatpush.msra.mxu0 0.0
    %3816 = vmatpush.msra.mxu0 %v3797
    %3817 = vmatmul.f32.gmra.mxu0 %v3799
    %v3818 = vpop.f32.mrf.mxu0
    %v3819 = vadd.f32 0.0, %v3818
    %3820 = vdwg.mxu0
    %v3821 = vperm.slane %v3819, 0
    %v3822 = vmul.f32 %v3695, %v3821
    %v3823 = vmul.f32 %v3697, %v3821
    %v3824 = vmul.f32 %v3700, %v3821
    %v3825 = vmul.f32 %v3702, %v3821
    %v3826 = vperm.slane %v3819, 1
    %v3827 = vadd.f32 %v3822, %v3826
    %v3828 = vadd.f32 %v3823, %v3826
    %v3829 = vadd.f32 %v3824, %v3826
    %v3830 = vadd.f32 %v3825, %v3826
    %v3831 = vmax.f32 %v3827, 0.0
    %v3832 = vmax.f32 %v3828, 0.0
    %v3833 = vmax.f32 %v3829, 0.0
    %v3834 = vmax.f32 %v3830, 0.0
    %s3835 = scalar_lea.vmem [#allocation2], 384
    %3836 = vst [vmem:[%s3835 + $0x8] sm:$0xff] %v3831
    %3837 = vst [vmem:[%s3835 + $0x10] sm:$0xff] %v3832
    %3838 = vst [vmem:[%s3835 + $0x28] sm:$0xff] %v3833
    %3839 = vst [vmem:[%s3835 + $0x30] sm:$0xff] %v3834
    %v3840 = vld [vmem:[%s3835 + $0x7] sm:$0xff]
    %v3841 = vld [vmem:[%s3835 + $0xf] sm:$0xff]
    %v3842 = vld [vmem:[%s3835 + $0x27] sm:$0xff]
    %v3843 = vld [vmem:[%s3835 + $0x2f] sm:$0xff]
    %v3844 = vpack.c.bf16 %v3840, %v3840
    %v3845 = vpack.c.bf16 %v3841, %v3841
    %v3846 = vpack.c.bf16 %v3842, %v3842
    %v3847 = vpack.c.bf16 %v3843, %v3843
    %v3848 = vld [vmem:[%s3835 + $0x8] sm:$0xff]
    %v3849 = vld [vmem:[%s3835 + $0x10] sm:$0xff]
    %v3850 = vld [vmem:[%s3835 + $0x28] sm:$0xff]
    %v3851 = vld [vmem:[%s3835 + $0x30] sm:$0xff]
    %v3852 = vpack.c.bf16 %v3848, %v3848
    %v3853 = vpack.c.bf16 %v3849, %v3849
    %v3854 = vpack.c.bf16 %v3850, %v3850
    %v3855 = vpack.c.bf16 %v3851, %v3851
    %v3856 = vld [vmem:[%s3835 + $0x9] sm:$0xff]
    %v3857 = vld [vmem:[%s3835 + $0x11] sm:$0xff]
    %v3858 = vld [vmem:[%s3835 + $0x29] sm:$0xff]
    %v3859 = vld [vmem:[%s3835 + $0x31] sm:$0xff]
    %v3860 = vpack.c.bf16 %v3856, %v3856
    %v3861 = vpack.c.bf16 %v3857, %v3857
    %v3862 = vpack.c.bf16 %v3858, %v3858
    %v3863 = vpack.c.bf16 %v3859, %v3859
    %v3864 = vld [vmem:[%s1032 + $0x7] sm:$0xff]
    %v3865 = vld [vmem:[%s1032 + $0xf] sm:$0xff]
    %v3866 = vld [vmem:[%s1032 + $0x27] sm:$0xff]
    %v3867 = vld [vmem:[%s1032 + $0x2f] sm:$0xff]
    %v3868 = vpack.c.bf16 %v3864, %v3864
    %v3869 = vpack.c.bf16 %v3865, %v3865
    %v3870 = vpack.c.bf16 %v3866, %v3866
    %v3871 = vpack.c.bf16 %v3867, %v3867
    %v3872 = vld [vmem:[%s1032 + $0x8] sm:$0xff]
    %v3873 = vld [vmem:[%s1032 + $0x10] sm:$0xff]
    %v3874 = vld [vmem:[%s1032 + $0x28] sm:$0xff]
    %v3875 = vld [vmem:[%s1032 + $0x30] sm:$0xff]
    %v3876 = vpack.c.bf16 %v3872, %v3872
    %v3877 = vpack.c.bf16 %v3873, %v3873
    %v3878 = vpack.c.bf16 %v3874, %v3874
    %v3879 = vpack.c.bf16 %v3875, %v3875
    %v3880 = vld [vmem:[%s1032 + $0x9] sm:$0xff]
    %v3881 = vld [vmem:[%s1032 + $0x11] sm:$0xff]
    %v3882 = vld [vmem:[%s1032 + $0x29] sm:$0xff]
    %v3883 = vld [vmem:[%s1032 + $0x31] sm:$0xff]
    %v3884 = vpack.c.bf16 %v3880, %v3880
    %v3885 = vpack.c.bf16 %v3881, %v3881
    %v3886 = vpack.c.bf16 %v3882, %v3882
    %v3887 = vpack.c.bf16 %v3883, %v3883
    %v3892 = vunpack.c.l.b16 %v3844
    %v3893 = vunpack.c.l.b16 %v3845
    %v3894 = vunpack.c.l.b16 %v3846
    %v3895 = vunpack.c.l.b16 %v3847
    %v3896 = vpack.c.b16 %v3893, %v3892
    %v3897 = vpack.c.b16 %v3895, %v3894
    %v3904 = vunpack.c.l.b16 %v3852
    %v3905 = vunpack.c.l.b16 %v3853
    %v3906 = vunpack.c.l.b16 %v3854
    %v3907 = vunpack.c.l.b16 %v3855
    %v3908 = vpack.c.b16 %v3905, %v3904
    %v3909 = vpack.c.b16 %v3907, %v3906
    %v3916 = vunpack.c.l.b16 %v3860
    %v3917 = vunpack.c.l.b16 %v3861
    %v3918 = vunpack.c.l.b16 %v3862
    %v3919 = vunpack.c.l.b16 %v3863
    %v3920 = vpack.c.b16 %v3917, %v3916
    %v3921 = vpack.c.b16 %v3919, %v3918
    %v3928 = vunpack.c.l.b16 %v3868
    %v3929 = vunpack.c.l.b16 %v3869
    %v3930 = vunpack.c.l.b16 %v3870
    %v3931 = vunpack.c.l.b16 %v3871
    %v3932 = vpack.c.b16 %v3929, %v3928
    %v3933 = vpack.c.b16 %v3931, %v3930
    %v3940 = vunpack.c.l.b16 %v3876
    %v3941 = vunpack.c.l.b16 %v3877
    %v3942 = vunpack.c.l.b16 %v3878
    %v3943 = vunpack.c.l.b16 %v3879
    %v3944 = vpack.c.b16 %v3941, %v3940
    %v3945 = vpack.c.b16 %v3943, %v3942
    %v3952 = vunpack.c.l.b16 %v3884
    %v3953 = vunpack.c.l.b16 %v3885
    %v3954 = vunpack.c.l.b16 %v3886
    %v3955 = vunpack.c.l.b16 %v3887
    %v3956 = vpack.c.b16 %v3953, %v3952
    %v3957 = vpack.c.b16 %v3955, %v3954
    %v3960 = vld [vmem:[#allocation6 + $0x6c0] sm:$0xf]
    %v3961 = vld [vmem:[#allocation6 + $0x6c4] sm:$0xf]
    %v3962 = vld [vmem:[#allocation6 + $0x6c8] sm:$0xf]
    %v3963 = vld [vmem:[#allocation6 + $0x6cc] sm:$0xf]
    %v3964 = vld [vmem:[#allocation6 + $0x6d0] sm:$0xf]
    %v3965 = vld [vmem:[#allocation6 + $0x6d4] sm:$0xf]
    %v3966 = vld [vmem:[#allocation6 + $0x6d8] sm:$0xf]
    %v3967 = vld [vmem:[#allocation6 + $0x6dc] sm:$0xf]
    %v3968 = vld [vmem:[#allocation6 + $0x6e0] sm:$0xf]
    %v3969 = vld [vmem:[#allocation6 + $0x6e4] sm:$0xf]
    %v3970 = vld [vmem:[#allocation6 + $0x6e8] sm:$0xf]
    %v3971 = vld [vmem:[#allocation6 + $0x6ec] sm:$0xf]
    %v3972 = vld [vmem:[#allocation6 + $0x6f0] sm:$0xf]
    %v3973 = vld [vmem:[#allocation6 + $0x6f4] sm:$0xf]
    %v3974 = vld [vmem:[#allocation6 + $0x6f8] sm:$0xf]
    %v3975 = vld [vmem:[#allocation6 + $0x6fc] sm:$0xf]
    %v3976 = vld [vmem:[#allocation6 + $0x700] sm:$0xf]
    %v3977 = vld [vmem:[#allocation6 + $0x704] sm:$0xf]
    %v3978 = vld [vmem:[#allocation6 + $0x708] sm:$0xf]
    %v3979 = vld [vmem:[#allocation6 + $0x70c] sm:$0xf]
    %v3980 = vld [vmem:[#allocation6 + $0x710] sm:$0xf]
    %v3981 = vld [vmem:[#allocation6 + $0x714] sm:$0xf]
    %v3982 = vld [vmem:[#allocation6 + $0x718] sm:$0xf]
    %v3983 = vld [vmem:[#allocation6 + $0x71c] sm:$0xf]
    %v3984 = vld [vmem:[#allocation6 + $0x720] sm:$0xf]
    %v3985 = vld [vmem:[#allocation6 + $0x724] sm:$0xf]
    %v3986 = vld [vmem:[#allocation6 + $0x728] sm:$0xf]
    %v3987 = vld [vmem:[#allocation6 + $0x72c] sm:$0xf]
    %v3988 = vld [vmem:[#allocation6 + $0x730] sm:$0xf]
    %v3989 = vld [vmem:[#allocation6 + $0x734] sm:$0xf]
    %v3990 = vld [vmem:[#allocation6 + $0x738] sm:$0xf]
    %v3991 = vld [vmem:[#allocation6 + $0x73c] sm:$0xf]
    %v3992 = vld [vmem:[#allocation6 + $0x740] sm:$0xf]
    %v3993 = vld [vmem:[#allocation6 + $0x744] sm:$0xf]
    %v3994 = vld [vmem:[#allocation6 + $0x748] sm:$0xf]
    %v3995 = vld [vmem:[#allocation6 + $0x74c] sm:$0xf]
    %v3996 = vld [vmem:[#allocation6 + $0x750] sm:$0xf]
    %v3997 = vld [vmem:[#allocation6 + $0x754] sm:$0xf]
    %v3998 = vld [vmem:[#allocation6 + $0x758] sm:$0xf]
    %v3999 = vld [vmem:[#allocation6 + $0x75c] sm:$0xf]
    %v4000 = vld [vmem:[#allocation6 + $0x760] sm:$0xf]
    %v4001 = vld [vmem:[#allocation6 + $0x764] sm:$0xf]
    %v4002 = vld [vmem:[#allocation6 + $0x768] sm:$0xf]
    %v4003 = vld [vmem:[#allocation6 + $0x76c] sm:$0xf]
    %v4004 = vld [vmem:[#allocation6 + $0x770] sm:$0xf]
    %v4005 = vld [vmem:[#allocation6 + $0x774] sm:$0xf]
    %v4006 = vld [vmem:[#allocation6 + $0x778] sm:$0xf]
    %v4007 = vld [vmem:[#allocation6 + $0x77c] sm:$0xf]
    %v4008 = vld [vmem:[#allocation6 + $0x780] sm:$0xf]
    %v4009 = vld [vmem:[#allocation6 + $0x784] sm:$0xf]
    %v4010 = vld [vmem:[#allocation6 + $0x788] sm:$0xf]
    %v4011 = vld [vmem:[#allocation6 + $0x78c] sm:$0xf]
    %v4012 = vld [vmem:[#allocation6 + $0x790] sm:$0xf]
    %v4013 = vld [vmem:[#allocation6 + $0x794] sm:$0xf]
    %v4014 = vld [vmem:[#allocation6 + $0x798] sm:$0xf]
    %v4015 = vld [vmem:[#allocation6 + $0x79c] sm:$0xf]
    %v4016 = vld [vmem:[#allocation6 + $0x7a0] sm:$0xf]
    %v4017 = vld [vmem:[#allocation6 + $0x7a4] sm:$0xf]
    %v4018 = vld [vmem:[#allocation6 + $0x7a8] sm:$0xf]
    %v4019 = vld [vmem:[#allocation6 + $0x7ac] sm:$0xf]
    %v4020 = vld [vmem:[#allocation6 + $0x7b0] sm:$0xf]
    %v4021 = vld [vmem:[#allocation6 + $0x7b4] sm:$0xf]
    %v4022 = vld [vmem:[#allocation6 + $0x7b8] sm:$0xf]
    %v4023 = vld [vmem:[#allocation6 + $0x7bc] sm:$0xf]
    %v4024 = vld [vmem:[#allocation6 + $0x7c0] sm:$0xf]
    %v4025 = vld [vmem:[#allocation6 + $0x7c4] sm:$0xf]
    %v4026 = vld [vmem:[#allocation6 + $0x7c8] sm:$0xf]
    %v4027 = vld [vmem:[#allocation6 + $0x7cc] sm:$0xf]
    %v4028 = vld [vmem:[#allocation6 + $0x7d0] sm:$0xf]
    %v4029 = vld [vmem:[#allocation6 + $0x7d4] sm:$0xf]
    %v4030 = vld [vmem:[#allocation6 + $0x7d8] sm:$0xf]
    %v4031 = vld [vmem:[#allocation6 + $0x7dc] sm:$0xf]
    %v4032 = vld [vmem:[#allocation6 + $0x7e0] sm:$0xf]
    %v4033 = vld [vmem:[#allocation6 + $0x7e4] sm:$0xf]
    %v4034 = vld [vmem:[#allocation6 + $0x7e8] sm:$0xf]
    %v4035 = vld [vmem:[#allocation6 + $0x7ec] sm:$0xf]
    %v4036 = vld [vmem:[#allocation6 + $0x7f0] sm:$0xf]
    %v4037 = vld [vmem:[#allocation6 + $0x7f4] sm:$0xf]
    %v4038 = vld [vmem:[#allocation6 + $0x7f8] sm:$0xf]
    %v4039 = vld [vmem:[#allocation6 + $0x7fc] sm:$0xf]
    %v4040 = vld [vmem:[#allocation6 + $0x800] sm:$0xf]
    %v4041 = vld [vmem:[#allocation6 + $0x804] sm:$0xf]
    %v4042 = vld [vmem:[#allocation6 + $0x808] sm:$0xf]
    %v4043 = vld [vmem:[#allocation6 + $0x80c] sm:$0xf]
    %v4044 = vld [vmem:[#allocation6 + $0x810] sm:$0xf]
    %v4045 = vld [vmem:[#allocation6 + $0x814] sm:$0xf]
    %v4046 = vld [vmem:[#allocation6 + $0x818] sm:$0xf]
    %v4047 = vld [vmem:[#allocation6 + $0x81c] sm:$0xf]
    %v4048 = vld [vmem:[#allocation6 + $0x820] sm:$0xf]
    %v4049 = vld [vmem:[#allocation6 + $0x824] sm:$0xf]
    %v4050 = vld [vmem:[#allocation6 + $0x828] sm:$0xf]
    %v4051 = vld [vmem:[#allocation6 + $0x82c] sm:$0xf]
    %v4052 = vld [vmem:[#allocation6 + $0x830] sm:$0xf]
    %v4053 = vld [vmem:[#allocation6 + $0x834] sm:$0xf]
    %v4054 = vld [vmem:[#allocation6 + $0x838] sm:$0xf]
    %v4055 = vld [vmem:[#allocation6 + $0x83c] sm:$0xf]
    %v4152 = vunpack.c.l.b16 %v3960
    %v4153 = vunpack.c.l.b16 %v3961
    %v4154 = vunpack.c.l.b16 %v3962
    %v4155 = vunpack.c.l.b16 %v3963
    %v4156 = vunpack.c.l.b16 %v3964
    %v4157 = vunpack.c.l.b16 %v3965
    %v4158 = vunpack.c.l.b16 %v3966
    %v4159 = vunpack.c.l.b16 %v3967
    %v4160 = vunpack.c.l.b16 %v3968
    %v4161 = vunpack.c.l.b16 %v3969
    %v4162 = vunpack.c.l.b16 %v3970
    %v4163 = vunpack.c.l.b16 %v3971
    %v4164 = vunpack.c.l.b16 %v3972
    %v4165 = vunpack.c.l.b16 %v3973
    %v4166 = vunpack.c.l.b16 %v3974
    %v4167 = vunpack.c.l.b16 %v3975
    %v4168 = vunpack.c.l.b16 %v3976
    %v4169 = vunpack.c.l.b16 %v3977
    %v4170 = vunpack.c.l.b16 %v3978
    %v4171 = vunpack.c.l.b16 %v3979
    %v4172 = vunpack.c.l.b16 %v3980
    %v4173 = vunpack.c.l.b16 %v3981
    %v4174 = vunpack.c.l.b16 %v3982
    %v4175 = vunpack.c.l.b16 %v3983
    %v4176 = vunpack.c.l.b16 %v3984
    %v4177 = vunpack.c.l.b16 %v3985
    %v4178 = vunpack.c.l.b16 %v3986
    %v4179 = vunpack.c.l.b16 %v3987
    %v4180 = vunpack.c.l.b16 %v3988
    %v4181 = vunpack.c.l.b16 %v3989
    %v4182 = vunpack.c.l.b16 %v3990
    %v4183 = vunpack.c.l.b16 %v3991
    %v4184 = vunpack.c.l.b16 %v3992
    %v4185 = vunpack.c.l.b16 %v3993
    %v4186 = vunpack.c.l.b16 %v3994
    %v4187 = vunpack.c.l.b16 %v3995
    %v4188 = vunpack.c.l.b16 %v3996
    %v4189 = vunpack.c.l.b16 %v3997
    %v4190 = vunpack.c.l.b16 %v3998
    %v4191 = vunpack.c.l.b16 %v3999
    %v4192 = vunpack.c.l.b16 %v4000
    %v4193 = vunpack.c.l.b16 %v4001
    %v4194 = vunpack.c.l.b16 %v4002
    %v4195 = vunpack.c.l.b16 %v4003
    %v4196 = vunpack.c.l.b16 %v4004
    %v4197 = vunpack.c.l.b16 %v4005
    %v4198 = vunpack.c.l.b16 %v4006
    %v4199 = vunpack.c.l.b16 %v4007
    %v4200 = vunpack.c.l.b16 %v4008
    %v4201 = vunpack.c.l.b16 %v4009
    %v4202 = vunpack.c.l.b16 %v4010
    %v4203 = vunpack.c.l.b16 %v4011
    %v4204 = vunpack.c.l.b16 %v4012
    %v4205 = vunpack.c.l.b16 %v4013
    %v4206 = vunpack.c.l.b16 %v4014
    %v4207 = vunpack.c.l.b16 %v4015
    %v4208 = vunpack.c.l.b16 %v4016
    %v4209 = vunpack.c.l.b16 %v4017
    %v4210 = vunpack.c.l.b16 %v4018
    %v4211 = vunpack.c.l.b16 %v4019
    %v4212 = vunpack.c.l.b16 %v4020
    %v4213 = vunpack.c.l.b16 %v4021
    %v4214 = vunpack.c.l.b16 %v4022
    %v4215 = vunpack.c.l.b16 %v4023
    %v4216 = vunpack.c.l.b16 %v4024
    %v4217 = vunpack.c.l.b16 %v4025
    %v4218 = vunpack.c.l.b16 %v4026
    %v4219 = vunpack.c.l.b16 %v4027
    %v4220 = vunpack.c.l.b16 %v4028
    %v4221 = vunpack.c.l.b16 %v4029
    %v4222 = vunpack.c.l.b16 %v4030
    %v4223 = vunpack.c.l.b16 %v4031
    %v4224 = vunpack.c.l.b16 %v4032
    %v4225 = vunpack.c.l.b16 %v4033
    %v4226 = vunpack.c.l.b16 %v4034
    %v4227 = vunpack.c.l.b16 %v4035
    %v4228 = vunpack.c.l.b16 %v4036
    %v4229 = vunpack.c.l.b16 %v4037
    %v4230 = vunpack.c.l.b16 %v4038
    %v4231 = vunpack.c.l.b16 %v4039
    %v4232 = vunpack.c.l.b16 %v4040
    %v4233 = vunpack.c.l.b16 %v4041
    %v4234 = vunpack.c.l.b16 %v4042
    %v4235 = vunpack.c.l.b16 %v4043
    %v4236 = vunpack.c.l.b16 %v4044
    %v4237 = vunpack.c.l.b16 %v4045
    %v4238 = vunpack.c.l.b16 %v4046
    %v4239 = vunpack.c.l.b16 %v4047
    %v4240 = vunpack.c.l.b16 %v4048
    %v4241 = vunpack.c.l.b16 %v4049
    %v4242 = vunpack.c.l.b16 %v4050
    %v4243 = vunpack.c.l.b16 %v4051
    %v4244 = vunpack.c.l.b16 %v4052
    %v4245 = vunpack.c.l.b16 %v4053
    %v4246 = vunpack.c.l.b16 %v4054
    %v4247 = vunpack.c.l.b16 %v4055
    %v4248 = vpack.c.b16 %v4153, %v4152
    %v4249 = vpack.c.b16 %v4155, %v4154
    %v4250 = vpack.c.b16 %v4157, %v4156
    %v4251 = vpack.c.b16 %v4159, %v4158
    %v4252 = vpack.c.b16 %v4161, %v4160
    %v4253 = vpack.c.b16 %v4163, %v4162
    %v4254 = vpack.c.b16 %v4165, %v4164
    %v4255 = vpack.c.b16 %v4167, %v4166
    %v4256 = vpack.c.b16 %v4169, %v4168
    %v4257 = vpack.c.b16 %v4171, %v4170
    %v4258 = vpack.c.b16 %v4173, %v4172
    %v4259 = vpack.c.b16 %v4175, %v4174
    %v4260 = vpack.c.b16 %v4177, %v4176
    %v4261 = vpack.c.b16 %v4179, %v4178
    %v4262 = vpack.c.b16 %v4181, %v4180
    %v4263 = vpack.c.b16 %v4183, %v4182
    %v4264 = vpack.c.b16 %v4185, %v4184
    %v4265 = vpack.c.b16 %v4187, %v4186
    %v4266 = vpack.c.b16 %v4189, %v4188
    %v4267 = vpack.c.b16 %v4191, %v4190
    %v4268 = vpack.c.b16 %v4193, %v4192
    %v4269 = vpack.c.b16 %v4195, %v4194
    %v4270 = vpack.c.b16 %v4197, %v4196
    %v4271 = vpack.c.b16 %v4199, %v4198
    %v4272 = vpack.c.b16 %v4201, %v4200
    %v4273 = vpack.c.b16 %v4203, %v4202
    %v4274 = vpack.c.b16 %v4205, %v4204
    %v4275 = vpack.c.b16 %v4207, %v4206
    %v4276 = vpack.c.b16 %v4209, %v4208
    %v4277 = vpack.c.b16 %v4211, %v4210
    %v4278 = vpack.c.b16 %v4213, %v4212
    %v4279 = vpack.c.b16 %v4215, %v4214
    %v4280 = vpack.c.b16 %v4217, %v4216
    %v4281 = vpack.c.b16 %v4219, %v4218
    %v4282 = vpack.c.b16 %v4221, %v4220
    %v4283 = vpack.c.b16 %v4223, %v4222
    %v4284 = vpack.c.b16 %v4225, %v4224
    %v4285 = vpack.c.b16 %v4227, %v4226
    %v4286 = vpack.c.b16 %v4229, %v4228
    %v4287 = vpack.c.b16 %v4231, %v4230
    %v4288 = vpack.c.b16 %v4233, %v4232
    %v4289 = vpack.c.b16 %v4235, %v4234
    %v4290 = vpack.c.b16 %v4237, %v4236
    %v4291 = vpack.c.b16 %v4239, %v4238
    %v4292 = vpack.c.b16 %v4241, %v4240
    %v4293 = vpack.c.b16 %v4243, %v4242
    %v4294 = vpack.c.b16 %v4245, %v4244
    %v4295 = vpack.c.b16 %v4247, %v4246
    %4344 = vmatpush.bf16.msra.mxu0 %v4255
    %4345 = vmatpush.bf16.msra.mxu0 %v4254
    %4346 = vmatpush.bf16.msra.mxu0 %v4253
    %4347 = vmatpush.bf16.msra.mxu0 %v4252
    %4348 = vmatpush.bf16.msra.mxu0 %v4251
    %4349 = vmatpush.bf16.msra.mxu0 %v4250
    %4350 = vmatpush.bf16.msra.mxu0 %v4249
    %4351 = vmatpush.bf16.msra.mxu0 %v4248
    %4352 = vmatmul.bf16.gmra.mxu0 %v3896
    %v4353 = vpop.f32.mrf.mxu0
    %v4354 = vadd.f32 0.0, %v4353
    %v4355 = vpop.f32.mrf.mxu0
    %v4356 = vadd.f32 0.0, %v4355
    %4357 = vmatmul.bf16.gmra.mxu0 %v3897
    %v4358 = vpop.f32.mrf.mxu0
    %v4359 = vadd.f32 0.0, %v4358
    %v4360 = vpop.f32.mrf.mxu0
    %v4361 = vadd.f32 0.0, %v4360
    %4362 = vdwg.mxu0
    %4363 = vmatpush.bf16.msra.mxu0 %v4263
    %4364 = vmatpush.bf16.msra.mxu0 %v4262
    %4365 = vmatpush.bf16.msra.mxu0 %v4261
    %4366 = vmatpush.bf16.msra.mxu0 %v4260
    %4367 = vmatpush.bf16.msra.mxu0 %v4259
    %4368 = vmatpush.bf16.msra.mxu0 %v4258
    %4369 = vmatpush.bf16.msra.mxu0 %v4257
    %4370 = vmatpush.bf16.msra.mxu0 %v4256
    %4371 = vmatmul.bf16.gmra.mxu0 %v3908
    %v4372 = vpop.f32.mrf.mxu0
    %v4373 = vadd.f32 %v4354, %v4372
    %v4374 = vpop.f32.mrf.mxu0
    %v4375 = vadd.f32 %v4356, %v4374
    %4376 = vmatmul.bf16.gmra.mxu0 %v3909
    %v4377 = vpop.f32.mrf.mxu0
    %v4378 = vadd.f32 %v4359, %v4377
    %v4379 = vpop.f32.mrf.mxu0
    %v4380 = vadd.f32 %v4361, %v4379
    %4381 = vdwg.mxu0
    %4382 = vmatpush.bf16.msra.mxu0 %v4271
    %4383 = vmatpush.bf16.msra.mxu0 %v4270
    %4384 = vmatpush.bf16.msra.mxu0 %v4269
    %4385 = vmatpush.bf16.msra.mxu0 %v4268
    %4386 = vmatpush.bf16.msra.mxu0 %v4267
    %4387 = vmatpush.bf16.msra.mxu0 %v4266
    %4388 = vmatpush.bf16.msra.mxu0 %v4265
    %4389 = vmatpush.bf16.msra.mxu0 %v4264
    %4390 = vmatmul.bf16.gmra.mxu0 %v3920
    %v4391 = vpop.f32.mrf.mxu0
    %v4392 = vadd.f32 %v4373, %v4391
    %v4393 = vpop.f32.mrf.mxu0
    %v4394 = vadd.f32 %v4375, %v4393
    %4395 = vmatmul.bf16.gmra.mxu0 %v3921
    %v4396 = vpop.f32.mrf.mxu0
    %v4397 = vadd.f32 %v4378, %v4396
    %v4398 = vpop.f32.mrf.mxu0
    %v4399 = vadd.f32 %v4380, %v4398
    %4400 = vdwg.mxu0
    %4401 = vmatpush.bf16.msra.mxu0 %v4279
    %4402 = vmatpush.bf16.msra.mxu0 %v4278
    %4403 = vmatpush.bf16.msra.mxu0 %v4277
    %4404 = vmatpush.bf16.msra.mxu0 %v4276
    %4405 = vmatpush.bf16.msra.mxu0 %v4275
    %4406 = vmatpush.bf16.msra.mxu0 %v4274
    %4407 = vmatpush.bf16.msra.mxu0 %v4273
    %4408 = vmatpush.bf16.msra.mxu0 %v4272
    %4409 = vmatmul.bf16.gmra.mxu0 %v3932
    %v4410 = vpop.f32.mrf.mxu0
    %v4411 = vadd.f32 %v4392, %v4410
    %v4412 = vpop.f32.mrf.mxu0
    %v4413 = vadd.f32 %v4394, %v4412
    %4414 = vmatmul.bf16.gmra.mxu0 %v3933
    %v4415 = vpop.f32.mrf.mxu0
    %v4416 = vadd.f32 %v4397, %v4415
    %v4417 = vpop.f32.mrf.mxu0
    %v4418 = vadd.f32 %v4399, %v4417
    %4419 = vdwg.mxu0
    %4420 = vmatpush.bf16.msra.mxu0 %v4287
    %4421 = vmatpush.bf16.msra.mxu0 %v4286
    %4422 = vmatpush.bf16.msra.mxu0 %v4285
    %4423 = vmatpush.bf16.msra.mxu0 %v4284
    %4424 = vmatpush.bf16.msra.mxu0 %v4283
    %4425 = vmatpush.bf16.msra.mxu0 %v4282
    %4426 = vmatpush.bf16.msra.mxu0 %v4281
    %4427 = vmatpush.bf16.msra.mxu0 %v4280
    %4428 = vmatmul.bf16.gmra.mxu0 %v3944
    %v4429 = vpop.f32.mrf.mxu0
    %v4430 = vadd.f32 %v4411, %v4429
    %v4431 = vpop.f32.mrf.mxu0
    %v4432 = vadd.f32 %v4413, %v4431
    %4433 = vmatmul.bf16.gmra.mxu0 %v3945
    %v4434 = vpop.f32.mrf.mxu0
    %v4435 = vadd.f32 %v4416, %v4434
    %v4436 = vpop.f32.mrf.mxu0
    %v4437 = vadd.f32 %v4418, %v4436
    %4438 = vdwg.mxu0
    %4439 = vmatpush.bf16.msra.mxu0 %v4295
    %4440 = vmatpush.bf16.msra.mxu0 %v4294
    %4441 = vmatpush.bf16.msra.mxu0 %v4293
    %4442 = vmatpush.bf16.msra.mxu0 %v4292
    %4443 = vmatpush.bf16.msra.mxu0 %v4291
    %4444 = vmatpush.bf16.msra.mxu0 %v4290
    %4445 = vmatpush.bf16.msra.mxu0 %v4289
    %4446 = vmatpush.bf16.msra.mxu0 %v4288
    %4447 = vmatmul.bf16.gmra.mxu0 %v3956
    %v4448 = vpop.f32.mrf.mxu0
    %v4449 = vadd.f32 %v4430, %v4448
    %v4450 = vpop.f32.mrf.mxu0
    %v4451 = vadd.f32 %v4432, %v4450
    %4452 = vmatmul.bf16.gmra.mxu0 %v3957
    %v4453 = vpop.f32.mrf.mxu0
    %v4454 = vadd.f32 %v4435, %v4453
    %v4455 = vpop.f32.mrf.mxu0
    %v4456 = vadd.f32 %v4437, %v4455
    %4457 = vdwg.mxu0
    %v4458 = vadd.f32 %v4449, %v4451
    %v4459 = vadd.f32 %v4458, %v4454
    %v4460 = vadd.f32 %v4459, %v4456
    %v4461 = vrot.slane %v4460, 4
    %v4462 = vadd.f32 %v4460, %v4461
    %v4463 = vrot.slane %v4462, 2
    %v4464 = vadd.f32 %v4462, %v4463
    %v4465 = vrot.slane %v4464, 1
    %v4466 = vadd.f32 %v4464, %v4465
    %v4467 = vmul.f32 %v4449, %v4449
    %v4468 = vmul.f32 %v4451, %v4451
    %v4469 = vmul.f32 %v4454, %v4454
    %v4470 = vmul.f32 %v4456, %v4456
    %v4471 = vadd.f32 %v4467, %v4468
    %v4472 = vadd.f32 %v4471, %v4469
    %v4473 = vadd.f32 %v4472, %v4470
    %v4474 = vrot.slane %v4473, 4
    %v4475 = vadd.f32 %v4473, %v4474
    %v4476 = vrot.slane %v4475, 2
    %v4477 = vadd.f32 %v4475, %v4476
    %v4478 = vrot.slane %v4477, 1
    %v4479 = vadd.f32 %v4477, %v4478
    %v4480 = vsel %vm472, %v4466, %v4479
    %v4481 = vld [vmem:[%s2] sm:$0xff]
    %v4482 = vld [vmem:[%s2 + $0x8] sm:$0xff]
    %v4483 = vld [vmem:[%s2 + $0x10] sm:$0xff]
    %v4484 = vld [vmem:[%s2 + $0x18] sm:$0xff]
    %v4485 = vld [vmem:[%s2 + $0x20] sm:$0xff]
    %v4486 = vld [vmem:[%s2 + $0x28] sm:$0xff]
    %v4487 = vld [vmem:[%s2 + $0x30] sm:$0xff]
    %v4488 = vld [vmem:[%s2 + $0x38] sm:$0xff]
    %v4489 = vld [vmem:[%s2 + $0x40] sm:$0xff]
    %v4490 = vld [vmem:[%s2 + $0x48] sm:$0xff]
    %v4491 = vld [vmem:[%s2 + $0x50] sm:$0xff]
    %v4492 = vld [vmem:[%s2 + $0x58] sm:$0xff]
    %v4493 = vld [vmem:[%s2 + $0x60] sm:$0xff]
    %v4494 = vld [vmem:[%s2 + $0x68] sm:$0xff]
    %v4495 = vld [vmem:[%s2 + $0x70] sm:$0xff]
    %v4496 = vld [vmem:[%s2 + $0x78] sm:$0xff]
    %4497 = vmatpush.msra.mxu0 %v4496
    %4498 = vmatpush.msra.mxu0 %v4495
    %4499 = vmatpush.msra.mxu0 %v4494
    %4500 = vmatpush.msra.mxu0 %v4493
    %4501 = vmatpush.msra.mxu0 %v4492
    %4502 = vmatpush.msra.mxu0 %v4491
    %4503 = vmatpush.msra.mxu0 %v4490
    %4504 = vmatpush.msra.mxu0 %v4489
    %4505 = vmatpush.msra.mxu0 %v4488
    %4506 = vmatpush.msra.mxu0 %v4487
    %4507 = vmatpush.msra.mxu0 %v4486
    %4508 = vmatpush.msra.mxu0 %v4485
    %4509 = vmatpush.msra.mxu0 %v4484
    %4510 = vmatpush.msra.mxu0 %v4483
    %4511 = vmatpush.msra.mxu0 %v4482
    %4512 = vmatpush.msra.mxu0 %v4481
    %4513 = vmatmul.f32.gmra.mxu0 %v4480
    %v4514 = vpop.f32.mrf.mxu0
    %v4515 = vadd.f32 0.0, %v4514
    %4516 = vdwg.mxu0
    %v4517 = vmul.f32 %v4515, %v516
    %v4518 = vmul.f32 %v4517, %v4517
    %v4520 = vrot.slane %v4518, 7
    %v4522 = vsub.f32 %v4517, %v4520
    %v4523 = vmax.f32 %v4522, 0.0
    %s4524 = scalar_lea.vmem [#allocation9], 7
    %v4525 = vld [vmem:[%s4524] sm:$0x1]
    %v4526 = vadd.f32 %v4523, 1e-05
    %v4527 = vrsqrt.pop %v4526
    %v4528 = vmul.f32 %v4527, %v4526
    %v4529 = vmul.f32 %v4528, %v4527
    %v4530 = vmul.f32 0.5, %v4529
    %v4531 = vsub.f32 1.5, %v4530
    %v4532 = vmul.f32 %v4527, %v4531
    %vm4533 = vweird.f32 %v4526
    %vm4534 = vweird.f32 %v4527
    %vm4535 = vmor %vm4533, %vm4534
    %v4536 = vsel %vm4535, %v4527, %v4532
    %4538 = vst [vmem:[#allocation1] sm:$0xff] %v4536
    %s4539 = scalar_lea.vmem [#allocation1], 1
    %v4540 = vld [vmem:[%s4539] ss:$9 sm:$0xff]
    %v4542 = vmul.f32 %v4525, %v4540
    %s4543 = scalar_lea.vmem [#allocation11], 7
    %v4544 = vld [vmem:[%s4543] sm:$0x1]
    %v4545 = vmul.f32 %v4517, %v4542
    %v4546 = vsub.f32 %v4544, %v4545
    %v4548 = vperm.slane %v4546, 0
    %v4550 = vsel %vm472, %v4542, %v4548
    %v4551 = vld [vmem:[#allocation8] sm:$0xff]
    %v4553 = vsel %vm550, %v4550, 0
    %4555 = vmatpush.msra.mxu0 0.0
    %4556 = vmatpush.msra.mxu0 0.0
    %4557 = vmatpush.msra.mxu0 0.0
    %4558 = vmatpush.msra.mxu0 0.0
    %4559 = vmatpush.msra.mxu0 0.0
    %4560 = vmatpush.msra.mxu0 0.0
    %4561 = vmatpush.msra.mxu0 0.0
    %4562 = vmatpush.msra.mxu0 0.0
    %4563 = vmatpush.msra.mxu0 0.0
    %4564 = vmatpush.msra.mxu0 0.0
    %4565 = vmatpush.msra.mxu0 0.0
    %4566 = vmatpush.msra.mxu0 0.0
    %4567 = vmatpush.msra.mxu0 0.0
    %4568 = vmatpush.msra.mxu0 0.0
    %4569 = vmatpush.msra.mxu0 0.0
    %4570 = vmatpush.msra.mxu0 %v4551
    %4571 = vmatmul.f32.gmra.mxu0 %v4553
    %v4572 = vpop.f32.mrf.mxu0
    %v4573 = vadd.f32 0.0, %v4572
    %4574 = vdwg.mxu0
    %v4575 = vperm.slane %v4573, 0
    %v4576 = vmul.f32 %v4449, %v4575
    %v4577 = vmul.f32 %v4451, %v4575
    %v4578 = vmul.f32 %v4454, %v4575
    %v4579 = vmul.f32 %v4456, %v4575
    %v4580 = vperm.slane %v4573, 1
    %v4581 = vadd.f32 %v4576, %v4580
    %v4582 = vadd.f32 %v4577, %v4580
    %v4583 = vadd.f32 %v4578, %v4580
    %v4584 = vadd.f32 %v4579, %v4580
    %v4585 = vmax.f32 %v4581, 0.0
    %v4586 = vmax.f32 %v4582, 0.0
    %v4587 = vmax.f32 %v4583, 0.0
    %v4588 = vmax.f32 %v4584, 0.0
    %v4589 = vld [vmem:[#allocation2 + $0x8] sm:$0xff]
    %v4590 = vld [vmem:[#allocation2 + $0x10] sm:$0xff]
    %v4591 = vld [vmem:[#allocation2 + $0x28] sm:$0xff]
    %v4592 = vld [vmem:[#allocation2 + $0x30] sm:$0xff]
    %v4593 = vadd.f32 %v4585, %v4589
    %v4594 = vadd.f32 %v4586, %v4590
    %v4595 = vadd.f32 %v4587, %v4591
    %v4596 = vadd.f32 %v4588, %v4592
    %4597 = vst [vmem:[#allocation12] sm:$0xff] %v4593
    %4598 = vst [vmem:[#allocation12 + $0x8] sm:$0xff] %v4594
    %4599 = vst [vmem:[#allocation12 + $0x10] sm:$0xff] %v4595
    %4600 = vst [vmem:[#allocation12 + $0x18] sm:$0xff] %v4596
    // Predicated region
    $region46: #{tpu_custom_call.1} parent=1 // pred_check
      _
    $region47: #{tpu_custom_call.1} parent=1 // pred_check_branch
      %4602 = sbr.rel (0) target = $region49
    $region48: #{tpu_custom_call.1} parent=1 // pred_region
      %4604 = vsyncadd [#allocation5], 0
      %s4605 = sshll.u32 [#allocation12], 4
      %s4606 = int_to_ptr.vmem [resolvable:$true] %s4605
      %s4607 = sshll.u32 %s6, 4
      %s4608 = int_to_ptr.hbm [resolvable:$true] %s4607
      %4613 = dma.vmem_to_hbm [thread:$0]  %s4606, 512, %s4608, [#allocation5], 128, 128, 8
    $region49: #{tpu_custom_call.1} parent=1 // pred_fallthru
      _
    // Predicated region
    $region50: #{tpu_custom_call.1} parent=1 // pred_check
      _
    $region51: #{tpu_custom_call.1} parent=1 // pred_check_branch
      %4615 = sbr.rel (0) target = $region53
    $region52: #{tpu_custom_call.1} parent=1 // pred_region
      %4617 = dma.done [#allocation5], 512
    $region53: #{tpu_custom_call.1} parent=1 // pred_fallthru
      _
    %4618 = vsyncpa [#allocation4], 1
    %4619 = vsyncpa [#allocation7], 1
    %4620 = vsyncpa [#allocation10], 1
    %4621 = vsyncpa [#allocation5], 1

</llo_original>
